<compile_context>
chip_gen: v7x
topology: tpu7x:2x2x1
jax: 0.10.0
libtpu: 0.0.40
codegen_flags: <defaults>
</compile_context>

<pallas_src>
import math

import jax
import jax.numpy as jnp
import numpy as np
from jax import lax
from jax.experimental import pallas as pl
from jax.experimental.pallas import tpu as pltpu  # noqa: F401

# ---------------- model hyperparameters (small, consistent with the module) ---
B = 2          # batch
S = 8          # sequence length
D_MODEL = 32   # d_model
NUM_HEADS = 4
D_K = D_MODEL // NUM_HEADS
D_FF = 64
EPS = 1e-5
BS = B * S

# ---- packed weight-slab column offsets (weights live in rows 0:D_MODEL, except W2) ----
C_QKV1 = 0                        # fused self-attn QKV (Q pre-scaled)   width 3*D_MODEL
C_Q2 = C_QKV1 + 3 * D_MODEL       # cross-attn Q (pre-scaled)            width D_MODEL
C_KV2 = C_Q2 + D_MODEL            # fused cross-attn KV                  width 2*D_MODEL
C_O1 = C_KV2 + 2 * D_MODEL        # self-attn W_o                        width D_MODEL
C_O2 = C_O1 + D_MODEL             # cross-attn W_o                       width D_MODEL
C_W1 = C_O2 + D_MODEL             # FFN fc1                              width D_FF
C_W2 = C_W1 + D_FF                # FFN fc2 (rows 0:D_FF)                width D_MODEL
SLAB_COLS = 384                   # 352 used, padded to a multiple of 128 (lane-dense)
SLAB_ROWS = max(D_MODEL, D_FF)    # 64

# ---- bias / LayerNorm row-slab indices (each row: data in leading lanes, rest 0) ----
R_BQKV1, R_BKV2, R_B1 = 0, 1, 2
R_BQ2, R_BO1, R_BO2, R_B2 = 3, 4, 5, 6
R_G1, R_BE1, R_G2, R_BE2, R_G3, R_BE3 = 7, 8, 9, 10, 11, 12
VEC_ROWS, VEC_COLS = 16, 128


# --------------------------------- kernel -------------------------------------
def decoder_layer_kernel(x_ref, enc_ref, masks_ref, w_ref, vec_ref, out_ref):
    f32 = jnp.float32
    x = x_ref[...]            # (B*S, D)
    enc = enc_ref[...]        # (B*S, D)

    # Precomputed additive masks: rows 0:S -> tgt, rows S:2S -> src.
    tgt_add = masks_ref[0:S, :]          # (S, S)
    src_add = masks_ref[S:2 * S, :]      # (S, S)

    # ---- static slices out of the single weight slab ----
    wqkv1 = w_ref[0:D_MODEL, C_QKV1:C_QKV1 + 3 * D_MODEL]
    wq2 = w_ref[0:D_MODEL, C_Q2:C_Q2 + D_MODEL]
    wkv2 = w_ref[0:D_MODEL, C_KV2:C_KV2 + 2 * D_MODEL]
    wo1 = w_ref[0:D_MODEL, C_O1:C_O1 + D_MODEL]
    wo2 = w_ref[0:D_MODEL, C_O2:C_O2 + D_MODEL]
    w1 = w_ref[0:D_MODEL, C_W1:C_W1 + D_FF]
    w2 = w_ref[0:D_FF, C_W2:C_W2 + D_MODEL]

    # ---- static slices out of the bias / LayerNorm row slab ----
    bqkv1 = vec_ref[R_BQKV1:R_BQKV1 + 1, 0:3 * D_MODEL]
    bkv2 = vec_ref[R_BKV2:R_BKV2 + 1, 0:2 * D_MODEL]
    b1 = vec_ref[R_B1:R_B1 + 1, 0:D_FF]
    bq2 = vec_ref[R_BQ2:R_BQ2 + 1, 0:D_MODEL]
    bo1 = vec_ref[R_BO1:R_BO1 + 1, 0:D_MODEL]
    bo2 = vec_ref[R_BO2:R_BO2 + 1, 0:D_MODEL]
    b2 = vec_ref[R_B2:R_B2 + 1, 0:D_MODEL]
    g1, be1 = vec_ref[R_G1:R_G1 + 1, 0:D_MODEL], vec_ref[R_BE1:R_BE1 + 1, 0:D_MODEL]
    g2, be2 = vec_ref[R_G2:R_G2 + 1, 0:D_MODEL], vec_ref[R_BE2:R_BE2 + 1, 0:D_MODEL]
    g3, be3 = vec_ref[R_G3:R_G3 + 1, 0:D_MODEL], vec_ref[R_BE3:R_BE3 + 1, 0:D_MODEL]

    def layer_norm(v, g, b):
        mu = jnp.mean(v, axis=-1, keepdims=True)
        var = jnp.mean((v - mu) ** 2, axis=-1, keepdims=True)
        return (v - mu) * lax.rsqrt(var + EPS) * g + b

    def attention(q, k, v, mask_add):
        # q, k, v: (B*S, D) with 1/sqrt(d_k) already folded into q.
        # Batch dimension B is fused into one batched dot_general per head;
        # per-head contexts are assembled by value (no VMEM scratch stores).
        qb = q.reshape(B, S, D_MODEL)
        kb = k.reshape(B, S, D_MODEL)
        vb = v.reshape(B, S, D_MODEL)
        mask_b = jnp.broadcast_to(mask_add, (B, S, S))   # hoisted broadcast
        heads = []
        for h in range(NUM_HEADS):
            cs = h * D_K
            qh = qb[:, :, cs:cs + D_K]                   # (B, S, d_k)
            kh = kb[:, :, cs:cs + D_K]
            vh = vb[:, :, cs:cs + D_K]
            # scores[b, i, j] = sum_d qh[b, i, d] * kh[b, j, d]
            s = lax.dot_general(qh, kh, (((2,), (2,)), ((0,), (0,))),
                                preferred_element_type=f32) + mask_b
            m = jnp.max(s, axis=-1, keepdims=True)
            p = jnp.exp(s - m)
            p = p * pl.reciprocal(jnp.sum(p, axis=-1, keepdims=True), approx=True)
            ctx_h = lax.dot_general(p, vh, (((2,), (1,)), ((0,), (0,))),
                                    preferred_element_type=f32)   # (B, S, d_k)
            heads.append(ctx_h)
        ctx = jnp.concatenate(heads, axis=-1)            # (B, S, D), head-major lanes
        return ctx.reshape(BS, D_MODEL)

    # 1) masked self-attention (single fused QKV matmul) + residual + norm1
    qkv = jnp.dot(x, wqkv1, preferred_element_type=f32) + bqkv1
    q1 = qkv[:, 0:D_MODEL]
    k1 = qkv[:, D_MODEL:2 * D_MODEL]
    v1 = qkv[:, 2 * D_MODEL:3 * D_MODEL]
    ctx1 = attention(q1, k1, v1, tgt_add)
    attn1 = jnp.dot(ctx1, wo1, preferred_element_type=f32) + bo1
    h1 = layer_norm(x + attn1, g1, be1)

    # 2) cross-attention (Q from h1, fused K/V from encoder output) + residual + norm2
    q2 = jnp.dot(h1, wq2, preferred_element_type=f32) + bq2
    kv2 = jnp.dot(enc, wkv2, preferred_element_type=f32) + bkv2
    k2 = kv2[:, 0:D_MODEL]
    v2 = kv2[:, D_MODEL:2 * D_MODEL]
    ctx2 = attention(q2, k2, v2, src_add)
    attn2 = jnp.dot(ctx2, wo2, preferred_element_type=f32) + bo2
    h2 = layer_norm(h1 + attn2, g2, be2)

    # 3) position-wise FFN + residual + norm3 (dropout = identity)
    hidden = jnp.maximum(jnp.dot(h2, w1, preferred_element_type=f32) + b1, 0.0)
    ff = jnp.dot(hidden, w2, preferred_element_type=f32) + b2
    out_ref[...] = layer_norm(h2 + ff, g3, be3)


# ------------------------------ parameter packing ------------------------------
def pack_params(p):
    """Pack the 26 per-module tensors into two slabs (done once at init)."""
    f32 = jnp.float32
    scale = 1.0 / math.sqrt(D_K)

    # Weight slab: rows 0:D_MODEL hold all d_model-leading weights side by side,
    # rows 0:D_FF of the C_W2 block hold the FFN fc2 weight.  Lane-padded to 384.
    top = jnp.concatenate(
        [p["wq1"] * scale, p["wk1"], p["wv1"],   # fused self-attn QKV (Q pre-scaled)
         p["wq2"] * scale,                        # cross-attn Q (pre-scaled)
         p["wk2"], p["wv2"],                      # fused cross-attn KV
         p["wo1"], p["wo2"],                      # output projections
         p["w1"]], axis=1).astype(f32)            # FFN fc1
    wslab = jnp.zeros((SLAB_ROWS, SLAB_COLS), f32)
    wslab = wslab.at[0:D_MODEL, 0:top.shape[1]].set(top)
    wslab = wslab.at[0:D_FF, C_W2:C_W2 + D_MODEL].set(p["w2"].astype(f32))

    # Bias / LayerNorm row slab: one vector per row, data in the leading lanes.
    rows = [
        jnp.concatenate([p["bq1"] * scale, p["bk1"], p["bv1"]], axis=1),  # R_BQKV1
        jnp.concatenate([p["bk2"], p["bv2"]], axis=1),                    # R_BKV2
        p["b1"],                                                          # R_B1
        p["bq2"] * scale,                                                 # R_BQ2
        p["bo1"], p["bo2"], p["b2"],                                      # R_BO1..R_B2
        p["g1"], p["be1"], p["g2"], p["be2"], p["g3"], p["be3"],          # R_G1..R_BE3
    ]
    vecs = jnp.zeros((VEC_ROWS, VEC_COLS), f32)
    for r, v in enumerate(rows):
        vecs = vecs.at[r, 0:v.shape[1]].set(v[0].astype(f32))

    return dict(wslab=wslab, vecs=vecs)


# --------------------------------- wrapper ------------------------------------
def decoder_layer(x, enc_output, src_mask, tgt_mask, packed):
    """x, enc_output: (B, S, D) f32. masks: (S, S) f32 (0.0 = masked)."""
    x_flat = x.reshape(BS, D_MODEL)
    enc_flat = enc_output.reshape(BS, D_MODEL)

    # Additive masks computed once in the wrapper (keeps arbitrary-mask semantics
    # of the module while removing the in-kernel compare/select).
    masks_add = jnp.concatenate(
        [jnp.where(tgt_mask == 0.0, -1e9, 0.0),
         jnp.where(src_mask == 0.0, -1e9, 0.0)], axis=0).astype(jnp.float32)  # (2S, S)

    # Single kernel invocation: no grid, every operand resident in VMEM once.
    out_flat = pl.pallas_call(
        decoder_layer_kernel,
        out_shape=jax.ShapeDtypeStruct((BS, D_MODEL), jnp.float32),
    )(x_flat, enc_flat, masks_add, packed["wslab"], packed["vecs"])
    return out_flat.reshape(B, S, D_MODEL)


# ------------------------- pure-JAX reference (for check) ---------------------
def reference(x, enc, src_mask, tgt_mask, p):
    def linear(v, w, b):
        return v @ w + b

    def ln(v, g, b):
        mu = v.mean(-1, keepdims=True)
        var = ((v - mu) ** 2).mean(-1, keepdims=True)
        return (v - mu) / jnp.sqrt(var + EPS) * g + b

    def mha(q_in, kv_in, wq, bq, wk, bk, wv, bv, wo, bo, mask):
        Q = linear(q_in, wq, bq).reshape(B, S, NUM_HEADS, D_K).transpose(0, 2, 1, 3)
        K = linear(kv_in, wk, bk).reshape(B, S, NUM_HEADS, D_K).transpose(0, 2, 1, 3)
        V = linear(kv_in, wv, bv).reshape(B, S, NUM_HEADS, D_K).transpose(0, 2, 1, 3)
        scores = jnp.einsum("bhqd,bhkd->bhqk", Q, K) / math.sqrt(D_K)
        scores = jnp.where(mask[None, None] == 0.0, -1e9, scores)
        probs = jax.nn.softmax(scores, axis=-1)
        out = jnp.einsum("bhqk,bhkd->bhqd", probs, V)
        out = out.transpose(0, 2, 1, 3).reshape(B, S, D_MODEL)
        return linear(out, wo, bo)

    a1 = mha(x, x, p["wq1"], p["bq1"], p["wk1"], p["bk1"],
             p["wv1"], p["bv1"], p["wo1"], p["bo1"], tgt_mask)
    h1 = ln(x + a1, p["g1"], p["be1"])
    a2 = mha(h1, enc, p["wq2"], p["bq2"], p["wk2"], p["bk2"],
             p["wv2"], p["bv2"], p["wo2"], p["bo2"], src_mask)
    h2 = ln(h1 + a2, p["g2"], p["be2"])
    ff = linear(jnp.maximum(linear(h2, p["w1"], p["b1"]), 0.0), p["w2"], p["b2"])
    return ln(h2 + ff, p["g3"], p["be3"])


# ----------------------------------- main --------------------------------------
if __name__ == "__main__":
    key = jax.random.PRNGKey(0)
    keys = jax.random.split(key, 32)
    ki = iter(keys)

    def rnd(shape, scale=0.1):
        return (scale * jax.random.normal(next(ki), shape)).astype(jnp.float32)

    params = {
        # self-attention
        "wq1": rnd((D_MODEL, D_MODEL)), "bq1": rnd((1, D_MODEL)),
        "wk1": rnd((D_MODEL, D_MODEL)), "bk1": rnd((1, D_MODEL)),
        "wv1": rnd((D_MODEL, D_MODEL)), "bv1": rnd((1, D_MODEL)),
        "wo1": rnd((D_MODEL, D_MODEL)), "bo1": rnd((1, D_MODEL)),
        # cross-attention
        "wq2": rnd((D_MODEL, D_MODEL)), "bq2": rnd((1, D_MODEL)),
        "wk2": rnd((D_MODEL, D_MODEL)), "bk2": rnd((1, D_MODEL)),
        "wv2": rnd((D_MODEL, D_MODEL)), "bv2": rnd((1, D_MODEL)),
        "wo2": rnd((D_MODEL, D_MODEL)), "bo2": rnd((1, D_MODEL)),
        # feed-forward
        "w1": rnd((D_MODEL, D_FF)), "b1": rnd((1, D_FF)),
        "w2": rnd((D_FF, D_MODEL)), "b2": rnd((1, D_MODEL)),
        # layer norms (gamma=1, beta=0, nn.LayerNorm default init)
        "g1": jnp.ones((1, D_MODEL), jnp.float32), "be1": jnp.zeros((1, D_MODEL), jnp.float32),
        "g2": jnp.ones((1, D_MODEL), jnp.float32), "be2": jnp.zeros((1, D_MODEL), jnp.float32),
        "g3": jnp.ones((1, D_MODEL), jnp.float32), "be3": jnp.zeros((1, D_MODEL), jnp.float32),
    }

    x = rnd((B, S, D_MODEL), scale=1.0)
    enc_output = rnd((B, S, D_MODEL), scale=1.0)
    # tgt_mask: causal lower-triangular; src_mask: all ones (no masking)
    tgt_mask = jnp.tril(jnp.ones((S, S), jnp.float32))
    src_mask = jnp.ones((S, S), jnp.float32)

    packed = pack_params(params)          # done once (init-time parameter transform)

    out = decoder_layer(x, enc_output, src_mask, tgt_mask, packed)
    out = jax.block_until_ready(out)

    ref = reference(x, enc_output, src_mask, tgt_mask, params)
    # rtol/atol loosened vs exact softmax because pl.reciprocal(approx=True) is used.
    np.testing.assert_allclose(np.asarray(out), np.asarray(ref), rtol=2e-3, atol=2e-3)

    # TODO(synk): dropout is implemented as identity (inference semantics); training-mode
    # stochastic dropout would need pltpu.prng_seed/prng_random_bits.
    print("KERNEL_OK")
</pallas_src>

<mosaic_0001>
module attributes {stable_mosaic.version = 11 : i64} {
  func.func @decoder_layer_kernel(%arg0: memref<16x32xf32, #tpu.memory_space<vmem>>, %arg1: memref<16x32xf32, #tpu.memory_space<vmem>>, %arg2: memref<16x8xf32, #tpu.memory_space<vmem>>, %arg3: memref<64x384xf32, #tpu.memory_space<vmem>>, %arg4: memref<16x128xf32, #tpu.memory_space<vmem>>, %arg5: memref<16x32xf32, #tpu.memory_space<vmem>>) attributes {dimension_semantics = [], scalar_prefetch = 0 : i64, scratch_operands = 0 : i64, tpu.core_type = #tpu.core_type<tc>} {
    %c0 = arith.constant 0 : index
    %c0_0 = arith.constant 0 : index
    %0 = vector.load %arg0[%c0, %c0_0] : memref<16x32xf32, #tpu.memory_space<vmem>>, vector<16x32xf32>
    %c0_1 = arith.constant 0 : index
    %c0_2 = arith.constant 0 : index
    %1 = vector.load %arg1[%c0_1, %c0_2] : memref<16x32xf32, #tpu.memory_space<vmem>>, vector<16x32xf32>
    %c0_3 = arith.constant 0 : index
    %c0_4 = arith.constant 0 : index
    %2 = vector.load %arg2[%c0_3, %c0_4] : memref<16x8xf32, #tpu.memory_space<vmem>>, vector<8x8xf32>
    %c8 = arith.constant 8 : index
    %c0_5 = arith.constant 0 : index
    %3 = vector.load %arg2[%c8, %c0_5] : memref<16x8xf32, #tpu.memory_space<vmem>>, vector<8x8xf32>
    %c0_6 = arith.constant 0 : index
    %c0_7 = arith.constant 0 : index
    %4 = vector.load %arg3[%c0_6, %c0_7] : memref<64x384xf32, #tpu.memory_space<vmem>>, vector<32x96xf32>
    %c0_8 = arith.constant 0 : index
    %c96 = arith.constant 96 : index
    %5 = vector.load %arg3[%c0_8, %c96] : memref<64x384xf32, #tpu.memory_space<vmem>>, vector<32x32xf32>
    %c0_9 = arith.constant 0 : index
    %c128 = arith.constant 128 : index
    %6 = vector.load %arg3[%c0_9, %c128] : memref<64x384xf32, #tpu.memory_space<vmem>>, vector<32x64xf32>
    %c0_10 = arith.constant 0 : index
    %c192 = arith.constant 192 : index
    %7 = vector.load %arg3[%c0_10, %c192] : memref<64x384xf32, #tpu.memory_space<vmem>>, vector<32x32xf32>
    %c0_11 = arith.constant 0 : index
    %c224 = arith.constant 224 : index
    %8 = vector.load %arg3[%c0_11, %c224] : memref<64x384xf32, #tpu.memory_space<vmem>>, vector<32x32xf32>
    %c0_12 = arith.constant 0 : index
    %c256 = arith.constant 256 : index
    %9 = vector.load %arg3[%c0_12, %c256] : memref<64x384xf32, #tpu.memory_space<vmem>>, vector<32x64xf32>
    %c0_13 = arith.constant 0 : index
    %c320 = arith.constant 320 : index
    %10 = vector.load %arg3[%c0_13, %c320] : memref<64x384xf32, #tpu.memory_space<vmem>>, vector<64x32xf32>
    %c0_14 = arith.constant 0 : index
    %c0_15 = arith.constant 0 : index
    %11 = vector.load %arg4[%c0_14, %c0_15] : memref<16x128xf32, #tpu.memory_space<vmem>>, vector<1x96xf32>
    %c1 = arith.constant 1 : index
    %c0_16 = arith.constant 0 : index
    %12 = vector.load %arg4[%c1, %c0_16] : memref<16x128xf32, #tpu.memory_space<vmem>>, vector<1x64xf32>
    %c2 = arith.constant 2 : index
    %c0_17 = arith.constant 0 : index
    %13 = vector.load %arg4[%c2, %c0_17] : memref<16x128xf32, #tpu.memory_space<vmem>>, vector<1x64xf32>
    %c3 = arith.constant 3 : index
    %c0_18 = arith.constant 0 : index
    %14 = vector.load %arg4[%c3, %c0_18] : memref<16x128xf32, #tpu.memory_space<vmem>>, vector<1x32xf32>
    %c4 = arith.constant 4 : index
    %c0_19 = arith.constant 0 : index
    %15 = vector.load %arg4[%c4, %c0_19] : memref<16x128xf32, #tpu.memory_space<vmem>>, vector<1x32xf32>
    %c5 = arith.constant 5 : index
    %c0_20 = arith.constant 0 : index
    %16 = vector.load %arg4[%c5, %c0_20] : memref<16x128xf32, #tpu.memory_space<vmem>>, vector<1x32xf32>
    %c6 = arith.constant 6 : index
    %c0_21 = arith.constant 0 : index
    %17 = vector.load %arg4[%c6, %c0_21] : memref<16x128xf32, #tpu.memory_space<vmem>>, vector<1x32xf32>
    %c7 = arith.constant 7 : index
    %c0_22 = arith.constant 0 : index
    %18 = vector.load %arg4[%c7, %c0_22] : memref<16x128xf32, #tpu.memory_space<vmem>>, vector<1x32xf32>
    %c8_23 = arith.constant 8 : index
    %c0_24 = arith.constant 0 : index
    %19 = vector.load %arg4[%c8_23, %c0_24] : memref<16x128xf32, #tpu.memory_space<vmem>>, vector<1x32xf32>
    %c9 = arith.constant 9 : index
    %c0_25 = arith.constant 0 : index
    %20 = vector.load %arg4[%c9, %c0_25] : memref<16x128xf32, #tpu.memory_space<vmem>>, vector<1x32xf32>
    %c10 = arith.constant 10 : index
    %c0_26 = arith.constant 0 : index
    %21 = vector.load %arg4[%c10, %c0_26] : memref<16x128xf32, #tpu.memory_space<vmem>>, vector<1x32xf32>
    %c11 = arith.constant 11 : index
    %c0_27 = arith.constant 0 : index
    %22 = vector.load %arg4[%c11, %c0_27] : memref<16x128xf32, #tpu.memory_space<vmem>>, vector<1x32xf32>
    %c12 = arith.constant 12 : index
    %c0_28 = arith.constant 0 : index
    %23 = vector.load %arg4[%c12, %c0_28] : memref<16x128xf32, #tpu.memory_space<vmem>>, vector<1x32xf32>
    %cst = arith.constant dense<0.000000e+00> : vector<16x96xf32>
    %24 = tpu.matmul %0, %4, %cst {dimension_numbers = #tpu.dot_dimension_numbers<[1], [0], [0], [1], [0, 0, 1, 1], [], []>} : vector<16x32xf32>, vector<32x96xf32>, vector<16x96xf32> -> vector<16x96xf32>
    %25 = vector.broadcast %11 : vector<1x96xf32> to vector<16x96xf32>
    %26 = arith.addf %24, %25 : vector<16x96xf32>
    %27 = vector.extract_strided_slice %26 {offsets = [0, 0], sizes = [16, 32], strides = [1, 1]} : vector<16x96xf32> to vector<16x32xf32>
    %28 = vector.extract_strided_slice %26 {offsets = [0, 32], sizes = [16, 32], strides = [1, 1]} : vector<16x96xf32> to vector<16x32xf32>
    %29 = vector.extract_strided_slice %26 {offsets = [0, 64], sizes = [16, 32], strides = [1, 1]} : vector<16x96xf32> to vector<16x32xf32>
    %30 = vector.shape_cast %27 : vector<16x32xf32> to vector<2x8x32xf32>
    %31 = vector.shape_cast %28 : vector<16x32xf32> to vector<2x8x32xf32>
    %32 = vector.shape_cast %29 : vector<16x32xf32> to vector<2x8x32xf32>
    %33 = vector.shape_cast %2 : vector<8x8xf32> to vector<1x8x8xf32>
    %34 = vector.broadcast %33 : vector<1x8x8xf32> to vector<2x8x8xf32>
    %35 = vector.extract_strided_slice %30 {offsets = [0, 0, 0], sizes = [2, 8, 8], strides = [1, 1, 1]} : vector<2x8x32xf32> to vector<2x8x8xf32>
    %36 = vector.extract_strided_slice %31 {offsets = [0, 0, 0], sizes = [2, 8, 8], strides = [1, 1, 1]} : vector<2x8x32xf32> to vector<2x8x8xf32>
    %37 = vector.extract_strided_slice %32 {offsets = [0, 0, 0], sizes = [2, 8, 8], strides = [1, 1, 1]} : vector<2x8x32xf32> to vector<2x8x8xf32>
    %cst_29 = arith.constant dense<0.000000e+00> : vector<2x8x8xf32>
    %38 = tpu.matmul %35, %36, %cst_29 {dimension_numbers = #tpu.dot_dimension_numbers<[2], [2], [1], [1], [0, 0, 0, 1, 1, 1], [0], [0]>} : vector<2x8x8xf32>, vector<2x8x8xf32>, vector<2x8x8xf32> -> vector<2x8x8xf32>
    %39 = arith.addf %38, %34 : vector<2x8x8xf32>
    %cst_30 = arith.constant dense<0xFF800000> : vector<2x8xf32>
    %40 = vector.multi_reduction <maximumf>, %39, %cst_30 [2] : vector<2x8x8xf32> to vector<2x8xf32>
    %41 = vector.shape_cast %40 : vector<2x8xf32> to vector<2x8x1xf32>
    %42 = vector.broadcast %41 : vector<2x8x1xf32> to vector<2x8x8xf32>
    %43 = arith.subf %39, %42 : vector<2x8x8xf32>
    %44 = math.exp %43 : vector<2x8x8xf32>
    %cst_31 = arith.constant dense<0.000000e+00> : vector<2x8xf32>
    %45 = vector.multi_reduction <add>, %44, %cst_31 [2] : vector<2x8x8xf32> to vector<2x8xf32>
    %46 = vector.shape_cast %45 : vector<2x8xf32> to vector<2x8x1xf32>
    %47 = tpu.reciprocal %46 {approx = true} : vector<2x8x1xf32> -> vector<2x8x1xf32>
    %48 = vector.broadcast %47 : vector<2x8x1xf32> to vector<2x8x8xf32>
    %49 = arith.mulf %44, %48 : vector<2x8x8xf32>
    %cst_32 = arith.constant dense<0.000000e+00> : vector<2x8x8xf32>
    %50 = tpu.matmul %49, %37, %cst_32 {dimension_numbers = #tpu.dot_dimension_numbers<[2], [1], [1], [2], [0, 0, 0, 1, 1, 2], [0], [0]>} : vector<2x8x8xf32>, vector<2x8x8xf32>, vector<2x8x8xf32> -> vector<2x8x8xf32>
    %51 = vector.extract_strided_slice %30 {offsets = [0, 0, 8], sizes = [2, 8, 8], strides = [1, 1, 1]} : vector<2x8x32xf32> to vector<2x8x8xf32>
    %52 = vector.extract_strided_slice %31 {offsets = [0, 0, 8], sizes = [2, 8, 8], strides = [1, 1, 1]} : vector<2x8x32xf32> to vector<2x8x8xf32>
    %53 = vector.extract_strided_slice %32 {offsets = [0, 0, 8], sizes = [2, 8, 8], strides = [1, 1, 1]} : vector<2x8x32xf32> to vector<2x8x8xf32>
    %cst_33 = arith.constant dense<0.000000e+00> : vector<2x8x8xf32>
    %54 = tpu.matmul %51, %52, %cst_33 {dimension_numbers = #tpu.dot_dimension_numbers<[2], [2], [1], [1], [0, 0, 0, 1, 1, 1], [0], [0]>} : vector<2x8x8xf32>, vector<2x8x8xf32>, vector<2x8x8xf32> -> vector<2x8x8xf32>
    %55 = arith.addf %54, %34 : vector<2x8x8xf32>
    %cst_34 = arith.constant dense<0xFF800000> : vector<2x8xf32>
    %56 = vector.multi_reduction <maximumf>, %55, %cst_34 [2] : vector<2x8x8xf32> to vector<2x8xf32>
    %57 = vector.shape_cast %56 : vector<2x8xf32> to vector<2x8x1xf32>
    %58 = vector.broadcast %57 : vector<2x8x1xf32> to vector<2x8x8xf32>
    %59 = arith.subf %55, %58 : vector<2x8x8xf32>
    %60 = math.exp %59 : vector<2x8x8xf32>
    %cst_35 = arith.constant dense<0.000000e+00> : vector<2x8xf32>
    %61 = vector.multi_reduction <add>, %60, %cst_35 [2] : vector<2x8x8xf32> to vector<2x8xf32>
    %62 = vector.shape_cast %61 : vector<2x8xf32> to vector<2x8x1xf32>
    %63 = tpu.reciprocal %62 {approx = true} : vector<2x8x1xf32> -> vector<2x8x1xf32>
    %64 = vector.broadcast %63 : vector<2x8x1xf32> to vector<2x8x8xf32>
    %65 = arith.mulf %60, %64 : vector<2x8x8xf32>
    %cst_36 = arith.constant dense<0.000000e+00> : vector<2x8x8xf32>
    %66 = tpu.matmul %65, %53, %cst_36 {dimension_numbers = #tpu.dot_dimension_numbers<[2], [1], [1], [2], [0, 0, 0, 1, 1, 2], [0], [0]>} : vector<2x8x8xf32>, vector<2x8x8xf32>, vector<2x8x8xf32> -> vector<2x8x8xf32>
    %67 = vector.extract_strided_slice %30 {offsets = [0, 0, 16], sizes = [2, 8, 8], strides = [1, 1, 1]} : vector<2x8x32xf32> to vector<2x8x8xf32>
    %68 = vector.extract_strided_slice %31 {offsets = [0, 0, 16], sizes = [2, 8, 8], strides = [1, 1, 1]} : vector<2x8x32xf32> to vector<2x8x8xf32>
    %69 = vector.extract_strided_slice %32 {offsets = [0, 0, 16], sizes = [2, 8, 8], strides = [1, 1, 1]} : vector<2x8x32xf32> to vector<2x8x8xf32>
    %cst_37 = arith.constant dense<0.000000e+00> : vector<2x8x8xf32>
    %70 = tpu.matmul %67, %68, %cst_37 {dimension_numbers = #tpu.dot_dimension_numbers<[2], [2], [1], [1], [0, 0, 0, 1, 1, 1], [0], [0]>} : vector<2x8x8xf32>, vector<2x8x8xf32>, vector<2x8x8xf32> -> vector<2x8x8xf32>
    %71 = arith.addf %70, %34 : vector<2x8x8xf32>
    %cst_38 = arith.constant dense<0xFF800000> : vector<2x8xf32>
    %72 = vector.multi_reduction <maximumf>, %71, %cst_38 [2] : vector<2x8x8xf32> to vector<2x8xf32>
    %73 = vector.shape_cast %72 : vector<2x8xf32> to vector<2x8x1xf32>
    %74 = vector.broadcast %73 : vector<2x8x1xf32> to vector<2x8x8xf32>
    %75 = arith.subf %71, %74 : vector<2x8x8xf32>
    %76 = math.exp %75 : vector<2x8x8xf32>
    %cst_39 = arith.constant dense<0.000000e+00> : vector<2x8xf32>
    %77 = vector.multi_reduction <add>, %76, %cst_39 [2] : vector<2x8x8xf32> to vector<2x8xf32>
    %78 = vector.shape_cast %77 : vector<2x8xf32> to vector<2x8x1xf32>
    %79 = tpu.reciprocal %78 {approx = true} : vector<2x8x1xf32> -> vector<2x8x1xf32>
    %80 = vector.broadcast %79 : vector<2x8x1xf32> to vector<2x8x8xf32>
    %81 = arith.mulf %76, %80 : vector<2x8x8xf32>
    %cst_40 = arith.constant dense<0.000000e+00> : vector<2x8x8xf32>
    %82 = tpu.matmul %81, %69, %cst_40 {dimension_numbers = #tpu.dot_dimension_numbers<[2], [1], [1], [2], [0, 0, 0, 1, 1, 2], [0], [0]>} : vector<2x8x8xf32>, vector<2x8x8xf32>, vector<2x8x8xf32> -> vector<2x8x8xf32>
    %83 = vector.extract_strided_slice %30 {offsets = [0, 0, 24], sizes = [2, 8, 8], strides = [1, 1, 1]} : vector<2x8x32xf32> to vector<2x8x8xf32>
    %84 = vector.extract_strided_slice %31 {offsets = [0, 0, 24], sizes = [2, 8, 8], strides = [1, 1, 1]} : vector<2x8x32xf32> to vector<2x8x8xf32>
    %85 = vector.extract_strided_slice %32 {offsets = [0, 0, 24], sizes = [2, 8, 8], strides = [1, 1, 1]} : vector<2x8x32xf32> to vector<2x8x8xf32>
    %cst_41 = arith.constant dense<0.000000e+00> : vector<2x8x8xf32>
    %86 = tpu.matmul %83, %84, %cst_41 {dimension_numbers = #tpu.dot_dimension_numbers<[2], [2], [1], [1], [0, 0, 0, 1, 1, 1], [0], [0]>} : vector<2x8x8xf32>, vector<2x8x8xf32>, vector<2x8x8xf32> -> vector<2x8x8xf32>
    %87 = arith.addf %86, %34 : vector<2x8x8xf32>
    %cst_42 = arith.constant dense<0xFF800000> : vector<2x8xf32>
    %88 = vector.multi_reduction <maximumf>, %87, %cst_42 [2] : vector<2x8x8xf32> to vector<2x8xf32>
    %89 = vector.shape_cast %88 : vector<2x8xf32> to vector<2x8x1xf32>
    %90 = vector.broadcast %89 : vector<2x8x1xf32> to vector<2x8x8xf32>
    %91 = arith.subf %87, %90 : vector<2x8x8xf32>
    %92 = math.exp %91 : vector<2x8x8xf32>
    %cst_43 = arith.constant dense<0.000000e+00> : vector<2x8xf32>
    %93 = vector.multi_reduction <add>, %92, %cst_43 [2] : vector<2x8x8xf32> to vector<2x8xf32>
    %94 = vector.shape_cast %93 : vector<2x8xf32> to vector<2x8x1xf32>
    %95 = tpu.reciprocal %94 {approx = true} : vector<2x8x1xf32> -> vector<2x8x1xf32>
    %96 = vector.broadcast %95 : vector<2x8x1xf32> to vector<2x8x8xf32>
    %97 = arith.mulf %92, %96 : vector<2x8x8xf32>
    %cst_44 = arith.constant dense<0.000000e+00> : vector<2x8x8xf32>
    %98 = tpu.matmul %97, %85, %cst_44 {dimension_numbers = #tpu.dot_dimension_numbers<[2], [1], [1], [2], [0, 0, 0, 1, 1, 2], [0], [0]>} : vector<2x8x8xf32>, vector<2x8x8xf32>, vector<2x8x8xf32> -> vector<2x8x8xf32>
    %99 = tpu.concatenate %50, %66, %82, %98 in 2 : vector<2x8x8xf32>, vector<2x8x8xf32>, vector<2x8x8xf32>, vector<2x8x8xf32> -> vector<2x8x32xf32>
    %100 = vector.shape_cast %99 : vector<2x8x32xf32> to vector<16x32xf32>
    %cst_45 = arith.constant dense<0.000000e+00> : vector<16x32xf32>
    %101 = tpu.matmul %100, %7, %cst_45 {dimension_numbers = #tpu.dot_dimension_numbers<[1], [0], [0], [1], [0, 0, 1, 1], [], []>} : vector<16x32xf32>, vector<32x32xf32>, vector<16x32xf32> -> vector<16x32xf32>
    %102 = vector.broadcast %15 : vector<1x32xf32> to vector<16x32xf32>
    %103 = arith.addf %101, %102 : vector<16x32xf32>
    %104 = arith.addf %0, %103 : vector<16x32xf32>
    %cst_46 = arith.constant dense<0.000000e+00> : vector<16xf32>
    %105 = vector.multi_reduction <add>, %104, %cst_46 [1] : vector<16x32xf32> to vector<16xf32>
    %106 = vector.shape_cast %105 : vector<16xf32> to vector<16x1xf32>
    %cst_47 = arith.constant 3.200000e+01 : f32
    %107 = vector.broadcast %cst_47 : f32 to vector<16x1xf32>
    %108 = arith.divf %106, %107 : vector<16x1xf32>
    %109 = vector.broadcast %108 : vector<16x1xf32> to vector<16x32xf32>
    %110 = arith.subf %104, %109 : vector<16x32xf32>
    %111 = arith.mulf %110, %110 : vector<16x32xf32>
    %cst_48 = arith.constant dense<0.000000e+00> : vector<16xf32>
    %112 = vector.multi_reduction <add>, %111, %cst_48 [1] : vector<16x32xf32> to vector<16xf32>
    %113 = vector.shape_cast %112 : vector<16xf32> to vector<16x1xf32>
    %cst_49 = arith.constant 3.200000e+01 : f32
    %114 = vector.broadcast %cst_49 : f32 to vector<16x1xf32>
    %115 = arith.divf %113, %114 : vector<16x1xf32>
    %116 = vector.broadcast %108 : vector<16x1xf32> to vector<16x32xf32>
    %117 = arith.subf %104, %116 : vector<16x32xf32>
    %cst_50 = arith.constant 9.99999974E-6 : f32
    %118 = vector.broadcast %cst_50 : f32 to vector<16x1xf32>
    %119 = arith.addf %115, %118 : vector<16x1xf32>
    %120 = math.rsqrt %119 : vector<16x1xf32>
    %121 = vector.broadcast %120 : vector<16x1xf32> to vector<16x32xf32>
    %122 = arith.mulf %117, %121 : vector<16x32xf32>
    %123 = vector.broadcast %18 : vector<1x32xf32> to vector<16x32xf32>
    %124 = arith.mulf %122, %123 : vector<16x32xf32>
    %125 = vector.broadcast %19 : vector<1x32xf32> to vector<16x32xf32>
    %126 = arith.addf %124, %125 : vector<16x32xf32>
    %cst_51 = arith.constant dense<0.000000e+00> : vector<16x32xf32>
    %127 = tpu.matmul %126, %5, %cst_51 {dimension_numbers = #tpu.dot_dimension_numbers<[1], [0], [0], [1], [0, 0, 1, 1], [], []>} : vector<16x32xf32>, vector<32x32xf32>, vector<16x32xf32> -> vector<16x32xf32>
    %128 = vector.broadcast %14 : vector<1x32xf32> to vector<16x32xf32>
    %129 = arith.addf %127, %128 : vector<16x32xf32>
    %cst_52 = arith.constant dense<0.000000e+00> : vector<16x64xf32>
    %130 = tpu.matmul %1, %6, %cst_52 {dimension_numbers = #tpu.dot_dimension_numbers<[1], [0], [0], [1], [0, 0, 1, 1], [], []>} : vector<16x32xf32>, vector<32x64xf32>, vector<16x64xf32> -> vector<16x64xf32>
    %131 = vector.broadcast %12 : vector<1x64xf32> to vector<16x64xf32>
    %132 = arith.addf %130, %131 : vector<16x64xf32>
    %133 = vector.extract_strided_slice %132 {offsets = [0, 0], sizes = [16, 32], strides = [1, 1]} : vector<16x64xf32> to vector<16x32xf32>
    %134 = vector.extract_strided_slice %132 {offsets = [0, 32], sizes = [16, 32], strides = [1, 1]} : vector<16x64xf32> to vector<16x32xf32>
    %135 = vector.shape_cast %129 : vector<16x32xf32> to vector<2x8x32xf32>
    %136 = vector.shape_cast %133 : vector<16x32xf32> to vector<2x8x32xf32>
    %137 = vector.shape_cast %134 : vector<16x32xf32> to vector<2x8x32xf32>
    %138 = vector.shape_cast %3 : vector<8x8xf32> to vector<1x8x8xf32>
    %139 = vector.broadcast %138 : vector<1x8x8xf32> to vector<2x8x8xf32>
    %140 = vector.extract_strided_slice %135 {offsets = [0, 0, 0], sizes = [2, 8, 8], strides = [1, 1, 1]} : vector<2x8x32xf32> to vector<2x8x8xf32>
    %141 = vector.extract_strided_slice %136 {offsets = [0, 0, 0], sizes = [2, 8, 8], strides = [1, 1, 1]} : vector<2x8x32xf32> to vector<2x8x8xf32>
    %142 = vector.extract_strided_slice %137 {offsets = [0, 0, 0], sizes = [2, 8, 8], strides = [1, 1, 1]} : vector<2x8x32xf32> to vector<2x8x8xf32>
    %cst_53 = arith.constant dense<0.000000e+00> : vector<2x8x8xf32>
    %143 = tpu.matmul %140, %141, %cst_53 {dimension_numbers = #tpu.dot_dimension_numbers<[2], [2], [1], [1], [0, 0, 0, 1, 1, 1], [0], [0]>} : vector<2x8x8xf32>, vector<2x8x8xf32>, vector<2x8x8xf32> -> vector<2x8x8xf32>
    %144 = arith.addf %143, %139 : vector<2x8x8xf32>
    %cst_54 = arith.constant dense<0xFF800000> : vector<2x8xf32>
    %145 = vector.multi_reduction <maximumf>, %144, %cst_54 [2] : vector<2x8x8xf32> to vector<2x8xf32>
    %146 = vector.shape_cast %145 : vector<2x8xf32> to vector<2x8x1xf32>
    %147 = vector.broadcast %146 : vector<2x8x1xf32> to vector<2x8x8xf32>
    %148 = arith.subf %144, %147 : vector<2x8x8xf32>
    %149 = math.exp %148 : vector<2x8x8xf32>
    %cst_55 = arith.constant dense<0.000000e+00> : vector<2x8xf32>
    %150 = vector.multi_reduction <add>, %149, %cst_55 [2] : vector<2x8x8xf32> to vector<2x8xf32>
    %151 = vector.shape_cast %150 : vector<2x8xf32> to vector<2x8x1xf32>
    %152 = tpu.reciprocal %151 {approx = true} : vector<2x8x1xf32> -> vector<2x8x1xf32>
    %153 = vector.broadcast %152 : vector<2x8x1xf32> to vector<2x8x8xf32>
    %154 = arith.mulf %149, %153 : vector<2x8x8xf32>
    %cst_56 = arith.constant dense<0.000000e+00> : vector<2x8x8xf32>
    %155 = tpu.matmul %154, %142, %cst_56 {dimension_numbers = #tpu.dot_dimension_numbers<[2], [1], [1], [2], [0, 0, 0, 1, 1, 2], [0], [0]>} : vector<2x8x8xf32>, vector<2x8x8xf32>, vector<2x8x8xf32> -> vector<2x8x8xf32>
    %156 = vector.extract_strided_slice %135 {offsets = [0, 0, 8], sizes = [2, 8, 8], strides = [1, 1, 1]} : vector<2x8x32xf32> to vector<2x8x8xf32>
    %157 = vector.extract_strided_slice %136 {offsets = [0, 0, 8], sizes = [2, 8, 8], strides = [1, 1, 1]} : vector<2x8x32xf32> to vector<2x8x8xf32>
    %158 = vector.extract_strided_slice %137 {offsets = [0, 0, 8], sizes = [2, 8, 8], strides = [1, 1, 1]} : vector<2x8x32xf32> to vector<2x8x8xf32>
    %cst_57 = arith.constant dense<0.000000e+00> : vector<2x8x8xf32>
    %159 = tpu.matmul %156, %157, %cst_57 {dimension_numbers = #tpu.dot_dimension_numbers<[2], [2], [1], [1], [0, 0, 0, 1, 1, 1], [0], [0]>} : vector<2x8x8xf32>, vector<2x8x8xf32>, vector<2x8x8xf32> -> vector<2x8x8xf32>
    %160 = arith.addf %159, %139 : vector<2x8x8xf32>
    %cst_58 = arith.constant dense<0xFF800000> : vector<2x8xf32>
    %161 = vector.multi_reduction <maximumf>, %160, %cst_58 [2] : vector<2x8x8xf32> to vector<2x8xf32>
    %162 = vector.shape_cast %161 : vector<2x8xf32> to vector<2x8x1xf32>
    %163 = vector.broadcast %162 : vector<2x8x1xf32> to vector<2x8x8xf32>
    %164 = arith.subf %160, %163 : vector<2x8x8xf32>
    %165 = math.exp %164 : vector<2x8x8xf32>
    %cst_59 = arith.constant dense<0.000000e+00> : vector<2x8xf32>
    %166 = vector.multi_reduction <add>, %165, %cst_59 [2] : vector<2x8x8xf32> to vector<2x8xf32>
    %167 = vector.shape_cast %166 : vector<2x8xf32> to vector<2x8x1xf32>
    %168 = tpu.reciprocal %167 {approx = true} : vector<2x8x1xf32> -> vector<2x8x1xf32>
    %169 = vector.broadcast %168 : vector<2x8x1xf32> to vector<2x8x8xf32>
    %170 = arith.mulf %165, %169 : vector<2x8x8xf32>
    %cst_60 = arith.constant dense<0.000000e+00> : vector<2x8x8xf32>
    %171 = tpu.matmul %170, %158, %cst_60 {dimension_numbers = #tpu.dot_dimension_numbers<[2], [1], [1], [2], [0, 0, 0, 1, 1, 2], [0], [0]>} : vector<2x8x8xf32>, vector<2x8x8xf32>, vector<2x8x8xf32> -> vector<2x8x8xf32>
    %172 = vector.extract_strided_slice %135 {offsets = [0, 0, 16], sizes = [2, 8, 8], strides = [1, 1, 1]} : vector<2x8x32xf32> to vector<2x8x8xf32>
    %173 = vector.extract_strided_slice %136 {offsets = [0, 0, 16], sizes = [2, 8, 8], strides = [1, 1, 1]} : vector<2x8x32xf32> to vector<2x8x8xf32>
    %174 = vector.extract_strided_slice %137 {offsets = [0, 0, 16], sizes = [2, 8, 8], strides = [1, 1, 1]} : vector<2x8x32xf32> to vector<2x8x8xf32>
    %cst_61 = arith.constant dense<0.000000e+00> : vector<2x8x8xf32>
    %175 = tpu.matmul %172, %173, %cst_61 {dimension_numbers = #tpu.dot_dimension_numbers<[2], [2], [1], [1], [0, 0, 0, 1, 1, 1], [0], [0]>} : vector<2x8x8xf32>, vector<2x8x8xf32>, vector<2x8x8xf32> -> vector<2x8x8xf32>
    %176 = arith.addf %175, %139 : vector<2x8x8xf32>
    %cst_62 = arith.constant dense<0xFF800000> : vector<2x8xf32>
    %177 = vector.multi_reduction <maximumf>, %176, %cst_62 [2] : vector<2x8x8xf32> to vector<2x8xf32>
    %178 = vector.shape_cast %177 : vector<2x8xf32> to vector<2x8x1xf32>
    %179 = vector.broadcast %178 : vector<2x8x1xf32> to vector<2x8x8xf32>
    %180 = arith.subf %176, %179 : vector<2x8x8xf32>
    %181 = math.exp %180 : vector<2x8x8xf32>
    %cst_63 = arith.constant dense<0.000000e+00> : vector<2x8xf32>
    %182 = vector.multi_reduction <add>, %181, %cst_63 [2] : vector<2x8x8xf32> to vector<2x8xf32>
    %183 = vector.shape_cast %182 : vector<2x8xf32> to vector<2x8x1xf32>
    %184 = tpu.reciprocal %183 {approx = true} : vector<2x8x1xf32> -> vector<2x8x1xf32>
    %185 = vector.broadcast %184 : vector<2x8x1xf32> to vector<2x8x8xf32>
    %186 = arith.mulf %181, %185 : vector<2x8x8xf32>
    %cst_64 = arith.constant dense<0.000000e+00> : vector<2x8x8xf32>
    %187 = tpu.matmul %186, %174, %cst_64 {dimension_numbers = #tpu.dot_dimension_numbers<[2], [1], [1], [2], [0, 0, 0, 1, 1, 2], [0], [0]>} : vector<2x8x8xf32>, vector<2x8x8xf32>, vector<2x8x8xf32> -> vector<2x8x8xf32>
    %188 = vector.extract_strided_slice %135 {offsets = [0, 0, 24], sizes = [2, 8, 8], strides = [1, 1, 1]} : vector<2x8x32xf32> to vector<2x8x8xf32>
    %189 = vector.extract_strided_slice %136 {offsets = [0, 0, 24], sizes = [2, 8, 8], strides = [1, 1, 1]} : vector<2x8x32xf32> to vector<2x8x8xf32>
    %190 = vector.extract_strided_slice %137 {offsets = [0, 0, 24], sizes = [2, 8, 8], strides = [1, 1, 1]} : vector<2x8x32xf32> to vector<2x8x8xf32>
    %cst_65 = arith.constant dense<0.000000e+00> : vector<2x8x8xf32>
    %191 = tpu.matmul %188, %189, %cst_65 {dimension_numbers = #tpu.dot_dimension_numbers<[2], [2], [1], [1], [0, 0, 0, 1, 1, 1], [0], [0]>} : vector<2x8x8xf32>, vector<2x8x8xf32>, vector<2x8x8xf32> -> vector<2x8x8xf32>
    %192 = arith.addf %191, %139 : vector<2x8x8xf32>
    %cst_66 = arith.constant dense<0xFF800000> : vector<2x8xf32>
    %193 = vector.multi_reduction <maximumf>, %192, %cst_66 [2] : vector<2x8x8xf32> to vector<2x8xf32>
    %194 = vector.shape_cast %193 : vector<2x8xf32> to vector<2x8x1xf32>
    %195 = vector.broadcast %194 : vector<2x8x1xf32> to vector<2x8x8xf32>
    %196 = arith.subf %192, %195 : vector<2x8x8xf32>
    %197 = math.exp %196 : vector<2x8x8xf32>
    %cst_67 = arith.constant dense<0.000000e+00> : vector<2x8xf32>
    %198 = vector.multi_reduction <add>, %197, %cst_67 [2] : vector<2x8x8xf32> to vector<2x8xf32>
    %199 = vector.shape_cast %198 : vector<2x8xf32> to vector<2x8x1xf32>
    %200 = tpu.reciprocal %199 {approx = true} : vector<2x8x1xf32> -> vector<2x8x1xf32>
    %201 = vector.broadcast %200 : vector<2x8x1xf32> to vector<2x8x8xf32>
    %202 = arith.mulf %197, %201 : vector<2x8x8xf32>
    %cst_68 = arith.constant dense<0.000000e+00> : vector<2x8x8xf32>
    %203 = tpu.matmul %202, %190, %cst_68 {dimension_numbers = #tpu.dot_dimension_numbers<[2], [1], [1], [2], [0, 0, 0, 1, 1, 2], [0], [0]>} : vector<2x8x8xf32>, vector<2x8x8xf32>, vector<2x8x8xf32> -> vector<2x8x8xf32>
    %204 = tpu.concatenate %155, %171, %187, %203 in 2 : vector<2x8x8xf32>, vector<2x8x8xf32>, vector<2x8x8xf32>, vector<2x8x8xf32> -> vector<2x8x32xf32>
    %205 = vector.shape_cast %204 : vector<2x8x32xf32> to vector<16x32xf32>
    %cst_69 = arith.constant dense<0.000000e+00> : vector<16x32xf32>
    %206 = tpu.matmul %205, %8, %cst_69 {dimension_numbers = #tpu.dot_dimension_numbers<[1], [0], [0], [1], [0, 0, 1, 1], [], []>} : vector<16x32xf32>, vector<32x32xf32>, vector<16x32xf32> -> vector<16x32xf32>
    %207 = vector.broadcast %16 : vector<1x32xf32> to vector<16x32xf32>
    %208 = arith.addf %206, %207 : vector<16x32xf32>
    %209 = arith.addf %126, %208 : vector<16x32xf32>
    %cst_70 = arith.constant dense<0.000000e+00> : vector<16xf32>
    %210 = vector.multi_reduction <add>, %209, %cst_70 [1] : vector<16x32xf32> to vector<16xf32>
    %211 = vector.shape_cast %210 : vector<16xf32> to vector<16x1xf32>
    %cst_71 = arith.constant 3.200000e+01 : f32
    %212 = vector.broadcast %cst_71 : f32 to vector<16x1xf32>
    %213 = arith.divf %211, %212 : vector<16x1xf32>
    %214 = vector.broadcast %213 : vector<16x1xf32> to vector<16x32xf32>
    %215 = arith.subf %209, %214 : vector<16x32xf32>
    %216 = arith.mulf %215, %215 : vector<16x32xf32>
    %cst_72 = arith.constant dense<0.000000e+00> : vector<16xf32>
    %217 = vector.multi_reduction <add>, %216, %cst_72 [1] : vector<16x32xf32> to vector<16xf32>
    %218 = vector.shape_cast %217 : vector<16xf32> to vector<16x1xf32>
    %cst_73 = arith.constant 3.200000e+01 : f32
    %219 = vector.broadcast %cst_73 : f32 to vector<16x1xf32>
    %220 = arith.divf %218, %219 : vector<16x1xf32>
    %221 = vector.broadcast %213 : vector<16x1xf32> to vector<16x32xf32>
    %222 = arith.subf %209, %221 : vector<16x32xf32>
    %cst_74 = arith.constant 9.99999974E-6 : f32
    %223 = vector.broadcast %cst_74 : f32 to vector<16x1xf32>
    %224 = arith.addf %220, %223 : vector<16x1xf32>
    %225 = math.rsqrt %224 : vector<16x1xf32>
    %226 = vector.broadcast %225 : vector<16x1xf32> to vector<16x32xf32>
    %227 = arith.mulf %222, %226 : vector<16x32xf32>
    %228 = vector.broadcast %20 : vector<1x32xf32> to vector<16x32xf32>
    %229 = arith.mulf %227, %228 : vector<16x32xf32>
    %230 = vector.broadcast %21 : vector<1x32xf32> to vector<16x32xf32>
    %231 = arith.addf %229, %230 : vector<16x32xf32>
    %cst_75 = arith.constant dense<0.000000e+00> : vector<16x64xf32>
    %232 = tpu.matmul %231, %9, %cst_75 {dimension_numbers = #tpu.dot_dimension_numbers<[1], [0], [0], [1], [0, 0, 1, 1], [], []>} : vector<16x32xf32>, vector<32x64xf32>, vector<16x64xf32> -> vector<16x64xf32>
    %233 = vector.broadcast %13 : vector<1x64xf32> to vector<16x64xf32>
    %234 = arith.addf %232, %233 : vector<16x64xf32>
    %cst_76 = arith.constant 0.000000e+00 : f32
    %235 = vector.broadcast %cst_76 : f32 to vector<16x64xf32>
    %236 = arith.maximumf %234, %235 : vector<16x64xf32>
    %cst_77 = arith.constant dense<0.000000e+00> : vector<16x32xf32>
    %237 = tpu.matmul %236, %10, %cst_77 {dimension_numbers = #tpu.dot_dimension_numbers<[1], [0], [0], [1], [0, 0, 1, 1], [], []>} : vector<16x64xf32>, vector<64x32xf32>, vector<16x32xf32> -> vector<16x32xf32>
    %238 = vector.broadcast %17 : vector<1x32xf32> to vector<16x32xf32>
    %239 = arith.addf %237, %238 : vector<16x32xf32>
    %240 = arith.addf %231, %239 : vector<16x32xf32>
    %cst_78 = arith.constant dense<0.000000e+00> : vector<16xf32>
    %241 = vector.multi_reduction <add>, %240, %cst_78 [1] : vector<16x32xf32> to vector<16xf32>
    %242 = vector.shape_cast %241 : vector<16xf32> to vector<16x1xf32>
    %cst_79 = arith.constant 3.200000e+01 : f32
    %243 = vector.broadcast %cst_79 : f32 to vector<16x1xf32>
    %244 = arith.divf %242, %243 : vector<16x1xf32>
    %245 = vector.broadcast %244 : vector<16x1xf32> to vector<16x32xf32>
    %246 = arith.subf %240, %245 : vector<16x32xf32>
    %247 = arith.mulf %246, %246 : vector<16x32xf32>
    %cst_80 = arith.constant dense<0.000000e+00> : vector<16xf32>
    %248 = vector.multi_reduction <add>, %247, %cst_80 [1] : vector<16x32xf32> to vector<16xf32>
    %249 = vector.shape_cast %248 : vector<16xf32> to vector<16x1xf32>
    %cst_81 = arith.constant 3.200000e+01 : f32
    %250 = vector.broadcast %cst_81 : f32 to vector<16x1xf32>
    %251 = arith.divf %249, %250 : vector<16x1xf32>
    %252 = vector.broadcast %244 : vector<16x1xf32> to vector<16x32xf32>
    %253 = arith.subf %240, %252 : vector<16x32xf32>
    %cst_82 = arith.constant 9.99999974E-6 : f32
    %254 = vector.broadcast %cst_82 : f32 to vector<16x1xf32>
    %255 = arith.addf %251, %254 : vector<16x1xf32>
    %256 = math.rsqrt %255 : vector<16x1xf32>
    %257 = vector.broadcast %256 : vector<16x1xf32> to vector<16x32xf32>
    %258 = arith.mulf %253, %257 : vector<16x32xf32>
    %259 = vector.broadcast %22 : vector<1x32xf32> to vector<16x32xf32>
    %260 = arith.mulf %258, %259 : vector<16x32xf32>
    %261 = vector.broadcast %23 : vector<1x32xf32> to vector<16x32xf32>
    %262 = arith.addf %260, %261 : vector<16x32xf32>
    %c0_83 = arith.constant 0 : index
    %c0_84 = arith.constant 0 : index
    %263 = vector.load %arg5[%c0_83, %c0_84] : memref<16x32xf32, #tpu.memory_space<vmem>>, vector<16x32xf32>
    tpu.vector_store %arg5[%c0_83, %c0_84], %262 {strides = array<i32>} : memref<16x32xf32, #tpu.memory_space<vmem>>, vector<16x32xf32>,
    return
  }
}

</mosaic_0001>

<llo_original>
// kernel: tpu_custom_call.1
$region0: #{tpu_custom_call.1}
  #allocation0 [shape = 'u32[]', space=smem, size = 0x4, offset = 0x4, fixed_abs, tag = 'smem constant byte address 0x4 - core index']
  #allocation1 [shape = 'u32[144,128]{1,0:T(1,128)}', space=vmem, size = 0x12000, scoped, tag = 'internal scratch']
  %s0 = inlined_call_operand.vmem [shape: f32[16,32], index: 0, kind: input, shape index: {}]
  %s1 = inlined_call_operand.hbm [shape: f32[16,32], index: 1, kind: input, shape index: {}]
  %s2 = inlined_call_operand.vmem [shape: f32[16,8], index: 2, kind: input, shape index: {}]
  %s3 = inlined_call_operand.hbm [shape: f32[64,384], index: 3, kind: input, shape index: {}]
  %s4 = inlined_call_operand.vmem [shape: f32[16,128], index: 4, kind: input, shape index: {}]
  %s5 = inlined_call_operand.hbm [shape: f32[16,32], index: 5, kind: output, shape index: {}]
  %s6 = sld [smem:[#allocation0]]
  $region38: #{tpu_custom_call.1} parent=0
    _
  %s8 = ssub.s32 1, %s6
  %s9 = scalar_select 0, %s8, %s6
  $region1: #{tpu_custom_call.1} parent=0
    #allocation2 [shape = 'u8[8192]{0}', space=vmem, size = 0x2000, scoped, tag = 'input window, operand 1, single buffered']
    #allocation3 [shape = 's32[1]{0}', space=sflag, size = 0x4, scoped, tag = 'scoped memory for tpu_custom_call.1']
    #allocation4 [shape = 's32[1]{0}', space=sflag, size = 0x4, scoped, tag = 'scoped memory for tpu_custom_call.1']
    #allocation5 [shape = 'u8[98304]{0}', space=vmem, size = 0x18000, scoped, tag = 'input window, operand 3, single buffered']
    #allocation6 [shape = 's32[1]{0}', space=sflag, size = 0x4, scoped, tag = 'scoped memory for tpu_custom_call.1']
    #allocation7 [shape = 'u8[8192]{0}', space=vmem, size = 0x2000, scoped, tag = 'output window, operand 0, single buffered']
    %10 = vsyncpa [#allocation3], 0
    %11 = vsyncpa [#allocation6], 0
    %12 = vsyncpa [#allocation4], 0
    // Predicated region
    $region2: #{tpu_custom_call.1} parent=1 // pred_check
      _
    $region3: #{tpu_custom_call.1} parent=1 // pred_check_branch
      %14 = sbr.rel (0) target = $region5
    $region4: #{tpu_custom_call.1} parent=1 // pred_region
      _
    $region5: #{tpu_custom_call.1} parent=1 // pred_fallthru
      _
    // Predicated region
    $region6: #{tpu_custom_call.1} parent=1 // pred_check
      _
    $region7: #{tpu_custom_call.1} parent=1 // pred_check_branch
      %16 = sbr.rel (0) target = $region9
    $region8: #{tpu_custom_call.1} parent=1 // pred_region
      %s18 = ssub.s32 256, 256
      %19 = vsyncadd [#allocation3], %s18
      %s20 = sshll.u32 [#allocation2], 4
      %s21 = int_to_ptr.vmem [resolvable:$true] %s20
      %26 = dma.hbm_to_vmem [thread:$0]  %s1, 256, %s21, [#allocation3], 128, 128, 8
    $region9: #{tpu_custom_call.1} parent=1 // pred_fallthru
      _
    // Predicated region
    $region10: #{tpu_custom_call.1} parent=1 // pred_check
      _
    $region11: #{tpu_custom_call.1} parent=1 // pred_check_branch
      %28 = sbr.rel (0) target = $region13
    $region12: #{tpu_custom_call.1} parent=1 // pred_region
      _
    $region13: #{tpu_custom_call.1} parent=1 // pred_fallthru
      _
    // Predicated region
    $region14: #{tpu_custom_call.1} parent=1 // pred_check
      _
    $region15: #{tpu_custom_call.1} parent=1 // pred_check_branch
      %30 = sbr.rel (0) target = $region17
    $region16: #{tpu_custom_call.1} parent=1 // pred_region
      %s32 = ssub.s32 3072, 3072
      %33 = vsyncadd [#allocation6], %s32
      %s34 = sshll.u32 [#allocation5], 4
      %s35 = int_to_ptr.vmem [resolvable:$true] %s34
      %40 = dma.hbm_to_vmem [thread:$0]  %s3, 3072, %s35, [#allocation6], 384, 384, 24
    $region17: #{tpu_custom_call.1} parent=1 // pred_fallthru
      _
    // Predicated region
    $region18: #{tpu_custom_call.1} parent=1 // pred_check
      _
    $region19: #{tpu_custom_call.1} parent=1 // pred_check_branch
      %42 = sbr.rel (0) target = $region21
    $region20: #{tpu_custom_call.1} parent=1 // pred_region
      _
    $region21: #{tpu_custom_call.1} parent=1 // pred_fallthru
      _
    // Predicated region
    $region22: #{tpu_custom_call.1} parent=1 // pred_check
      _
    $region23: #{tpu_custom_call.1} parent=1 // pred_check_branch
      %44 = sbr.rel (0) target = $region25
    $region24: #{tpu_custom_call.1} parent=1 // pred_region
      %45 = dma.done [#allocation3], 256
    $region25: #{tpu_custom_call.1} parent=1 // pred_fallthru
      _
    // Predicated region
    $region26: #{tpu_custom_call.1} parent=1 // pred_check
      _
    $region27: #{tpu_custom_call.1} parent=1 // pred_check_branch
      %47 = sbr.rel (0) target = $region29
    $region28: #{tpu_custom_call.1} parent=1 // pred_region
      %48 = dma.done [#allocation6], 3072
    $region29: #{tpu_custom_call.1} parent=1 // pred_fallthru
      _
    %v49 = vld [vmem:[%s0] sm:$0xff]
    %v50 = vld [vmem:[%s0 + $0x8] sm:$0xff]
    %v51 = vld [vmem:[#allocation2] sm:$0xff]
    %v52 = vld [vmem:[#allocation2 + $0x8] sm:$0xff]
    %v53 = vld [vmem:[%s2] sm:$0xff]
    %v54 = vld [vmem:[%s2 + $0x8] sm:$0xff]
    %v55 = vld [vmem:[#allocation5] sm:$0xff]
    %v56 = vld [vmem:[#allocation5 + $0x18] sm:$0xff]
    %v57 = vld [vmem:[#allocation5 + $0x30] sm:$0xff]
    %v58 = vld [vmem:[#allocation5 + $0x48] sm:$0xff]
    %v59 = vld [vmem:[#allocation5 + $0x8] sm:$0xff]
    %v60 = vld [vmem:[#allocation5 + $0x20] sm:$0xff]
    %v61 = vld [vmem:[#allocation5 + $0x38] sm:$0xff]
    %v62 = vld [vmem:[#allocation5 + $0x50] sm:$0xff]
    %v63 = vld [vmem:[#allocation5 + $0x10] sm:$0xff]
    %v64 = vld [vmem:[#allocation5 + $0x28] sm:$0xff]
    %v65 = vld [vmem:[#allocation5 + $0x40] sm:$0xff]
    %v66 = vld [vmem:[#allocation5 + $0x58] sm:$0xff]
    %v67 = vld [vmem:[#allocation5 + $0x10] sm:$0xff]
    %v68 = vld [vmem:[#allocation5 + $0x28] sm:$0xff]
    %v69 = vld [vmem:[#allocation5 + $0x40] sm:$0xff]
    %v70 = vld [vmem:[#allocation5 + $0x58] sm:$0xff]
    %v71 = vld [vmem:[#allocation5 + $0x70] sm:$0xff]
    %v72 = vld [vmem:[#allocation5 + $0x88] sm:$0xff]
    %v73 = vld [vmem:[#allocation5 + $0xa0] sm:$0xff]
    %v74 = vld [vmem:[#allocation5 + $0xb8] sm:$0xff]
    %v75 = vld [vmem:[%s4] sm:$0x1]
    %v76 = vld [vmem:[%s4 + $0x1] sm:$0x1]
    %v77 = vld [vmem:[%s4 + $0x2] sm:$0x1]
    %v78 = vld [vmem:[%s4 + $0x3] sm:$0x1]
    %v79 = vld [vmem:[%s4 + $0x4] sm:$0x1]
    %v80 = vld [vmem:[%s4 + $0x5] sm:$0x1]
    %v81 = vld [vmem:[%s4 + $0x6] sm:$0x1]
    %v82 = vld [vmem:[%s4 + $0x7] sm:$0x1]
    %v83 = vld [vmem:[%s4 + $0x8] sm:$0x1]
    %v84 = vld [vmem:[%s4 + $0x9] sm:$0x1]
    %v85 = vld [vmem:[%s4 + $0xa] sm:$0x1]
    %v86 = vld [vmem:[%s4 + $0xb] sm:$0x1]
    %v87 = vld [vmem:[%s4 + $0xc] sm:$0x1]
    %v88 = vlaneseq
    %v89 = vshrl.u32 %v88, 7
    %v90 = vsub.s32 0, %v89
    %v91 = vrot.slane %v75, %v90
    %vm92 = vcmask 261120
    %v94 = vsel %vm92, %v49, 0
    %v97 = vsel %vm92, %v50, 0
    %99 = vmatprep.subr.mxu0 0.0
    %100 = vmatpush1.msra.mxu0 %v55
    %101 = vmatprep.subr.mxu0 0.0
    %102 = vmatpush1.msra.mxu0 %v56
    %103 = vmatprep.subr.mxu0 0.0
    %104 = vmatpush1.msra.mxu0 %v57
    %105 = vmatprep.subr.mxu0 0.0
    %106 = vmatpush1.msra.mxu0 %v58
    %107 = vmatprep.subr.mxu0 0.0
    %108 = vmatpush1.msra.mxu0 0.0
    %109 = vmatprep.subr.mxu0 0.0
    %110 = vmatpush1.msra.mxu0 0.0
    %111 = vmatprep.subr.mxu0 0.0
    %112 = vmatpush1.msra.mxu0 0.0
    %113 = vmatprep.subr.mxu0 0.0
    %114 = vmatpush1.msra.mxu0 0.0
    %115 = vmatprep.subr.mxu0 0.0
    %116 = vmatpush1.msra.mxu0 0.0
    %117 = vmatprep.subr.mxu0 0.0
    %118 = vmatpush1.msra.mxu0 0.0
    %119 = vmatprep.subr.mxu0 0.0
    %120 = vmatpush1.msra.mxu0 0.0
    %121 = vmatprep.subr.mxu0 0.0
    %122 = vmatpush1.msra.mxu0 0.0
    %123 = vmatprep.subr.mxu0 0.0
    %124 = vmatpush1.msra.mxu0 0.0
    %125 = vmatprep.subr.mxu0 0.0
    %126 = vmatpush1.msra.mxu0 0.0
    %127 = vmatprep.subr.mxu0 0.0
    %128 = vmatpush1.msra.mxu0 0.0
    %129 = vmatprep.subr.mxu0 0.0
    %130 = vmatpush1.msra.mxu0 0.0
    %131 = vmatprep.subr.mxu0 0.0
    %132 = vmatpush1.msra.mxu0 0.0
    %133 = vmatprep.subr.mxu0 0.0
    %134 = vmatpush1.msra.mxu0 0.0
    %135 = vmatprep.subr.mxu0 0.0
    %136 = vmatpush1.msra.mxu0 0.0
    %137 = vmatprep.subr.mxu0 0.0
    %138 = vmatpush1.msra.mxu0 0.0
    %139 = vmatprep.subr.mxu0 0.0
    %140 = vmatpush1.msra.mxu0 0.0
    %141 = vmatprep.subr.mxu0 0.0
    %142 = vmatpush1.msra.mxu0 0.0
    %143 = vmatprep.subr.mxu0 0.0
    %144 = vmatpush1.msra.mxu0 0.0
    %145 = vmatprep.subr.mxu0 0.0
    %146 = vmatpush1.msra.mxu0 0.0
    %147 = vmatprep.subr.mxu0 0.0
    %148 = vmatpush1.msra.mxu0 0.0
    %149 = vmatprep.subr.mxu0 0.0
    %150 = vmatpush1.msra.mxu0 0.0
    %151 = vmatprep.subr.mxu0 0.0
    %152 = vmatpush1.msra.mxu0 0.0
    %153 = vmatprep.subr.mxu0 0.0
    %154 = vmatpush1.msra.mxu0 0.0
    %155 = vmatprep.subr.mxu0 0.0
    %156 = vmatpush1.msra.mxu0 0.0
    %157 = vmatprep.subr.mxu0 0.0
    %158 = vmatpush1.msra.mxu0 0.0
    %159 = vmatprep.subr.mxu0 0.0
    %160 = vmatpush1.msra.mxu0 0.0
    %161 = vmatprep.subr.mxu0 0.0
    %162 = vmatpush1.msra.mxu0 0.0
    %163 = vmatprep.mubr.f32.mxu0 0.0
    %164 = vmatmul.mubr.f32.gmra.mrb[0].mxu0 %v94
    %v165 = vpop.f32.mrb[0].mxu0
    %v166 = vadd.f32 %v91, %v165
    %v167 = vpop.f32.mrb[0].mxu0
    %168 = vmatprep.mubr.f32.mxu0 0.0
    %169 = vmatmul.mubr.f32.gmra.mrb[0].mxu0 %v97
    %v170 = vpop.f32.mrb[0].mxu0
    %v171 = vadd.f32 %v91, %v170
    %v172 = vpop.f32.mrb[0].mxu0
    %173 = vdwg.mxu0
    %175 = vrot.lane.b32.xlu0 %v166, 96
    %v176 = vpop.permute.xlu0 %175
    %vm177 = vcmask 64512
    %v178 = vsel %vm177, %v166, 0
    %v180 = vsel %vm177, %v176, 0
    %182 = vmatprep.subr.mxu0 0.0
    %183 = vmatpush1.xpose.msra.mxu0 %v180
    %184 = vmatprep.subr.mxu0 0.0
    %185 = vmatpush1.xpose.msra.mxu0 0.0
    %186 = vmatprep.subr.mxu0 0.0
    %187 = vmatpush1.xpose.msra.mxu0 0.0
    %188 = vmatprep.subr.mxu0 0.0
    %189 = vmatpush1.xpose.msra.mxu0 0.0
    %190 = vmatprep.subr.mxu0 0.0
    %191 = vmatpush1.xpose.msra.mxu0 0.0
    %192 = vmatprep.subr.mxu0 0.0
    %193 = vmatpush1.xpose.msra.mxu0 0.0
    %194 = vmatprep.subr.mxu0 0.0
    %195 = vmatpush1.xpose.msra.mxu0 0.0
    %196 = vmatprep.subr.mxu0 0.0
    %197 = vmatpush1.xpose.msra.mxu0 0.0
    %198 = vmatprep.subr.mxu0 0.0
    %199 = vmatpush1.xpose.msra.mxu0 0.0
    %200 = vmatprep.subr.mxu0 0.0
    %201 = vmatpush1.xpose.msra.mxu0 0.0
    %202 = vmatprep.subr.mxu0 0.0
    %203 = vmatpush1.xpose.msra.mxu0 0.0
    %204 = vmatprep.subr.mxu0 0.0
    %205 = vmatpush1.xpose.msra.mxu0 0.0
    %206 = vmatprep.subr.mxu0 0.0
    %207 = vmatpush1.xpose.msra.mxu0 0.0
    %208 = vmatprep.subr.mxu0 0.0
    %209 = vmatpush1.xpose.msra.mxu0 0.0
    %210 = vmatprep.subr.mxu0 0.0
    %211 = vmatpush1.xpose.msra.mxu0 0.0
    %212 = vmatprep.subr.mxu0 0.0
    %213 = vmatpush1.xpose.msra.mxu0 0.0
    %214 = vmatprep.subr.mxu0 0.0
    %215 = vmatpush1.xpose.msra.mxu0 0.0
    %216 = vmatprep.subr.mxu0 0.0
    %217 = vmatpush1.xpose.msra.mxu0 0.0
    %218 = vmatprep.subr.mxu0 0.0
    %219 = vmatpush1.xpose.msra.mxu0 0.0
    %220 = vmatprep.subr.mxu0 0.0
    %221 = vmatpush1.xpose.msra.mxu0 0.0
    %222 = vmatprep.subr.mxu0 0.0
    %223 = vmatpush1.xpose.msra.mxu0 0.0
    %224 = vmatprep.subr.mxu0 0.0
    %225 = vmatpush1.xpose.msra.mxu0 0.0
    %226 = vmatprep.subr.mxu0 0.0
    %227 = vmatpush1.xpose.msra.mxu0 0.0
    %228 = vmatprep.subr.mxu0 0.0
    %229 = vmatpush1.xpose.msra.mxu0 0.0
    %230 = vmatprep.subr.mxu0 0.0
    %231 = vmatpush1.xpose.msra.mxu0 0.0
    %232 = vmatprep.subr.mxu0 0.0
    %233 = vmatpush1.xpose.msra.mxu0 0.0
    %234 = vmatprep.subr.mxu0 0.0
    %235 = vmatpush1.xpose.msra.mxu0 0.0
    %236 = vmatprep.subr.mxu0 0.0
    %237 = vmatpush1.xpose.msra.mxu0 0.0
    %238 = vmatprep.subr.mxu0 0.0
    %239 = vmatpush1.xpose.msra.mxu0 0.0
    %240 = vmatprep.subr.mxu0 0.0
    %241 = vmatpush1.xpose.msra.mxu0 0.0
    %242 = vmatprep.subr.mxu0 0.0
    %243 = vmatpush1.xpose.msra.mxu0 0.0
    %244 = vmatprep.subr.mxu0 0.0
    %245 = vmatpush1.xpose.msra.mxu0 0.0
    %246 = vmatprep.mubr.f32.mxu0 0.0
    %247 = vmatmul.mubr.f32.gmra.mrb[0].mxu0 %v178
    %v248 = vpop.f32.mrb[0].mxu0
    %v249 = vadd.f32 %v53, %v248
    %v250 = vpop.f32.mrb[0].mxu0
    %251 = vdwg.mxu0
    %253 = vrot.lane.b32.xlu0 %v171, 96
    %v254 = vpop.permute.xlu0 %253
    %v255 = vsel %vm177, %v171, 0
    %v257 = vsel %vm177, %v254, 0
    %259 = vmatprep.subr.mxu0 0.0
    %260 = vmatpush1.xpose.msra.mxu0 %v257
    %261 = vmatprep.subr.mxu0 0.0
    %262 = vmatpush1.xpose.msra.mxu0 0.0
    %263 = vmatprep.subr.mxu0 0.0
    %264 = vmatpush1.xpose.msra.mxu0 0.0
    %265 = vmatprep.subr.mxu0 0.0
    %266 = vmatpush1.xpose.msra.mxu0 0.0
    %267 = vmatprep.subr.mxu0 0.0
    %268 = vmatpush1.xpose.msra.mxu0 0.0
    %269 = vmatprep.subr.mxu0 0.0
    %270 = vmatpush1.xpose.msra.mxu0 0.0
    %271 = vmatprep.subr.mxu0 0.0
    %272 = vmatpush1.xpose.msra.mxu0 0.0
    %273 = vmatprep.subr.mxu0 0.0
    %274 = vmatpush1.xpose.msra.mxu0 0.0
    %275 = vmatprep.subr.mxu0 0.0
    %276 = vmatpush1.xpose.msra.mxu0 0.0
    %277 = vmatprep.subr.mxu0 0.0
    %278 = vmatpush1.xpose.msra.mxu0 0.0
    %279 = vmatprep.subr.mxu0 0.0
    %280 = vmatpush1.xpose.msra.mxu0 0.0
    %281 = vmatprep.subr.mxu0 0.0
    %282 = vmatpush1.xpose.msra.mxu0 0.0
    %283 = vmatprep.subr.mxu0 0.0
    %284 = vmatpush1.xpose.msra.mxu0 0.0
    %285 = vmatprep.subr.mxu0 0.0
    %286 = vmatpush1.xpose.msra.mxu0 0.0
    %287 = vmatprep.subr.mxu0 0.0
    %288 = vmatpush1.xpose.msra.mxu0 0.0
    %289 = vmatprep.subr.mxu0 0.0
    %290 = vmatpush1.xpose.msra.mxu0 0.0
    %291 = vmatprep.subr.mxu0 0.0
    %292 = vmatpush1.xpose.msra.mxu0 0.0
    %293 = vmatprep.subr.mxu0 0.0
    %294 = vmatpush1.xpose.msra.mxu0 0.0
    %295 = vmatprep.subr.mxu0 0.0
    %296 = vmatpush1.xpose.msra.mxu0 0.0
    %297 = vmatprep.subr.mxu0 0.0
    %298 = vmatpush1.xpose.msra.mxu0 0.0
    %299 = vmatprep.subr.mxu0 0.0
    %300 = vmatpush1.xpose.msra.mxu0 0.0
    %301 = vmatprep.subr.mxu0 0.0
    %302 = vmatpush1.xpose.msra.mxu0 0.0
    %303 = vmatprep.subr.mxu0 0.0
    %304 = vmatpush1.xpose.msra.mxu0 0.0
    %305 = vmatprep.subr.mxu0 0.0
    %306 = vmatpush1.xpose.msra.mxu0 0.0
    %307 = vmatprep.subr.mxu0 0.0
    %308 = vmatpush1.xpose.msra.mxu0 0.0
    %309 = vmatprep.subr.mxu0 0.0
    %310 = vmatpush1.xpose.msra.mxu0 0.0
    %311 = vmatprep.subr.mxu0 0.0
    %312 = vmatpush1.xpose.msra.mxu0 0.0
    %313 = vmatprep.subr.mxu0 0.0
    %314 = vmatpush1.xpose.msra.mxu0 0.0
    %315 = vmatprep.subr.mxu0 0.0
    %316 = vmatpush1.xpose.msra.mxu0 0.0
    %317 = vmatprep.subr.mxu0 0.0
    %318 = vmatpush1.xpose.msra.mxu0 0.0
    %319 = vmatprep.subr.mxu0 0.0
    %320 = vmatpush1.xpose.msra.mxu0 0.0
    %321 = vmatprep.subr.mxu0 0.0
    %322 = vmatpush1.xpose.msra.mxu0 0.0
    %323 = vmatprep.mubr.f32.mxu0 0.0
    %324 = vmatmul.mubr.f32.gmra.mrb[0].mxu0 %v255
    %v325 = vpop.f32.mrb[0].mxu0
    %v326 = vadd.f32 %v53, %v325
    %v327 = vpop.f32.mrb[0].mxu0
    %328 = vdwg.mxu0
    %v329 = vsel %vm177, %v249, -inf
    %330 = vmax.xlane.f32.xlu0 %v329
    %v331 = vpop.xlane.xlu0 %330
    %v332 = vsel %vm177, %v326, -inf
    %333 = vmax.xlane.f32.xlu0 %v332
    %v334 = vpop.xlane.xlu0 %333
    %v335 = vsub.f32 %v249, %v331
    %v336 = vsub.f32 %v326, %v334
    %v337 = vmul.f32 %v335, 1.442695
    %v338 = vpow.pop %v337
    %v339 = vmul.f32 %v336, 1.442695
    %v340 = vpow.pop %v339
    %v341 = vsel %vm177, %v338, 0.0
    %342 = vadd.xlane.f32.xlu0 %v341
    %v343 = vpop.xlane.xlu0 %342
    %v344 = vsel %vm177, %v340, 0.0
    %345 = vadd.xlane.f32.xlu0 %v344
    %v346 = vpop.xlane.xlu0 %345
    %v347 = vrcp.pop %v343
    %v348 = vrcp.pop %v346
    %v349 = vmul.f32 %v338, %v347
    %v350 = vmul.f32 %v340, %v348
    %351 = vrot.lane.b32.xlu0 %v166, 64
    %v352 = vpop.permute.xlu0 %351
    %v355 = vsel %vm177, %v349, 0
    %357 = vmatprep.subr.mxu0 0.0
    %358 = vmatpush1.msra.mxu0 %v352
    %359 = vmatprep.subr.mxu0 0.0
    %360 = vmatpush1.msra.mxu0 0.0
    %361 = vmatprep.subr.mxu0 0.0
    %362 = vmatpush1.msra.mxu0 0.0
    %363 = vmatprep.subr.mxu0 0.0
    %364 = vmatpush1.msra.mxu0 0.0
    %365 = vmatprep.subr.mxu0 0.0
    %366 = vmatpush1.msra.mxu0 0.0
    %367 = vmatprep.subr.mxu0 0.0
    %368 = vmatpush1.msra.mxu0 0.0
    %369 = vmatprep.subr.mxu0 0.0
    %370 = vmatpush1.msra.mxu0 0.0
    %371 = vmatprep.subr.mxu0 0.0
    %372 = vmatpush1.msra.mxu0 0.0
    %373 = vmatprep.subr.mxu0 0.0
    %374 = vmatpush1.msra.mxu0 0.0
    %375 = vmatprep.subr.mxu0 0.0
    %376 = vmatpush1.msra.mxu0 0.0
    %377 = vmatprep.subr.mxu0 0.0
    %378 = vmatpush1.msra.mxu0 0.0
    %379 = vmatprep.subr.mxu0 0.0
    %380 = vmatpush1.msra.mxu0 0.0
    %381 = vmatprep.subr.mxu0 0.0
    %382 = vmatpush1.msra.mxu0 0.0
    %383 = vmatprep.subr.mxu0 0.0
    %384 = vmatpush1.msra.mxu0 0.0
    %385 = vmatprep.subr.mxu0 0.0
    %386 = vmatpush1.msra.mxu0 0.0
    %387 = vmatprep.subr.mxu0 0.0
    %388 = vmatpush1.msra.mxu0 0.0
    %389 = vmatprep.subr.mxu0 0.0
    %390 = vmatpush1.msra.mxu0 0.0
    %391 = vmatprep.subr.mxu0 0.0
    %392 = vmatpush1.msra.mxu0 0.0
    %393 = vmatprep.subr.mxu0 0.0
    %394 = vmatpush1.msra.mxu0 0.0
    %395 = vmatprep.subr.mxu0 0.0
    %396 = vmatpush1.msra.mxu0 0.0
    %397 = vmatprep.subr.mxu0 0.0
    %398 = vmatpush1.msra.mxu0 0.0
    %399 = vmatprep.subr.mxu0 0.0
    %400 = vmatpush1.msra.mxu0 0.0
    %401 = vmatprep.subr.mxu0 0.0
    %402 = vmatpush1.msra.mxu0 0.0
    %403 = vmatprep.subr.mxu0 0.0
    %404 = vmatpush1.msra.mxu0 0.0
    %405 = vmatprep.subr.mxu0 0.0
    %406 = vmatpush1.msra.mxu0 0.0
    %407 = vmatprep.subr.mxu0 0.0
    %408 = vmatpush1.msra.mxu0 0.0
    %409 = vmatprep.subr.mxu0 0.0
    %410 = vmatpush1.msra.mxu0 0.0
    %411 = vmatprep.subr.mxu0 0.0
    %412 = vmatpush1.msra.mxu0 0.0
    %413 = vmatprep.subr.mxu0 0.0
    %414 = vmatpush1.msra.mxu0 0.0
    %415 = vmatprep.subr.mxu0 0.0
    %416 = vmatpush1.msra.mxu0 0.0
    %417 = vmatprep.subr.mxu0 0.0
    %418 = vmatpush1.msra.mxu0 0.0
    %419 = vmatprep.subr.mxu0 0.0
    %420 = vmatpush1.msra.mxu0 0.0
    %421 = vmatprep.mubr.f32.mxu0 0.0
    %422 = vmatmul.mubr.f32.gmra.mrb[0].mxu0 %v355
    %v423 = vpop.f32.mrb[0].mxu0
    %v424 = vadd.f32 0.0, %v423
    %v425 = vpop.f32.mrb[0].mxu0
    %426 = vdwg.mxu0
    %427 = vrot.lane.b32.xlu0 %v171, 64
    %v428 = vpop.permute.xlu0 %427
    %v431 = vsel %vm177, %v350, 0
    %433 = vmatprep.subr.mxu0 0.0
    %434 = vmatpush1.msra.mxu0 %v428
    %435 = vmatprep.subr.mxu0 0.0
    %436 = vmatpush1.msra.mxu0 0.0
    %437 = vmatprep.subr.mxu0 0.0
    %438 = vmatpush1.msra.mxu0 0.0
    %439 = vmatprep.subr.mxu0 0.0
    %440 = vmatpush1.msra.mxu0 0.0
    %441 = vmatprep.subr.mxu0 0.0
    %442 = vmatpush1.msra.mxu0 0.0
    %443 = vmatprep.subr.mxu0 0.0
    %444 = vmatpush1.msra.mxu0 0.0
    %445 = vmatprep.subr.mxu0 0.0
    %446 = vmatpush1.msra.mxu0 0.0
    %447 = vmatprep.subr.mxu0 0.0
    %448 = vmatpush1.msra.mxu0 0.0
    %449 = vmatprep.subr.mxu0 0.0
    %450 = vmatpush1.msra.mxu0 0.0
    %451 = vmatprep.subr.mxu0 0.0
    %452 = vmatpush1.msra.mxu0 0.0
    %453 = vmatprep.subr.mxu0 0.0
    %454 = vmatpush1.msra.mxu0 0.0
    %455 = vmatprep.subr.mxu0 0.0
    %456 = vmatpush1.msra.mxu0 0.0
    %457 = vmatprep.subr.mxu0 0.0
    %458 = vmatpush1.msra.mxu0 0.0
    %459 = vmatprep.subr.mxu0 0.0
    %460 = vmatpush1.msra.mxu0 0.0
    %461 = vmatprep.subr.mxu0 0.0
    %462 = vmatpush1.msra.mxu0 0.0
    %463 = vmatprep.subr.mxu0 0.0
    %464 = vmatpush1.msra.mxu0 0.0
    %465 = vmatprep.subr.mxu0 0.0
    %466 = vmatpush1.msra.mxu0 0.0
    %467 = vmatprep.subr.mxu0 0.0
    %468 = vmatpush1.msra.mxu0 0.0
    %469 = vmatprep.subr.mxu0 0.0
    %470 = vmatpush1.msra.mxu0 0.0
    %471 = vmatprep.subr.mxu0 0.0
    %472 = vmatpush1.msra.mxu0 0.0
    %473 = vmatprep.subr.mxu0 0.0
    %474 = vmatpush1.msra.mxu0 0.0
    %475 = vmatprep.subr.mxu0 0.0
    %476 = vmatpush1.msra.mxu0 0.0
    %477 = vmatprep.subr.mxu0 0.0
    %478 = vmatpush1.msra.mxu0 0.0
    %479 = vmatprep.subr.mxu0 0.0
    %480 = vmatpush1.msra.mxu0 0.0
    %481 = vmatprep.subr.mxu0 0.0
    %482 = vmatpush1.msra.mxu0 0.0
    %483 = vmatprep.subr.mxu0 0.0
    %484 = vmatpush1.msra.mxu0 0.0
    %485 = vmatprep.subr.mxu0 0.0
    %486 = vmatpush1.msra.mxu0 0.0
    %487 = vmatprep.subr.mxu0 0.0
    %488 = vmatpush1.msra.mxu0 0.0
    %489 = vmatprep.subr.mxu0 0.0
    %490 = vmatpush1.msra.mxu0 0.0
    %491 = vmatprep.subr.mxu0 0.0
    %492 = vmatpush1.msra.mxu0 0.0
    %493 = vmatprep.subr.mxu0 0.0
    %494 = vmatpush1.msra.mxu0 0.0
    %495 = vmatprep.subr.mxu0 0.0
    %496 = vmatpush1.msra.mxu0 0.0
    %497 = vmatprep.mubr.f32.mxu0 0.0
    %498 = vmatmul.mubr.f32.gmra.mrb[0].mxu0 %v431
    %v499 = vpop.f32.mrb[0].mxu0
    %v500 = vadd.f32 0.0, %v499
    %v501 = vpop.f32.mrb[0].mxu0
    %502 = vdwg.mxu0
    %503 = vrot.lane.b32.xlu0 %v166, 120
    %v504 = vpop.permute.xlu0 %503
    %505 = vrot.lane.b32.xlu0 %v166, 88
    %v506 = vpop.permute.xlu0 %505
    %v507 = vsel %vm177, %v504, 0
    %v509 = vsel %vm177, %v506, 0
    %511 = vmatprep.subr.mxu0 0.0
    %512 = vmatpush1.xpose.msra.mxu0 %v509
    %513 = vmatprep.subr.mxu0 0.0
    %514 = vmatpush1.xpose.msra.mxu0 0.0
    %515 = vmatprep.subr.mxu0 0.0
    %516 = vmatpush1.xpose.msra.mxu0 0.0
    %517 = vmatprep.subr.mxu0 0.0
    %518 = vmatpush1.xpose.msra.mxu0 0.0
    %519 = vmatprep.subr.mxu0 0.0
    %520 = vmatpush1.xpose.msra.mxu0 0.0
    %521 = vmatprep.subr.mxu0 0.0
    %522 = vmatpush1.xpose.msra.mxu0 0.0
    %523 = vmatprep.subr.mxu0 0.0
    %524 = vmatpush1.xpose.msra.mxu0 0.0
    %525 = vmatprep.subr.mxu0 0.0
    %526 = vmatpush1.xpose.msra.mxu0 0.0
    %527 = vmatprep.subr.mxu0 0.0
    %528 = vmatpush1.xpose.msra.mxu0 0.0
    %529 = vmatprep.subr.mxu0 0.0
    %530 = vmatpush1.xpose.msra.mxu0 0.0
    %531 = vmatprep.subr.mxu0 0.0
    %532 = vmatpush1.xpose.msra.mxu0 0.0
    %533 = vmatprep.subr.mxu0 0.0
    %534 = vmatpush1.xpose.msra.mxu0 0.0
    %535 = vmatprep.subr.mxu0 0.0
    %536 = vmatpush1.xpose.msra.mxu0 0.0
    %537 = vmatprep.subr.mxu0 0.0
    %538 = vmatpush1.xpose.msra.mxu0 0.0
    %539 = vmatprep.subr.mxu0 0.0
    %540 = vmatpush1.xpose.msra.mxu0 0.0
    %541 = vmatprep.subr.mxu0 0.0
    %542 = vmatpush1.xpose.msra.mxu0 0.0
    %543 = vmatprep.subr.mxu0 0.0
    %544 = vmatpush1.xpose.msra.mxu0 0.0
    %545 = vmatprep.subr.mxu0 0.0
    %546 = vmatpush1.xpose.msra.mxu0 0.0
    %547 = vmatprep.subr.mxu0 0.0
    %548 = vmatpush1.xpose.msra.mxu0 0.0
    %549 = vmatprep.subr.mxu0 0.0
    %550 = vmatpush1.xpose.msra.mxu0 0.0
    %551 = vmatprep.subr.mxu0 0.0
    %552 = vmatpush1.xpose.msra.mxu0 0.0
    %553 = vmatprep.subr.mxu0 0.0
    %554 = vmatpush1.xpose.msra.mxu0 0.0
    %555 = vmatprep.subr.mxu0 0.0
    %556 = vmatpush1.xpose.msra.mxu0 0.0
    %557 = vmatprep.subr.mxu0 0.0
    %558 = vmatpush1.xpose.msra.mxu0 0.0
    %559 = vmatprep.subr.mxu0 0.0
    %560 = vmatpush1.xpose.msra.mxu0 0.0
    %561 = vmatprep.subr.mxu0 0.0
    %562 = vmatpush1.xpose.msra.mxu0 0.0
    %563 = vmatprep.subr.mxu0 0.0
    %564 = vmatpush1.xpose.msra.mxu0 0.0
    %565 = vmatprep.subr.mxu0 0.0
    %566 = vmatpush1.xpose.msra.mxu0 0.0
    %567 = vmatprep.subr.mxu0 0.0
    %568 = vmatpush1.xpose.msra.mxu0 0.0
    %569 = vmatprep.subr.mxu0 0.0
    %570 = vmatpush1.xpose.msra.mxu0 0.0
    %571 = vmatprep.subr.mxu0 0.0
    %572 = vmatpush1.xpose.msra.mxu0 0.0
    %573 = vmatprep.subr.mxu0 0.0
    %574 = vmatpush1.xpose.msra.mxu0 0.0
    %575 = vmatprep.mubr.f32.mxu0 0.0
    %576 = vmatmul.mubr.f32.gmra.mrb[0].mxu0 %v507
    %v577 = vpop.f32.mrb[0].mxu0
    %v578 = vadd.f32 %v53, %v577
    %v579 = vpop.f32.mrb[0].mxu0
    %580 = vdwg.mxu0
    %581 = vrot.lane.b32.xlu0 %v171, 120
    %v582 = vpop.permute.xlu0 %581
    %583 = vrot.lane.b32.xlu0 %v171, 88
    %v584 = vpop.permute.xlu0 %583
    %v585 = vsel %vm177, %v582, 0
    %v587 = vsel %vm177, %v584, 0
    %589 = vmatprep.subr.mxu0 0.0
    %590 = vmatpush1.xpose.msra.mxu0 %v587
    %591 = vmatprep.subr.mxu0 0.0
    %592 = vmatpush1.xpose.msra.mxu0 0.0
    %593 = vmatprep.subr.mxu0 0.0
    %594 = vmatpush1.xpose.msra.mxu0 0.0
    %595 = vmatprep.subr.mxu0 0.0
    %596 = vmatpush1.xpose.msra.mxu0 0.0
    %597 = vmatprep.subr.mxu0 0.0
    %598 = vmatpush1.xpose.msra.mxu0 0.0
    %599 = vmatprep.subr.mxu0 0.0
    %600 = vmatpush1.xpose.msra.mxu0 0.0
    %601 = vmatprep.subr.mxu0 0.0
    %602 = vmatpush1.xpose.msra.mxu0 0.0
    %603 = vmatprep.subr.mxu0 0.0
    %604 = vmatpush1.xpose.msra.mxu0 0.0
    %605 = vmatprep.subr.mxu0 0.0
    %606 = vmatpush1.xpose.msra.mxu0 0.0
    %607 = vmatprep.subr.mxu0 0.0
    %608 = vmatpush1.xpose.msra.mxu0 0.0
    %609 = vmatprep.subr.mxu0 0.0
    %610 = vmatpush1.xpose.msra.mxu0 0.0
    %611 = vmatprep.subr.mxu0 0.0
    %612 = vmatpush1.xpose.msra.mxu0 0.0
    %613 = vmatprep.subr.mxu0 0.0
    %614 = vmatpush1.xpose.msra.mxu0 0.0
    %615 = vmatprep.subr.mxu0 0.0
    %616 = vmatpush1.xpose.msra.mxu0 0.0
    %617 = vmatprep.subr.mxu0 0.0
    %618 = vmatpush1.xpose.msra.mxu0 0.0
    %619 = vmatprep.subr.mxu0 0.0
    %620 = vmatpush1.xpose.msra.mxu0 0.0
    %621 = vmatprep.subr.mxu0 0.0
    %622 = vmatpush1.xpose.msra.mxu0 0.0
    %623 = vmatprep.subr.mxu0 0.0
    %624 = vmatpush1.xpose.msra.mxu0 0.0
    %625 = vmatprep.subr.mxu0 0.0
    %626 = vmatpush1.xpose.msra.mxu0 0.0
    %627 = vmatprep.subr.mxu0 0.0
    %628 = vmatpush1.xpose.msra.mxu0 0.0
    %629 = vmatprep.subr.mxu0 0.0
    %630 = vmatpush1.xpose.msra.mxu0 0.0
    %631 = vmatprep.subr.mxu0 0.0
    %632 = vmatpush1.xpose.msra.mxu0 0.0
    %633 = vmatprep.subr.mxu0 0.0
    %634 = vmatpush1.xpose.msra.mxu0 0.0
    %635 = vmatprep.subr.mxu0 0.0
    %636 = vmatpush1.xpose.msra.mxu0 0.0
    %637 = vmatprep.subr.mxu0 0.0
    %638 = vmatpush1.xpose.msra.mxu0 0.0
    %639 = vmatprep.subr.mxu0 0.0
    %640 = vmatpush1.xpose.msra.mxu0 0.0
    %641 = vmatprep.subr.mxu0 0.0
    %642 = vmatpush1.xpose.msra.mxu0 0.0
    %643 = vmatprep.subr.mxu0 0.0
    %644 = vmatpush1.xpose.msra.mxu0 0.0
    %645 = vmatprep.subr.mxu0 0.0
    %646 = vmatpush1.xpose.msra.mxu0 0.0
    %647 = vmatprep.subr.mxu0 0.0
    %648 = vmatpush1.xpose.msra.mxu0 0.0
    %649 = vmatprep.subr.mxu0 0.0
    %650 = vmatpush1.xpose.msra.mxu0 0.0
    %651 = vmatprep.subr.mxu0 0.0
    %652 = vmatpush1.xpose.msra.mxu0 0.0
    %653 = vmatprep.mubr.f32.mxu0 0.0
    %654 = vmatmul.mubr.f32.gmra.mrb[0].mxu0 %v585
    %v655 = vpop.f32.mrb[0].mxu0
    %v656 = vadd.f32 %v53, %v655
    %v657 = vpop.f32.mrb[0].mxu0
    %658 = vdwg.mxu0
    %v659 = vsel %vm177, %v578, -inf
    %660 = vmax.xlane.f32.xlu0 %v659
    %v661 = vpop.xlane.xlu0 %660
    %v662 = vsel %vm177, %v656, -inf
    %663 = vmax.xlane.f32.xlu0 %v662
    %v664 = vpop.xlane.xlu0 %663
    %v665 = vsub.f32 %v578, %v661
    %v666 = vsub.f32 %v656, %v664
    %v667 = vmul.f32 %v665, 1.442695
    %v668 = vpow.pop %v667
    %v669 = vmul.f32 %v666, 1.442695
    %v670 = vpow.pop %v669
    %v671 = vsel %vm177, %v668, 0.0
    %672 = vadd.xlane.f32.xlu0 %v671
    %v673 = vpop.xlane.xlu0 %672
    %v674 = vsel %vm177, %v670, 0.0
    %675 = vadd.xlane.f32.xlu0 %v674
    %v676 = vpop.xlane.xlu0 %675
    %v677 = vrcp.pop %v673
    %v678 = vrcp.pop %v676
    %v679 = vmul.f32 %v668, %v677
    %v680 = vmul.f32 %v670, %v678
    %681 = vrot.lane.b32.xlu0 %v166, 56
    %v682 = vpop.permute.xlu0 %681
    %v685 = vsel %vm177, %v679, 0
    %687 = vmatprep.subr.mxu0 0.0
    %688 = vmatpush1.msra.mxu0 %v682
    %689 = vmatprep.subr.mxu0 0.0
    %690 = vmatpush1.msra.mxu0 0.0
    %691 = vmatprep.subr.mxu0 0.0
    %692 = vmatpush1.msra.mxu0 0.0
    %693 = vmatprep.subr.mxu0 0.0
    %694 = vmatpush1.msra.mxu0 0.0
    %695 = vmatprep.subr.mxu0 0.0
    %696 = vmatpush1.msra.mxu0 0.0
    %697 = vmatprep.subr.mxu0 0.0
    %698 = vmatpush1.msra.mxu0 0.0
    %699 = vmatprep.subr.mxu0 0.0
    %700 = vmatpush1.msra.mxu0 0.0
    %701 = vmatprep.subr.mxu0 0.0
    %702 = vmatpush1.msra.mxu0 0.0
    %703 = vmatprep.subr.mxu0 0.0
    %704 = vmatpush1.msra.mxu0 0.0
    %705 = vmatprep.subr.mxu0 0.0
    %706 = vmatpush1.msra.mxu0 0.0
    %707 = vmatprep.subr.mxu0 0.0
    %708 = vmatpush1.msra.mxu0 0.0
    %709 = vmatprep.subr.mxu0 0.0
    %710 = vmatpush1.msra.mxu0 0.0
    %711 = vmatprep.subr.mxu0 0.0
    %712 = vmatpush1.msra.mxu0 0.0
    %713 = vmatprep.subr.mxu0 0.0
    %714 = vmatpush1.msra.mxu0 0.0
    %715 = vmatprep.subr.mxu0 0.0
    %716 = vmatpush1.msra.mxu0 0.0
    %717 = vmatprep.subr.mxu0 0.0
    %718 = vmatpush1.msra.mxu0 0.0
    %719 = vmatprep.subr.mxu0 0.0
    %720 = vmatpush1.msra.mxu0 0.0
    %721 = vmatprep.subr.mxu0 0.0
    %722 = vmatpush1.msra.mxu0 0.0
    %723 = vmatprep.subr.mxu0 0.0
    %724 = vmatpush1.msra.mxu0 0.0
    %725 = vmatprep.subr.mxu0 0.0
    %726 = vmatpush1.msra.mxu0 0.0
    %727 = vmatprep.subr.mxu0 0.0
    %728 = vmatpush1.msra.mxu0 0.0
    %729 = vmatprep.subr.mxu0 0.0
    %730 = vmatpush1.msra.mxu0 0.0
    %731 = vmatprep.subr.mxu0 0.0
    %732 = vmatpush1.msra.mxu0 0.0
    %733 = vmatprep.subr.mxu0 0.0
    %734 = vmatpush1.msra.mxu0 0.0
    %735 = vmatprep.subr.mxu0 0.0
    %736 = vmatpush1.msra.mxu0 0.0
    %737 = vmatprep.subr.mxu0 0.0
    %738 = vmatpush1.msra.mxu0 0.0
    %739 = vmatprep.subr.mxu0 0.0
    %740 = vmatpush1.msra.mxu0 0.0
    %741 = vmatprep.subr.mxu0 0.0
    %742 = vmatpush1.msra.mxu0 0.0
    %743 = vmatprep.subr.mxu0 0.0
    %744 = vmatpush1.msra.mxu0 0.0
    %745 = vmatprep.subr.mxu0 0.0
    %746 = vmatpush1.msra.mxu0 0.0
    %747 = vmatprep.subr.mxu0 0.0
    %748 = vmatpush1.msra.mxu0 0.0
    %749 = vmatprep.subr.mxu0 0.0
    %750 = vmatpush1.msra.mxu0 0.0
    %751 = vmatprep.mubr.f32.mxu0 0.0
    %752 = vmatmul.mubr.f32.gmra.mrb[0].mxu0 %v685
    %v753 = vpop.f32.mrb[0].mxu0
    %v754 = vadd.f32 0.0, %v753
    %v755 = vpop.f32.mrb[0].mxu0
    %756 = vdwg.mxu0
    %757 = vrot.lane.b32.xlu0 %v171, 56
    %v758 = vpop.permute.xlu0 %757
    %v761 = vsel %vm177, %v680, 0
    %763 = vmatprep.subr.mxu0 0.0
    %764 = vmatpush1.msra.mxu0 %v758
    %765 = vmatprep.subr.mxu0 0.0
    %766 = vmatpush1.msra.mxu0 0.0
    %767 = vmatprep.subr.mxu0 0.0
    %768 = vmatpush1.msra.mxu0 0.0
    %769 = vmatprep.subr.mxu0 0.0
    %770 = vmatpush1.msra.mxu0 0.0
    %771 = vmatprep.subr.mxu0 0.0
    %772 = vmatpush1.msra.mxu0 0.0
    %773 = vmatprep.subr.mxu0 0.0
    %774 = vmatpush1.msra.mxu0 0.0
    %775 = vmatprep.subr.mxu0 0.0
    %776 = vmatpush1.msra.mxu0 0.0
    %777 = vmatprep.subr.mxu0 0.0
    %778 = vmatpush1.msra.mxu0 0.0
    %779 = vmatprep.subr.mxu0 0.0
    %780 = vmatpush1.msra.mxu0 0.0
    %781 = vmatprep.subr.mxu0 0.0
    %782 = vmatpush1.msra.mxu0 0.0
    %783 = vmatprep.subr.mxu0 0.0
    %784 = vmatpush1.msra.mxu0 0.0
    %785 = vmatprep.subr.mxu0 0.0
    %786 = vmatpush1.msra.mxu0 0.0
    %787 = vmatprep.subr.mxu0 0.0
    %788 = vmatpush1.msra.mxu0 0.0
    %789 = vmatprep.subr.mxu0 0.0
    %790 = vmatpush1.msra.mxu0 0.0
    %791 = vmatprep.subr.mxu0 0.0
    %792 = vmatpush1.msra.mxu0 0.0
    %793 = vmatprep.subr.mxu0 0.0
    %794 = vmatpush1.msra.mxu0 0.0
    %795 = vmatprep.subr.mxu0 0.0
    %796 = vmatpush1.msra.mxu0 0.0
    %797 = vmatprep.subr.mxu0 0.0
    %798 = vmatpush1.msra.mxu0 0.0
    %799 = vmatprep.subr.mxu0 0.0
    %800 = vmatpush1.msra.mxu0 0.0
    %801 = vmatprep.subr.mxu0 0.0
    %802 = vmatpush1.msra.mxu0 0.0
    %803 = vmatprep.subr.mxu0 0.0
    %804 = vmatpush1.msra.mxu0 0.0
    %805 = vmatprep.subr.mxu0 0.0
    %806 = vmatpush1.msra.mxu0 0.0
    %807 = vmatprep.subr.mxu0 0.0
    %808 = vmatpush1.msra.mxu0 0.0
    %809 = vmatprep.subr.mxu0 0.0
    %810 = vmatpush1.msra.mxu0 0.0
    %811 = vmatprep.subr.mxu0 0.0
    %812 = vmatpush1.msra.mxu0 0.0
    %813 = vmatprep.subr.mxu0 0.0
    %814 = vmatpush1.msra.mxu0 0.0
    %815 = vmatprep.subr.mxu0 0.0
    %816 = vmatpush1.msra.mxu0 0.0
    %817 = vmatprep.subr.mxu0 0.0
    %818 = vmatpush1.msra.mxu0 0.0
    %819 = vmatprep.subr.mxu0 0.0
    %820 = vmatpush1.msra.mxu0 0.0
    %821 = vmatprep.subr.mxu0 0.0
    %822 = vmatpush1.msra.mxu0 0.0
    %823 = vmatprep.subr.mxu0 0.0
    %824 = vmatpush1.msra.mxu0 0.0
    %825 = vmatprep.subr.mxu0 0.0
    %826 = vmatpush1.msra.mxu0 0.0
    %827 = vmatprep.mubr.f32.mxu0 0.0
    %828 = vmatmul.mubr.f32.gmra.mrb[0].mxu0 %v761
    %v829 = vpop.f32.mrb[0].mxu0
    %v830 = vadd.f32 0.0, %v829
    %v831 = vpop.f32.mrb[0].mxu0
    %832 = vdwg.mxu0
    %833 = vrot.lane.b32.xlu0 %v166, 112
    %v834 = vpop.permute.xlu0 %833
    %835 = vrot.lane.b32.xlu0 %v166, 80
    %v836 = vpop.permute.xlu0 %835
    %v837 = vsel %vm177, %v834, 0
    %v839 = vsel %vm177, %v836, 0
    %841 = vmatprep.subr.mxu0 0.0
    %842 = vmatpush1.xpose.msra.mxu0 %v839
    %843 = vmatprep.subr.mxu0 0.0
    %844 = vmatpush1.xpose.msra.mxu0 0.0
    %845 = vmatprep.subr.mxu0 0.0
    %846 = vmatpush1.xpose.msra.mxu0 0.0
    %847 = vmatprep.subr.mxu0 0.0
    %848 = vmatpush1.xpose.msra.mxu0 0.0
    %849 = vmatprep.subr.mxu0 0.0
    %850 = vmatpush1.xpose.msra.mxu0 0.0
    %851 = vmatprep.subr.mxu0 0.0
    %852 = vmatpush1.xpose.msra.mxu0 0.0
    %853 = vmatprep.subr.mxu0 0.0
    %854 = vmatpush1.xpose.msra.mxu0 0.0
    %855 = vmatprep.subr.mxu0 0.0
    %856 = vmatpush1.xpose.msra.mxu0 0.0
    %857 = vmatprep.subr.mxu0 0.0
    %858 = vmatpush1.xpose.msra.mxu0 0.0
    %859 = vmatprep.subr.mxu0 0.0
    %860 = vmatpush1.xpose.msra.mxu0 0.0
    %861 = vmatprep.subr.mxu0 0.0
    %862 = vmatpush1.xpose.msra.mxu0 0.0
    %863 = vmatprep.subr.mxu0 0.0
    %864 = vmatpush1.xpose.msra.mxu0 0.0
    %865 = vmatprep.subr.mxu0 0.0
    %866 = vmatpush1.xpose.msra.mxu0 0.0
    %867 = vmatprep.subr.mxu0 0.0
    %868 = vmatpush1.xpose.msra.mxu0 0.0
    %869 = vmatprep.subr.mxu0 0.0
    %870 = vmatpush1.xpose.msra.mxu0 0.0
    %871 = vmatprep.subr.mxu0 0.0
    %872 = vmatpush1.xpose.msra.mxu0 0.0
    %873 = vmatprep.subr.mxu0 0.0
    %874 = vmatpush1.xpose.msra.mxu0 0.0
    %875 = vmatprep.subr.mxu0 0.0
    %876 = vmatpush1.xpose.msra.mxu0 0.0
    %877 = vmatprep.subr.mxu0 0.0
    %878 = vmatpush1.xpose.msra.mxu0 0.0
    %879 = vmatprep.subr.mxu0 0.0
    %880 = vmatpush1.xpose.msra.mxu0 0.0
    %881 = vmatprep.subr.mxu0 0.0
    %882 = vmatpush1.xpose.msra.mxu0 0.0
    %883 = vmatprep.subr.mxu0 0.0
    %884 = vmatpush1.xpose.msra.mxu0 0.0
    %885 = vmatprep.subr.mxu0 0.0
    %886 = vmatpush1.xpose.msra.mxu0 0.0
    %887 = vmatprep.subr.mxu0 0.0
    %888 = vmatpush1.xpose.msra.mxu0 0.0
    %889 = vmatprep.subr.mxu0 0.0
    %890 = vmatpush1.xpose.msra.mxu0 0.0
    %891 = vmatprep.subr.mxu0 0.0
    %892 = vmatpush1.xpose.msra.mxu0 0.0
    %893 = vmatprep.subr.mxu0 0.0
    %894 = vmatpush1.xpose.msra.mxu0 0.0
    %895 = vmatprep.subr.mxu0 0.0
    %896 = vmatpush1.xpose.msra.mxu0 0.0
    %897 = vmatprep.subr.mxu0 0.0
    %898 = vmatpush1.xpose.msra.mxu0 0.0
    %899 = vmatprep.subr.mxu0 0.0
    %900 = vmatpush1.xpose.msra.mxu0 0.0
    %901 = vmatprep.subr.mxu0 0.0
    %902 = vmatpush1.xpose.msra.mxu0 0.0
    %903 = vmatprep.subr.mxu0 0.0
    %904 = vmatpush1.xpose.msra.mxu0 0.0
    %905 = vmatprep.mubr.f32.mxu0 0.0
    %906 = vmatmul.mubr.f32.gmra.mrb[0].mxu0 %v837
    %v907 = vpop.f32.mrb[0].mxu0
    %v908 = vadd.f32 %v53, %v907
    %v909 = vpop.f32.mrb[0].mxu0
    %910 = vdwg.mxu0
    %911 = vrot.lane.b32.xlu0 %v171, 112
    %v912 = vpop.permute.xlu0 %911
    %913 = vrot.lane.b32.xlu0 %v171, 80
    %v914 = vpop.permute.xlu0 %913
    %v915 = vsel %vm177, %v912, 0
    %v917 = vsel %vm177, %v914, 0
    %919 = vmatprep.subr.mxu0 0.0
    %920 = vmatpush1.xpose.msra.mxu0 %v917
    %921 = vmatprep.subr.mxu0 0.0
    %922 = vmatpush1.xpose.msra.mxu0 0.0
    %923 = vmatprep.subr.mxu0 0.0
    %924 = vmatpush1.xpose.msra.mxu0 0.0
    %925 = vmatprep.subr.mxu0 0.0
    %926 = vmatpush1.xpose.msra.mxu0 0.0
    %927 = vmatprep.subr.mxu0 0.0
    %928 = vmatpush1.xpose.msra.mxu0 0.0
    %929 = vmatprep.subr.mxu0 0.0
    %930 = vmatpush1.xpose.msra.mxu0 0.0
    %931 = vmatprep.subr.mxu0 0.0
    %932 = vmatpush1.xpose.msra.mxu0 0.0
    %933 = vmatprep.subr.mxu0 0.0
    %934 = vmatpush1.xpose.msra.mxu0 0.0
    %935 = vmatprep.subr.mxu0 0.0
    %936 = vmatpush1.xpose.msra.mxu0 0.0
    %937 = vmatprep.subr.mxu0 0.0
    %938 = vmatpush1.xpose.msra.mxu0 0.0
    %939 = vmatprep.subr.mxu0 0.0
    %940 = vmatpush1.xpose.msra.mxu0 0.0
    %941 = vmatprep.subr.mxu0 0.0
    %942 = vmatpush1.xpose.msra.mxu0 0.0
    %943 = vmatprep.subr.mxu0 0.0
    %944 = vmatpush1.xpose.msra.mxu0 0.0
    %945 = vmatprep.subr.mxu0 0.0
    %946 = vmatpush1.xpose.msra.mxu0 0.0
    %947 = vmatprep.subr.mxu0 0.0
    %948 = vmatpush1.xpose.msra.mxu0 0.0
    %949 = vmatprep.subr.mxu0 0.0
    %950 = vmatpush1.xpose.msra.mxu0 0.0
    %951 = vmatprep.subr.mxu0 0.0
    %952 = vmatpush1.xpose.msra.mxu0 0.0
    %953 = vmatprep.subr.mxu0 0.0
    %954 = vmatpush1.xpose.msra.mxu0 0.0
    %955 = vmatprep.subr.mxu0 0.0
    %956 = vmatpush1.xpose.msra.mxu0 0.0
    %957 = vmatprep.subr.mxu0 0.0
    %958 = vmatpush1.xpose.msra.mxu0 0.0
    %959 = vmatprep.subr.mxu0 0.0
    %960 = vmatpush1.xpose.msra.mxu0 0.0
    %961 = vmatprep.subr.mxu0 0.0
    %962 = vmatpush1.xpose.msra.mxu0 0.0
    %963 = vmatprep.subr.mxu0 0.0
    %964 = vmatpush1.xpose.msra.mxu0 0.0
    %965 = vmatprep.subr.mxu0 0.0
    %966 = vmatpush1.xpose.msra.mxu0 0.0
    %967 = vmatprep.subr.mxu0 0.0
    %968 = vmatpush1.xpose.msra.mxu0 0.0
    %969 = vmatprep.subr.mxu0 0.0
    %970 = vmatpush1.xpose.msra.mxu0 0.0
    %971 = vmatprep.subr.mxu0 0.0
    %972 = vmatpush1.xpose.msra.mxu0 0.0
    %973 = vmatprep.subr.mxu0 0.0
    %974 = vmatpush1.xpose.msra.mxu0 0.0
    %975 = vmatprep.subr.mxu0 0.0
    %976 = vmatpush1.xpose.msra.mxu0 0.0
    %977 = vmatprep.subr.mxu0 0.0
    %978 = vmatpush1.xpose.msra.mxu0 0.0
    %979 = vmatprep.subr.mxu0 0.0
    %980 = vmatpush1.xpose.msra.mxu0 0.0
    %981 = vmatprep.subr.mxu0 0.0
    %982 = vmatpush1.xpose.msra.mxu0 0.0
    %983 = vmatprep.mubr.f32.mxu0 0.0
    %984 = vmatmul.mubr.f32.gmra.mrb[0].mxu0 %v915
    %v985 = vpop.f32.mrb[0].mxu0
    %v986 = vadd.f32 %v53, %v985
    %v987 = vpop.f32.mrb[0].mxu0
    %988 = vdwg.mxu0
    %v989 = vsel %vm177, %v908, -inf
    %990 = vmax.xlane.f32.xlu0 %v989
    %v991 = vpop.xlane.xlu0 %990
    %v992 = vsel %vm177, %v986, -inf
    %993 = vmax.xlane.f32.xlu0 %v992
    %v994 = vpop.xlane.xlu0 %993
    %v995 = vsub.f32 %v908, %v991
    %v996 = vsub.f32 %v986, %v994
    %v997 = vmul.f32 %v995, 1.442695
    %v998 = vpow.pop %v997
    %v999 = vmul.f32 %v996, 1.442695
    %v1000 = vpow.pop %v999
    %v1001 = vsel %vm177, %v998, 0.0
    %1002 = vadd.xlane.f32.xlu0 %v1001
    %v1003 = vpop.xlane.xlu0 %1002
    %v1004 = vsel %vm177, %v1000, 0.0
    %1005 = vadd.xlane.f32.xlu0 %v1004
    %v1006 = vpop.xlane.xlu0 %1005
    %v1007 = vrcp.pop %v1003
    %v1008 = vrcp.pop %v1006
    %v1009 = vmul.f32 %v998, %v1007
    %v1010 = vmul.f32 %v1000, %v1008
    %1011 = vrot.lane.b32.xlu0 %v166, 48
    %v1012 = vpop.permute.xlu0 %1011
    %v1015 = vsel %vm177, %v1009, 0
    %1017 = vmatprep.subr.mxu0 0.0
    %1018 = vmatpush1.msra.mxu0 %v1012
    %1019 = vmatprep.subr.mxu0 0.0
    %1020 = vmatpush1.msra.mxu0 0.0
    %1021 = vmatprep.subr.mxu0 0.0
    %1022 = vmatpush1.msra.mxu0 0.0
    %1023 = vmatprep.subr.mxu0 0.0
    %1024 = vmatpush1.msra.mxu0 0.0
    %1025 = vmatprep.subr.mxu0 0.0
    %1026 = vmatpush1.msra.mxu0 0.0
    %1027 = vmatprep.subr.mxu0 0.0
    %1028 = vmatpush1.msra.mxu0 0.0
    %1029 = vmatprep.subr.mxu0 0.0
    %1030 = vmatpush1.msra.mxu0 0.0
    %1031 = vmatprep.subr.mxu0 0.0
    %1032 = vmatpush1.msra.mxu0 0.0
    %1033 = vmatprep.subr.mxu0 0.0
    %1034 = vmatpush1.msra.mxu0 0.0
    %1035 = vmatprep.subr.mxu0 0.0
    %1036 = vmatpush1.msra.mxu0 0.0
    %1037 = vmatprep.subr.mxu0 0.0
    %1038 = vmatpush1.msra.mxu0 0.0
    %1039 = vmatprep.subr.mxu0 0.0
    %1040 = vmatpush1.msra.mxu0 0.0
    %1041 = vmatprep.subr.mxu0 0.0
    %1042 = vmatpush1.msra.mxu0 0.0
    %1043 = vmatprep.subr.mxu0 0.0
    %1044 = vmatpush1.msra.mxu0 0.0
    %1045 = vmatprep.subr.mxu0 0.0
    %1046 = vmatpush1.msra.mxu0 0.0
    %1047 = vmatprep.subr.mxu0 0.0
    %1048 = vmatpush1.msra.mxu0 0.0
    %1049 = vmatprep.subr.mxu0 0.0
    %1050 = vmatpush1.msra.mxu0 0.0
    %1051 = vmatprep.subr.mxu0 0.0
    %1052 = vmatpush1.msra.mxu0 0.0
    %1053 = vmatprep.subr.mxu0 0.0
    %1054 = vmatpush1.msra.mxu0 0.0
    %1055 = vmatprep.subr.mxu0 0.0
    %1056 = vmatpush1.msra.mxu0 0.0
    %1057 = vmatprep.subr.mxu0 0.0
    %1058 = vmatpush1.msra.mxu0 0.0
    %1059 = vmatprep.subr.mxu0 0.0
    %1060 = vmatpush1.msra.mxu0 0.0
    %1061 = vmatprep.subr.mxu0 0.0
    %1062 = vmatpush1.msra.mxu0 0.0
    %1063 = vmatprep.subr.mxu0 0.0
    %1064 = vmatpush1.msra.mxu0 0.0
    %1065 = vmatprep.subr.mxu0 0.0
    %1066 = vmatpush1.msra.mxu0 0.0
    %1067 = vmatprep.subr.mxu0 0.0
    %1068 = vmatpush1.msra.mxu0 0.0
    %1069 = vmatprep.subr.mxu0 0.0
    %1070 = vmatpush1.msra.mxu0 0.0
    %1071 = vmatprep.subr.mxu0 0.0
    %1072 = vmatpush1.msra.mxu0 0.0
    %1073 = vmatprep.subr.mxu0 0.0
    %1074 = vmatpush1.msra.mxu0 0.0
    %1075 = vmatprep.subr.mxu0 0.0
    %1076 = vmatpush1.msra.mxu0 0.0
    %1077 = vmatprep.subr.mxu0 0.0
    %1078 = vmatpush1.msra.mxu0 0.0
    %1079 = vmatprep.subr.mxu0 0.0
    %1080 = vmatpush1.msra.mxu0 0.0
    %1081 = vmatprep.mubr.f32.mxu0 0.0
    %1082 = vmatmul.mubr.f32.gmra.mrb[0].mxu0 %v1015
    %v1083 = vpop.f32.mrb[0].mxu0
    %v1084 = vadd.f32 0.0, %v1083
    %v1085 = vpop.f32.mrb[0].mxu0
    %1086 = vdwg.mxu0
    %1087 = vrot.lane.b32.xlu0 %v171, 48
    %v1088 = vpop.permute.xlu0 %1087
    %v1091 = vsel %vm177, %v1010, 0
    %1093 = vmatprep.subr.mxu0 0.0
    %1094 = vmatpush1.msra.mxu0 %v1088
    %1095 = vmatprep.subr.mxu0 0.0
    %1096 = vmatpush1.msra.mxu0 0.0
    %1097 = vmatprep.subr.mxu0 0.0
    %1098 = vmatpush1.msra.mxu0 0.0
    %1099 = vmatprep.subr.mxu0 0.0
    %1100 = vmatpush1.msra.mxu0 0.0
    %1101 = vmatprep.subr.mxu0 0.0
    %1102 = vmatpush1.msra.mxu0 0.0
    %1103 = vmatprep.subr.mxu0 0.0
    %1104 = vmatpush1.msra.mxu0 0.0
    %1105 = vmatprep.subr.mxu0 0.0
    %1106 = vmatpush1.msra.mxu0 0.0
    %1107 = vmatprep.subr.mxu0 0.0
    %1108 = vmatpush1.msra.mxu0 0.0
    %1109 = vmatprep.subr.mxu0 0.0
    %1110 = vmatpush1.msra.mxu0 0.0
    %1111 = vmatprep.subr.mxu0 0.0
    %1112 = vmatpush1.msra.mxu0 0.0
    %1113 = vmatprep.subr.mxu0 0.0
    %1114 = vmatpush1.msra.mxu0 0.0
    %1115 = vmatprep.subr.mxu0 0.0
    %1116 = vmatpush1.msra.mxu0 0.0
    %1117 = vmatprep.subr.mxu0 0.0
    %1118 = vmatpush1.msra.mxu0 0.0
    %1119 = vmatprep.subr.mxu0 0.0
    %1120 = vmatpush1.msra.mxu0 0.0
    %1121 = vmatprep.subr.mxu0 0.0
    %1122 = vmatpush1.msra.mxu0 0.0
    %1123 = vmatprep.subr.mxu0 0.0
    %1124 = vmatpush1.msra.mxu0 0.0
    %1125 = vmatprep.subr.mxu0 0.0
    %1126 = vmatpush1.msra.mxu0 0.0
    %1127 = vmatprep.subr.mxu0 0.0
    %1128 = vmatpush1.msra.mxu0 0.0
    %1129 = vmatprep.subr.mxu0 0.0
    %1130 = vmatpush1.msra.mxu0 0.0
    %1131 = vmatprep.subr.mxu0 0.0
    %1132 = vmatpush1.msra.mxu0 0.0
    %1133 = vmatprep.subr.mxu0 0.0
    %1134 = vmatpush1.msra.mxu0 0.0
    %1135 = vmatprep.subr.mxu0 0.0
    %1136 = vmatpush1.msra.mxu0 0.0
    %1137 = vmatprep.subr.mxu0 0.0
    %1138 = vmatpush1.msra.mxu0 0.0
    %1139 = vmatprep.subr.mxu0 0.0
    %1140 = vmatpush1.msra.mxu0 0.0
    %1141 = vmatprep.subr.mxu0 0.0
    %1142 = vmatpush1.msra.mxu0 0.0
    %1143 = vmatprep.subr.mxu0 0.0
    %1144 = vmatpush1.msra.mxu0 0.0
    %1145 = vmatprep.subr.mxu0 0.0
    %1146 = vmatpush1.msra.mxu0 0.0
    %1147 = vmatprep.subr.mxu0 0.0
    %1148 = vmatpush1.msra.mxu0 0.0
    %1149 = vmatprep.subr.mxu0 0.0
    %1150 = vmatpush1.msra.mxu0 0.0
    %1151 = vmatprep.subr.mxu0 0.0
    %1152 = vmatpush1.msra.mxu0 0.0
    %1153 = vmatprep.subr.mxu0 0.0
    %1154 = vmatpush1.msra.mxu0 0.0
    %1155 = vmatprep.subr.mxu0 0.0
    %1156 = vmatpush1.msra.mxu0 0.0
    %1157 = vmatprep.mubr.f32.mxu0 0.0
    %1158 = vmatmul.mubr.f32.gmra.mrb[0].mxu0 %v1091
    %v1159 = vpop.f32.mrb[0].mxu0
    %v1160 = vadd.f32 0.0, %v1159
    %v1161 = vpop.f32.mrb[0].mxu0
    %1162 = vdwg.mxu0
    %1163 = vrot.lane.b32.xlu0 %v166, 104
    %v1164 = vpop.permute.xlu0 %1163
    %1165 = vrot.lane.b32.xlu0 %v166, 72
    %v1166 = vpop.permute.xlu0 %1165
    %v1167 = vsel %vm177, %v1164, 0
    %v1169 = vsel %vm177, %v1166, 0
    %1171 = vmatprep.subr.mxu0 0.0
    %1172 = vmatpush1.xpose.msra.mxu0 %v1169
    %1173 = vmatprep.subr.mxu0 0.0
    %1174 = vmatpush1.xpose.msra.mxu0 0.0
    %1175 = vmatprep.subr.mxu0 0.0
    %1176 = vmatpush1.xpose.msra.mxu0 0.0
    %1177 = vmatprep.subr.mxu0 0.0
    %1178 = vmatpush1.xpose.msra.mxu0 0.0
    %1179 = vmatprep.subr.mxu0 0.0
    %1180 = vmatpush1.xpose.msra.mxu0 0.0
    %1181 = vmatprep.subr.mxu0 0.0
    %1182 = vmatpush1.xpose.msra.mxu0 0.0
    %1183 = vmatprep.subr.mxu0 0.0
    %1184 = vmatpush1.xpose.msra.mxu0 0.0
    %1185 = vmatprep.subr.mxu0 0.0
    %1186 = vmatpush1.xpose.msra.mxu0 0.0
    %1187 = vmatprep.subr.mxu0 0.0
    %1188 = vmatpush1.xpose.msra.mxu0 0.0
    %1189 = vmatprep.subr.mxu0 0.0
    %1190 = vmatpush1.xpose.msra.mxu0 0.0
    %1191 = vmatprep.subr.mxu0 0.0
    %1192 = vmatpush1.xpose.msra.mxu0 0.0
    %1193 = vmatprep.subr.mxu0 0.0
    %1194 = vmatpush1.xpose.msra.mxu0 0.0
    %1195 = vmatprep.subr.mxu0 0.0
    %1196 = vmatpush1.xpose.msra.mxu0 0.0
    %1197 = vmatprep.subr.mxu0 0.0
    %1198 = vmatpush1.xpose.msra.mxu0 0.0
    %1199 = vmatprep.subr.mxu0 0.0
    %1200 = vmatpush1.xpose.msra.mxu0 0.0
    %1201 = vmatprep.subr.mxu0 0.0
    %1202 = vmatpush1.xpose.msra.mxu0 0.0
    %1203 = vmatprep.subr.mxu0 0.0
    %1204 = vmatpush1.xpose.msra.mxu0 0.0
    %1205 = vmatprep.subr.mxu0 0.0
    %1206 = vmatpush1.xpose.msra.mxu0 0.0
    %1207 = vmatprep.subr.mxu0 0.0
    %1208 = vmatpush1.xpose.msra.mxu0 0.0
    %1209 = vmatprep.subr.mxu0 0.0
    %1210 = vmatpush1.xpose.msra.mxu0 0.0
    %1211 = vmatprep.subr.mxu0 0.0
    %1212 = vmatpush1.xpose.msra.mxu0 0.0
    %1213 = vmatprep.subr.mxu0 0.0
    %1214 = vmatpush1.xpose.msra.mxu0 0.0
    %1215 = vmatprep.subr.mxu0 0.0
    %1216 = vmatpush1.xpose.msra.mxu0 0.0
    %1217 = vmatprep.subr.mxu0 0.0
    %1218 = vmatpush1.xpose.msra.mxu0 0.0
    %1219 = vmatprep.subr.mxu0 0.0
    %1220 = vmatpush1.xpose.msra.mxu0 0.0
    %1221 = vmatprep.subr.mxu0 0.0
    %1222 = vmatpush1.xpose.msra.mxu0 0.0
    %1223 = vmatprep.subr.mxu0 0.0
    %1224 = vmatpush1.xpose.msra.mxu0 0.0
    %1225 = vmatprep.subr.mxu0 0.0
    %1226 = vmatpush1.xpose.msra.mxu0 0.0
    %1227 = vmatprep.subr.mxu0 0.0
    %1228 = vmatpush1.xpose.msra.mxu0 0.0
    %1229 = vmatprep.subr.mxu0 0.0
    %1230 = vmatpush1.xpose.msra.mxu0 0.0
    %1231 = vmatprep.subr.mxu0 0.0
    %1232 = vmatpush1.xpose.msra.mxu0 0.0
    %1233 = vmatprep.subr.mxu0 0.0
    %1234 = vmatpush1.xpose.msra.mxu0 0.0
    %1235 = vmatprep.mubr.f32.mxu0 0.0
    %1236 = vmatmul.mubr.f32.gmra.mrb[0].mxu0 %v1167
    %v1237 = vpop.f32.mrb[0].mxu0
    %v1238 = vadd.f32 %v53, %v1237
    %v1239 = vpop.f32.mrb[0].mxu0
    %1240 = vdwg.mxu0
    %1241 = vrot.lane.b32.xlu0 %v171, 104
    %v1242 = vpop.permute.xlu0 %1241
    %1243 = vrot.lane.b32.xlu0 %v171, 72
    %v1244 = vpop.permute.xlu0 %1243
    %v1245 = vsel %vm177, %v1242, 0
    %v1247 = vsel %vm177, %v1244, 0
    %1249 = vmatprep.subr.mxu0 0.0
    %1250 = vmatpush1.xpose.msra.mxu0 %v1247
    %1251 = vmatprep.subr.mxu0 0.0
    %1252 = vmatpush1.xpose.msra.mxu0 0.0
    %1253 = vmatprep.subr.mxu0 0.0
    %1254 = vmatpush1.xpose.msra.mxu0 0.0
    %1255 = vmatprep.subr.mxu0 0.0
    %1256 = vmatpush1.xpose.msra.mxu0 0.0
    %1257 = vmatprep.subr.mxu0 0.0
    %1258 = vmatpush1.xpose.msra.mxu0 0.0
    %1259 = vmatprep.subr.mxu0 0.0
    %1260 = vmatpush1.xpose.msra.mxu0 0.0
    %1261 = vmatprep.subr.mxu0 0.0
    %1262 = vmatpush1.xpose.msra.mxu0 0.0
    %1263 = vmatprep.subr.mxu0 0.0
    %1264 = vmatpush1.xpose.msra.mxu0 0.0
    %1265 = vmatprep.subr.mxu0 0.0
    %1266 = vmatpush1.xpose.msra.mxu0 0.0
    %1267 = vmatprep.subr.mxu0 0.0
    %1268 = vmatpush1.xpose.msra.mxu0 0.0
    %1269 = vmatprep.subr.mxu0 0.0
    %1270 = vmatpush1.xpose.msra.mxu0 0.0
    %1271 = vmatprep.subr.mxu0 0.0
    %1272 = vmatpush1.xpose.msra.mxu0 0.0
    %1273 = vmatprep.subr.mxu0 0.0
    %1274 = vmatpush1.xpose.msra.mxu0 0.0
    %1275 = vmatprep.subr.mxu0 0.0
    %1276 = vmatpush1.xpose.msra.mxu0 0.0
    %1277 = vmatprep.subr.mxu0 0.0
    %1278 = vmatpush1.xpose.msra.mxu0 0.0
    %1279 = vmatprep.subr.mxu0 0.0
    %1280 = vmatpush1.xpose.msra.mxu0 0.0
    %1281 = vmatprep.subr.mxu0 0.0
    %1282 = vmatpush1.xpose.msra.mxu0 0.0
    %1283 = vmatprep.subr.mxu0 0.0
    %1284 = vmatpush1.xpose.msra.mxu0 0.0
    %1285 = vmatprep.subr.mxu0 0.0
    %1286 = vmatpush1.xpose.msra.mxu0 0.0
    %1287 = vmatprep.subr.mxu0 0.0
    %1288 = vmatpush1.xpose.msra.mxu0 0.0
    %1289 = vmatprep.subr.mxu0 0.0
    %1290 = vmatpush1.xpose.msra.mxu0 0.0
    %1291 = vmatprep.subr.mxu0 0.0
    %1292 = vmatpush1.xpose.msra.mxu0 0.0
    %1293 = vmatprep.subr.mxu0 0.0
    %1294 = vmatpush1.xpose.msra.mxu0 0.0
    %1295 = vmatprep.subr.mxu0 0.0
    %1296 = vmatpush1.xpose.msra.mxu0 0.0
    %1297 = vmatprep.subr.mxu0 0.0
    %1298 = vmatpush1.xpose.msra.mxu0 0.0
    %1299 = vmatprep.subr.mxu0 0.0
    %1300 = vmatpush1.xpose.msra.mxu0 0.0
    %1301 = vmatprep.subr.mxu0 0.0
    %1302 = vmatpush1.xpose.msra.mxu0 0.0
    %1303 = vmatprep.subr.mxu0 0.0
    %1304 = vmatpush1.xpose.msra.mxu0 0.0
    %1305 = vmatprep.subr.mxu0 0.0
    %1306 = vmatpush1.xpose.msra.mxu0 0.0
    %1307 = vmatprep.subr.mxu0 0.0
    %1308 = vmatpush1.xpose.msra.mxu0 0.0
    %1309 = vmatprep.subr.mxu0 0.0
    %1310 = vmatpush1.xpose.msra.mxu0 0.0
    %1311 = vmatprep.subr.mxu0 0.0
    %1312 = vmatpush1.xpose.msra.mxu0 0.0
    %1313 = vmatprep.mubr.f32.mxu0 0.0
    %1314 = vmatmul.mubr.f32.gmra.mrb[0].mxu0 %v1245
    %v1315 = vpop.f32.mrb[0].mxu0
    %v1316 = vadd.f32 %v53, %v1315
    %v1317 = vpop.f32.mrb[0].mxu0
    %1318 = vdwg.mxu0
    %v1319 = vsel %vm177, %v1238, -inf
    %1320 = vmax.xlane.f32.xlu0 %v1319
    %v1321 = vpop.xlane.xlu0 %1320
    %v1322 = vsel %vm177, %v1316, -inf
    %1323 = vmax.xlane.f32.xlu0 %v1322
    %v1324 = vpop.xlane.xlu0 %1323
    %v1325 = vsub.f32 %v1238, %v1321
    %v1326 = vsub.f32 %v1316, %v1324
    %v1327 = vmul.f32 %v1325, 1.442695
    %v1328 = vpow.pop %v1327
    %v1329 = vmul.f32 %v1326, 1.442695
    %v1330 = vpow.pop %v1329
    %v1331 = vsel %vm177, %v1328, 0.0
    %1332 = vadd.xlane.f32.xlu0 %v1331
    %v1333 = vpop.xlane.xlu0 %1332
    %v1334 = vsel %vm177, %v1330, 0.0
    %1335 = vadd.xlane.f32.xlu0 %v1334
    %v1336 = vpop.xlane.xlu0 %1335
    %v1337 = vrcp.pop %v1333
    %v1338 = vrcp.pop %v1336
    %v1339 = vmul.f32 %v1328, %v1337
    %v1340 = vmul.f32 %v1330, %v1338
    %1341 = vrot.lane.b32.xlu0 %v166, 40
    %v1342 = vpop.permute.xlu0 %1341
    %v1345 = vsel %vm177, %v1339, 0
    %1347 = vmatprep.subr.mxu0 0.0
    %1348 = vmatpush1.msra.mxu0 %v1342
    %1349 = vmatprep.subr.mxu0 0.0
    %1350 = vmatpush1.msra.mxu0 0.0
    %1351 = vmatprep.subr.mxu0 0.0
    %1352 = vmatpush1.msra.mxu0 0.0
    %1353 = vmatprep.subr.mxu0 0.0
    %1354 = vmatpush1.msra.mxu0 0.0
    %1355 = vmatprep.subr.mxu0 0.0
    %1356 = vmatpush1.msra.mxu0 0.0
    %1357 = vmatprep.subr.mxu0 0.0
    %1358 = vmatpush1.msra.mxu0 0.0
    %1359 = vmatprep.subr.mxu0 0.0
    %1360 = vmatpush1.msra.mxu0 0.0
    %1361 = vmatprep.subr.mxu0 0.0
    %1362 = vmatpush1.msra.mxu0 0.0
    %1363 = vmatprep.subr.mxu0 0.0
    %1364 = vmatpush1.msra.mxu0 0.0
    %1365 = vmatprep.subr.mxu0 0.0
    %1366 = vmatpush1.msra.mxu0 0.0
    %1367 = vmatprep.subr.mxu0 0.0
    %1368 = vmatpush1.msra.mxu0 0.0
    %1369 = vmatprep.subr.mxu0 0.0
    %1370 = vmatpush1.msra.mxu0 0.0
    %1371 = vmatprep.subr.mxu0 0.0
    %1372 = vmatpush1.msra.mxu0 0.0
    %1373 = vmatprep.subr.mxu0 0.0
    %1374 = vmatpush1.msra.mxu0 0.0
    %1375 = vmatprep.subr.mxu0 0.0
    %1376 = vmatpush1.msra.mxu0 0.0
    %1377 = vmatprep.subr.mxu0 0.0
    %1378 = vmatpush1.msra.mxu0 0.0
    %1379 = vmatprep.subr.mxu0 0.0
    %1380 = vmatpush1.msra.mxu0 0.0
    %1381 = vmatprep.subr.mxu0 0.0
    %1382 = vmatpush1.msra.mxu0 0.0
    %1383 = vmatprep.subr.mxu0 0.0
    %1384 = vmatpush1.msra.mxu0 0.0
    %1385 = vmatprep.subr.mxu0 0.0
    %1386 = vmatpush1.msra.mxu0 0.0
    %1387 = vmatprep.subr.mxu0 0.0
    %1388 = vmatpush1.msra.mxu0 0.0
    %1389 = vmatprep.subr.mxu0 0.0
    %1390 = vmatpush1.msra.mxu0 0.0
    %1391 = vmatprep.subr.mxu0 0.0
    %1392 = vmatpush1.msra.mxu0 0.0
    %1393 = vmatprep.subr.mxu0 0.0
    %1394 = vmatpush1.msra.mxu0 0.0
    %1395 = vmatprep.subr.mxu0 0.0
    %1396 = vmatpush1.msra.mxu0 0.0
    %1397 = vmatprep.subr.mxu0 0.0
    %1398 = vmatpush1.msra.mxu0 0.0
    %1399 = vmatprep.subr.mxu0 0.0
    %1400 = vmatpush1.msra.mxu0 0.0
    %1401 = vmatprep.subr.mxu0 0.0
    %1402 = vmatpush1.msra.mxu0 0.0
    %1403 = vmatprep.subr.mxu0 0.0
    %1404 = vmatpush1.msra.mxu0 0.0
    %1405 = vmatprep.subr.mxu0 0.0
    %1406 = vmatpush1.msra.mxu0 0.0
    %1407 = vmatprep.subr.mxu0 0.0
    %1408 = vmatpush1.msra.mxu0 0.0
    %1409 = vmatprep.subr.mxu0 0.0
    %1410 = vmatpush1.msra.mxu0 0.0
    %1411 = vmatprep.mubr.f32.mxu0 0.0
    %1412 = vmatmul.mubr.f32.gmra.mrb[0].mxu0 %v1345
    %v1413 = vpop.f32.mrb[0].mxu0
    %v1414 = vadd.f32 0.0, %v1413
    %v1415 = vpop.f32.mrb[0].mxu0
    %1416 = vdwg.mxu0
    %1417 = vrot.lane.b32.xlu0 %v171, 40
    %v1418 = vpop.permute.xlu0 %1417
    %v1421 = vsel %vm177, %v1340, 0
    %1423 = vmatprep.subr.mxu0 0.0
    %1424 = vmatpush1.msra.mxu0 %v1418
    %1425 = vmatprep.subr.mxu0 0.0
    %1426 = vmatpush1.msra.mxu0 0.0
    %1427 = vmatprep.subr.mxu0 0.0
    %1428 = vmatpush1.msra.mxu0 0.0
    %1429 = vmatprep.subr.mxu0 0.0
    %1430 = vmatpush1.msra.mxu0 0.0
    %1431 = vmatprep.subr.mxu0 0.0
    %1432 = vmatpush1.msra.mxu0 0.0
    %1433 = vmatprep.subr.mxu0 0.0
    %1434 = vmatpush1.msra.mxu0 0.0
    %1435 = vmatprep.subr.mxu0 0.0
    %1436 = vmatpush1.msra.mxu0 0.0
    %1437 = vmatprep.subr.mxu0 0.0
    %1438 = vmatpush1.msra.mxu0 0.0
    %1439 = vmatprep.subr.mxu0 0.0
    %1440 = vmatpush1.msra.mxu0 0.0
    %1441 = vmatprep.subr.mxu0 0.0
    %1442 = vmatpush1.msra.mxu0 0.0
    %1443 = vmatprep.subr.mxu0 0.0
    %1444 = vmatpush1.msra.mxu0 0.0
    %1445 = vmatprep.subr.mxu0 0.0
    %1446 = vmatpush1.msra.mxu0 0.0
    %1447 = vmatprep.subr.mxu0 0.0
    %1448 = vmatpush1.msra.mxu0 0.0
    %1449 = vmatprep.subr.mxu0 0.0
    %1450 = vmatpush1.msra.mxu0 0.0
    %1451 = vmatprep.subr.mxu0 0.0
    %1452 = vmatpush1.msra.mxu0 0.0
    %1453 = vmatprep.subr.mxu0 0.0
    %1454 = vmatpush1.msra.mxu0 0.0
    %1455 = vmatprep.subr.mxu0 0.0
    %1456 = vmatpush1.msra.mxu0 0.0
    %1457 = vmatprep.subr.mxu0 0.0
    %1458 = vmatpush1.msra.mxu0 0.0
    %1459 = vmatprep.subr.mxu0 0.0
    %1460 = vmatpush1.msra.mxu0 0.0
    %1461 = vmatprep.subr.mxu0 0.0
    %1462 = vmatpush1.msra.mxu0 0.0
    %1463 = vmatprep.subr.mxu0 0.0
    %1464 = vmatpush1.msra.mxu0 0.0
    %1465 = vmatprep.subr.mxu0 0.0
    %1466 = vmatpush1.msra.mxu0 0.0
    %1467 = vmatprep.subr.mxu0 0.0
    %1468 = vmatpush1.msra.mxu0 0.0
    %1469 = vmatprep.subr.mxu0 0.0
    %1470 = vmatpush1.msra.mxu0 0.0
    %1471 = vmatprep.subr.mxu0 0.0
    %1472 = vmatpush1.msra.mxu0 0.0
    %1473 = vmatprep.subr.mxu0 0.0
    %1474 = vmatpush1.msra.mxu0 0.0
    %1475 = vmatprep.subr.mxu0 0.0
    %1476 = vmatpush1.msra.mxu0 0.0
    %1477 = vmatprep.subr.mxu0 0.0
    %1478 = vmatpush1.msra.mxu0 0.0
    %1479 = vmatprep.subr.mxu0 0.0
    %1480 = vmatpush1.msra.mxu0 0.0
    %1481 = vmatprep.subr.mxu0 0.0
    %1482 = vmatpush1.msra.mxu0 0.0
    %1483 = vmatprep.subr.mxu0 0.0
    %1484 = vmatpush1.msra.mxu0 0.0
    %1485 = vmatprep.subr.mxu0 0.0
    %1486 = vmatpush1.msra.mxu0 0.0
    %1487 = vmatprep.mubr.f32.mxu0 0.0
    %1488 = vmatmul.mubr.f32.gmra.mrb[0].mxu0 %v1421
    %v1489 = vpop.f32.mrb[0].mxu0
    %v1490 = vadd.f32 0.0, %v1489
    %v1491 = vpop.f32.mrb[0].mxu0
    %1492 = vdwg.mxu0
    %1495 = vrot.lane.b32.xlu0 %v754, 8
    %v1496 = vpop.permute.xlu0 %1495
    %1497 = vrot.lane.b32.xlu0 %v830, 8
    %v1498 = vpop.permute.xlu0 %1497
    %1503 = vrot.lane.b32.xlu0 %v1084, 16
    %v1504 = vpop.permute.xlu0 %1503
    %1505 = vrot.lane.b32.xlu0 %v1160, 16
    %v1506 = vpop.permute.xlu0 %1505
    %1511 = vrot.lane.b32.xlu0 %v1414, 24
    %v1512 = vpop.permute.xlu0 %1511
    %1513 = vrot.lane.b32.xlu0 %v1490, 24
    %v1514 = vpop.permute.xlu0 %1513
    %v1517 = vsel %vm177, %v424, %v1496
    %v1518 = vsel %vm177, %v500, %v1498
    %vm1519 = vcmask 130048
    %v1520 = vsel %vm1519, %v1517, %v1504
    %v1521 = vsel %vm1519, %v1518, %v1506
    %vm1522 = vcmask 195584
    %v1523 = vsel %vm1522, %v1520, %v1512
    %v1524 = vsel %vm1522, %v1521, %v1514
    %v1525 = vlaneseq
    %v1526 = vshrl.u32 %v1525, 7
    %v1527 = vsub.s32 0, %v1526
    %v1528 = vrot.slane %v79, %v1527
    %1533 = vrot.lane.b32.xlu0 %v59, 64
    %v1534 = vpop.permute.xlu0 %1533
    %1535 = vrot.lane.b32.xlu0 %v60, 64
    %v1536 = vpop.permute.xlu0 %1535
    %1537 = vrot.lane.b32.xlu0 %v61, 64
    %v1538 = vpop.permute.xlu0 %1537
    %1539 = vrot.lane.b32.xlu0 %v62, 64
    %v1540 = vpop.permute.xlu0 %1539
    %v1546 = vsel %vm92, %v1523, 0
    %v1549 = vsel %vm92, %v1524, 0
    %1551 = vmatprep.subr.mxu0 0.0
    %1552 = vmatpush1.msra.mxu0 %v1534
    %1553 = vmatprep.subr.mxu0 0.0
    %1554 = vmatpush1.msra.mxu0 %v1536
    %1555 = vmatprep.subr.mxu0 0.0
    %1556 = vmatpush1.msra.mxu0 %v1538
    %1557 = vmatprep.subr.mxu0 0.0
    %1558 = vmatpush1.msra.mxu0 %v1540
    %1559 = vmatprep.subr.mxu0 0.0
    %1560 = vmatpush1.msra.mxu0 0.0
    %1561 = vmatprep.subr.mxu0 0.0
    %1562 = vmatpush1.msra.mxu0 0.0
    %1563 = vmatprep.subr.mxu0 0.0
    %1564 = vmatpush1.msra.mxu0 0.0
    %1565 = vmatprep.subr.mxu0 0.0
    %1566 = vmatpush1.msra.mxu0 0.0
    %1567 = vmatprep.subr.mxu0 0.0
    %1568 = vmatpush1.msra.mxu0 0.0
    %1569 = vmatprep.subr.mxu0 0.0
    %1570 = vmatpush1.msra.mxu0 0.0
    %1571 = vmatprep.subr.mxu0 0.0
    %1572 = vmatpush1.msra.mxu0 0.0
    %1573 = vmatprep.subr.mxu0 0.0
    %1574 = vmatpush1.msra.mxu0 0.0
    %1575 = vmatprep.subr.mxu0 0.0
    %1576 = vmatpush1.msra.mxu0 0.0
    %1577 = vmatprep.subr.mxu0 0.0
    %1578 = vmatpush1.msra.mxu0 0.0
    %1579 = vmatprep.subr.mxu0 0.0
    %1580 = vmatpush1.msra.mxu0 0.0
    %1581 = vmatprep.subr.mxu0 0.0
    %1582 = vmatpush1.msra.mxu0 0.0
    %1583 = vmatprep.subr.mxu0 0.0
    %1584 = vmatpush1.msra.mxu0 0.0
    %1585 = vmatprep.subr.mxu0 0.0
    %1586 = vmatpush1.msra.mxu0 0.0
    %1587 = vmatprep.subr.mxu0 0.0
    %1588 = vmatpush1.msra.mxu0 0.0
    %1589 = vmatprep.subr.mxu0 0.0
    %1590 = vmatpush1.msra.mxu0 0.0
    %1591 = vmatprep.subr.mxu0 0.0
    %1592 = vmatpush1.msra.mxu0 0.0
    %1593 = vmatprep.subr.mxu0 0.0
    %1594 = vmatpush1.msra.mxu0 0.0
    %1595 = vmatprep.subr.mxu0 0.0
    %1596 = vmatpush1.msra.mxu0 0.0
    %1597 = vmatprep.subr.mxu0 0.0
    %1598 = vmatpush1.msra.mxu0 0.0
    %1599 = vmatprep.subr.mxu0 0.0
    %1600 = vmatpush1.msra.mxu0 0.0
    %1601 = vmatprep.subr.mxu0 0.0
    %1602 = vmatpush1.msra.mxu0 0.0
    %1603 = vmatprep.subr.mxu0 0.0
    %1604 = vmatpush1.msra.mxu0 0.0
    %1605 = vmatprep.subr.mxu0 0.0
    %1606 = vmatpush1.msra.mxu0 0.0
    %1607 = vmatprep.subr.mxu0 0.0
    %1608 = vmatpush1.msra.mxu0 0.0
    %1609 = vmatprep.subr.mxu0 0.0
    %1610 = vmatpush1.msra.mxu0 0.0
    %1611 = vmatprep.subr.mxu0 0.0
    %1612 = vmatpush1.msra.mxu0 0.0
    %1613 = vmatprep.subr.mxu0 0.0
    %1614 = vmatpush1.msra.mxu0 0.0
    %1615 = vmatprep.mubr.f32.mxu0 0.0
    %1616 = vmatmul.mubr.f32.gmra.mrb[0].mxu0 %v1546
    %v1617 = vpop.f32.mrb[0].mxu0
    %v1618 = vadd.f32 %v1528, %v1617
    %v1619 = vpop.f32.mrb[0].mxu0
    %1620 = vmatprep.mubr.f32.mxu0 0.0
    %1621 = vmatmul.mubr.f32.gmra.mrb[0].mxu0 %v1549
    %v1622 = vpop.f32.mrb[0].mxu0
    %v1623 = vadd.f32 %v1528, %v1622
    %v1624 = vpop.f32.mrb[0].mxu0
    %1625 = vdwg.mxu0
    %v1626 = vadd.f32 %v49, %v1618
    %v1627 = vadd.f32 %v50, %v1623
    %v1628 = vsel %vm92, %v1626, 0.0
    %1629 = vadd.xlane.f32.xlu0 %v1628
    %v1630 = vpop.xlane.xlu0 %1629
    %v1631 = vsel %vm92, %v1627, 0.0
    %1632 = vadd.xlane.f32.xlu0 %v1631
    %v1633 = vpop.xlane.xlu0 %1632
    %v1634 = vrcp.pop 32.0
    %v1635 = vmul.f32 %v1630, %v1634
    %v1636 = vmul.f32 %v1633, %v1634
    %v1637 = vsub.f32 %v1626, %v1635
    %v1638 = vsub.f32 %v1627, %v1636
    %v1639 = vmul.f32 %v1637, %v1637
    %v1640 = vmul.f32 %v1638, %v1638
    %v1641 = vsel %vm92, %v1639, 0.0
    %1642 = vadd.xlane.f32.xlu0 %v1641
    %v1643 = vpop.xlane.xlu0 %1642
    %v1644 = vsel %vm92, %v1640, 0.0
    %1645 = vadd.xlane.f32.xlu0 %v1644
    %v1646 = vpop.xlane.xlu0 %1645
    %v1647 = vmul.f32 %v1643, %v1634
    %v1648 = vmul.f32 %v1646, %v1634
    %v1649 = vadd.f32 %v1647, 1e-05
    %v1650 = vadd.f32 %v1648, 1e-05
    %v1651 = vrsqrt.pop %v1649
    %v1652 = vrsqrt.pop %v1650
    %v1653 = vmul.f32 %v1637, %v1651
    %v1654 = vmul.f32 %v1638, %v1652
    %v1655 = vlaneseq
    %v1656 = vshrl.u32 %v1655, 7
    %v1657 = vsub.s32 0, %v1656
    %v1658 = vrot.slane %v82, %v1657
    %v1659 = vmul.f32 %v1653, %v1658
    %v1660 = vmul.f32 %v1654, %v1658
    %v1661 = vlaneseq
    %v1662 = vshrl.u32 %v1661, 7
    %v1663 = vsub.s32 0, %v1662
    %v1664 = vrot.slane %v83, %v1663
    %v1665 = vadd.f32 %v1659, %v1664
    %v1666 = vadd.f32 %v1660, %v1664
    %v1667 = vlaneseq
    %v1668 = vshrl.u32 %v1667, 7
    %v1669 = vsub.s32 0, %v1668
    %v1670 = vrot.slane %v78, %v1669
    %1675 = vrot.lane.b32.xlu0 %v55, 32
    %v1676 = vpop.permute.xlu0 %1675
    %1677 = vrot.lane.b32.xlu0 %v56, 32
    %v1678 = vpop.permute.xlu0 %1677
    %1679 = vrot.lane.b32.xlu0 %v57, 32
    %v1680 = vpop.permute.xlu0 %1679
    %1681 = vrot.lane.b32.xlu0 %v58, 32
    %v1682 = vpop.permute.xlu0 %1681
    %v1688 = vsel %vm92, %v1665, 0
    %v1691 = vsel %vm92, %v1666, 0
    %1693 = vmatprep.subr.mxu0 0.0
    %1694 = vmatpush1.msra.mxu0 %v1676
    %1695 = vmatprep.subr.mxu0 0.0
    %1696 = vmatpush1.msra.mxu0 %v1678
    %1697 = vmatprep.subr.mxu0 0.0
    %1698 = vmatpush1.msra.mxu0 %v1680
    %1699 = vmatprep.subr.mxu0 0.0
    %1700 = vmatpush1.msra.mxu0 %v1682
    %1701 = vmatprep.subr.mxu0 0.0
    %1702 = vmatpush1.msra.mxu0 0.0
    %1703 = vmatprep.subr.mxu0 0.0
    %1704 = vmatpush1.msra.mxu0 0.0
    %1705 = vmatprep.subr.mxu0 0.0
    %1706 = vmatpush1.msra.mxu0 0.0
    %1707 = vmatprep.subr.mxu0 0.0
    %1708 = vmatpush1.msra.mxu0 0.0
    %1709 = vmatprep.subr.mxu0 0.0
    %1710 = vmatpush1.msra.mxu0 0.0
    %1711 = vmatprep.subr.mxu0 0.0
    %1712 = vmatpush1.msra.mxu0 0.0
    %1713 = vmatprep.subr.mxu0 0.0
    %1714 = vmatpush1.msra.mxu0 0.0
    %1715 = vmatprep.subr.mxu0 0.0
    %1716 = vmatpush1.msra.mxu0 0.0
    %1717 = vmatprep.subr.mxu0 0.0
    %1718 = vmatpush1.msra.mxu0 0.0
    %1719 = vmatprep.subr.mxu0 0.0
    %1720 = vmatpush1.msra.mxu0 0.0
    %1721 = vmatprep.subr.mxu0 0.0
    %1722 = vmatpush1.msra.mxu0 0.0
    %1723 = vmatprep.subr.mxu0 0.0
    %1724 = vmatpush1.msra.mxu0 0.0
    %1725 = vmatprep.subr.mxu0 0.0
    %1726 = vmatpush1.msra.mxu0 0.0
    %1727 = vmatprep.subr.mxu0 0.0
    %1728 = vmatpush1.msra.mxu0 0.0
    %1729 = vmatprep.subr.mxu0 0.0
    %1730 = vmatpush1.msra.mxu0 0.0
    %1731 = vmatprep.subr.mxu0 0.0
    %1732 = vmatpush1.msra.mxu0 0.0
    %1733 = vmatprep.subr.mxu0 0.0
    %1734 = vmatpush1.msra.mxu0 0.0
    %1735 = vmatprep.subr.mxu0 0.0
    %1736 = vmatpush1.msra.mxu0 0.0
    %1737 = vmatprep.subr.mxu0 0.0
    %1738 = vmatpush1.msra.mxu0 0.0
    %1739 = vmatprep.subr.mxu0 0.0
    %1740 = vmatpush1.msra.mxu0 0.0
    %1741 = vmatprep.subr.mxu0 0.0
    %1742 = vmatpush1.msra.mxu0 0.0
    %1743 = vmatprep.subr.mxu0 0.0
    %1744 = vmatpush1.msra.mxu0 0.0
    %1745 = vmatprep.subr.mxu0 0.0
    %1746 = vmatpush1.msra.mxu0 0.0
    %1747 = vmatprep.subr.mxu0 0.0
    %1748 = vmatpush1.msra.mxu0 0.0
    %1749 = vmatprep.subr.mxu0 0.0
    %1750 = vmatpush1.msra.mxu0 0.0
    %1751 = vmatprep.subr.mxu0 0.0
    %1752 = vmatpush1.msra.mxu0 0.0
    %1753 = vmatprep.subr.mxu0 0.0
    %1754 = vmatpush1.msra.mxu0 0.0
    %1755 = vmatprep.subr.mxu0 0.0
    %1756 = vmatpush1.msra.mxu0 0.0
    %1757 = vmatprep.mubr.f32.mxu0 0.0
    %1758 = vmatmul.mubr.f32.gmra.mrb[0].mxu0 %v1688
    %v1759 = vpop.f32.mrb[0].mxu0
    %v1760 = vadd.f32 %v1670, %v1759
    %v1761 = vpop.f32.mrb[0].mxu0
    %1762 = vmatprep.mubr.f32.mxu0 0.0
    %1763 = vmatmul.mubr.f32.gmra.mrb[0].mxu0 %v1691
    %v1764 = vpop.f32.mrb[0].mxu0
    %v1765 = vadd.f32 %v1670, %v1764
    %v1766 = vpop.f32.mrb[0].mxu0
    %1767 = vdwg.mxu0
    %v1768 = vlaneseq
    %v1769 = vshrl.u32 %v1768, 7
    %v1770 = vsub.s32 0, %v1769
    %v1771 = vrot.slane %v76, %v1770
    %v1773 = vsel %vm92, %v51, 0
    %v1776 = vsel %vm92, %v52, 0
    %1778 = vmatprep.subr.mxu0 0.0
    %1779 = vmatpush1.msra.mxu0 %v59
    %1780 = vmatprep.subr.mxu0 0.0
    %1781 = vmatpush1.msra.mxu0 %v60
    %1782 = vmatprep.subr.mxu0 0.0
    %1783 = vmatpush1.msra.mxu0 %v61
    %1784 = vmatprep.subr.mxu0 0.0
    %1785 = vmatpush1.msra.mxu0 %v62
    %1786 = vmatprep.subr.mxu0 0.0
    %1787 = vmatpush1.msra.mxu0 0.0
    %1788 = vmatprep.subr.mxu0 0.0
    %1789 = vmatpush1.msra.mxu0 0.0
    %1790 = vmatprep.subr.mxu0 0.0
    %1791 = vmatpush1.msra.mxu0 0.0
    %1792 = vmatprep.subr.mxu0 0.0
    %1793 = vmatpush1.msra.mxu0 0.0
    %1794 = vmatprep.subr.mxu0 0.0
    %1795 = vmatpush1.msra.mxu0 0.0
    %1796 = vmatprep.subr.mxu0 0.0
    %1797 = vmatpush1.msra.mxu0 0.0
    %1798 = vmatprep.subr.mxu0 0.0
    %1799 = vmatpush1.msra.mxu0 0.0
    %1800 = vmatprep.subr.mxu0 0.0
    %1801 = vmatpush1.msra.mxu0 0.0
    %1802 = vmatprep.subr.mxu0 0.0
    %1803 = vmatpush1.msra.mxu0 0.0
    %1804 = vmatprep.subr.mxu0 0.0
    %1805 = vmatpush1.msra.mxu0 0.0
    %1806 = vmatprep.subr.mxu0 0.0
    %1807 = vmatpush1.msra.mxu0 0.0
    %1808 = vmatprep.subr.mxu0 0.0
    %1809 = vmatpush1.msra.mxu0 0.0
    %1810 = vmatprep.subr.mxu0 0.0
    %1811 = vmatpush1.msra.mxu0 0.0
    %1812 = vmatprep.subr.mxu0 0.0
    %1813 = vmatpush1.msra.mxu0 0.0
    %1814 = vmatprep.subr.mxu0 0.0
    %1815 = vmatpush1.msra.mxu0 0.0
    %1816 = vmatprep.subr.mxu0 0.0
    %1817 = vmatpush1.msra.mxu0 0.0
    %1818 = vmatprep.subr.mxu0 0.0
    %1819 = vmatpush1.msra.mxu0 0.0
    %1820 = vmatprep.subr.mxu0 0.0
    %1821 = vmatpush1.msra.mxu0 0.0
    %1822 = vmatprep.subr.mxu0 0.0
    %1823 = vmatpush1.msra.mxu0 0.0
    %1824 = vmatprep.subr.mxu0 0.0
    %1825 = vmatpush1.msra.mxu0 0.0
    %1826 = vmatprep.subr.mxu0 0.0
    %1827 = vmatpush1.msra.mxu0 0.0
    %1828 = vmatprep.subr.mxu0 0.0
    %1829 = vmatpush1.msra.mxu0 0.0
    %1830 = vmatprep.subr.mxu0 0.0
    %1831 = vmatpush1.msra.mxu0 0.0
    %1832 = vmatprep.subr.mxu0 0.0
    %1833 = vmatpush1.msra.mxu0 0.0
    %1834 = vmatprep.subr.mxu0 0.0
    %1835 = vmatpush1.msra.mxu0 0.0
    %1836 = vmatprep.subr.mxu0 0.0
    %1837 = vmatpush1.msra.mxu0 0.0
    %1838 = vmatprep.subr.mxu0 0.0
    %1839 = vmatpush1.msra.mxu0 0.0
    %1840 = vmatprep.subr.mxu0 0.0
    %1841 = vmatpush1.msra.mxu0 0.0
    %1842 = vmatprep.mubr.f32.mxu0 0.0
    %1843 = vmatmul.mubr.f32.gmra.mrb[0].mxu0 %v1773
    %v1844 = vpop.f32.mrb[0].mxu0
    %v1845 = vadd.f32 %v1771, %v1844
    %v1846 = vpop.f32.mrb[0].mxu0
    %1847 = vmatprep.mubr.f32.mxu0 0.0
    %1848 = vmatmul.mubr.f32.gmra.mrb[0].mxu0 %v1776
    %v1849 = vpop.f32.mrb[0].mxu0
    %v1850 = vadd.f32 %v1771, %v1849
    %v1851 = vpop.f32.mrb[0].mxu0
    %1852 = vdwg.mxu0
    %v1854 = vsel %vm177, %v1760, 0
    %v1857 = vsel %vm177, %v1845, 0
    %1859 = vmatprep.subr.mxu0 0.0
    %1860 = vmatpush1.xpose.msra.mxu0 %v1857
    %1861 = vmatprep.subr.mxu0 0.0
    %1862 = vmatpush1.xpose.msra.mxu0 0.0
    %1863 = vmatprep.subr.mxu0 0.0
    %1864 = vmatpush1.xpose.msra.mxu0 0.0
    %1865 = vmatprep.subr.mxu0 0.0
    %1866 = vmatpush1.xpose.msra.mxu0 0.0
    %1867 = vmatprep.subr.mxu0 0.0
    %1868 = vmatpush1.xpose.msra.mxu0 0.0
    %1869 = vmatprep.subr.mxu0 0.0
    %1870 = vmatpush1.xpose.msra.mxu0 0.0
    %1871 = vmatprep.subr.mxu0 0.0
    %1872 = vmatpush1.xpose.msra.mxu0 0.0
    %1873 = vmatprep.subr.mxu0 0.0
    %1874 = vmatpush1.xpose.msra.mxu0 0.0
    %1875 = vmatprep.subr.mxu0 0.0
    %1876 = vmatpush1.xpose.msra.mxu0 0.0
    %1877 = vmatprep.subr.mxu0 0.0
    %1878 = vmatpush1.xpose.msra.mxu0 0.0
    %1879 = vmatprep.subr.mxu0 0.0
    %1880 = vmatpush1.xpose.msra.mxu0 0.0
    %1881 = vmatprep.subr.mxu0 0.0
    %1882 = vmatpush1.xpose.msra.mxu0 0.0
    %1883 = vmatprep.subr.mxu0 0.0
    %1884 = vmatpush1.xpose.msra.mxu0 0.0
    %1885 = vmatprep.subr.mxu0 0.0
    %1886 = vmatpush1.xpose.msra.mxu0 0.0
    %1887 = vmatprep.subr.mxu0 0.0
    %1888 = vmatpush1.xpose.msra.mxu0 0.0
    %1889 = vmatprep.subr.mxu0 0.0
    %1890 = vmatpush1.xpose.msra.mxu0 0.0
    %1891 = vmatprep.subr.mxu0 0.0
    %1892 = vmatpush1.xpose.msra.mxu0 0.0
    %1893 = vmatprep.subr.mxu0 0.0
    %1894 = vmatpush1.xpose.msra.mxu0 0.0
    %1895 = vmatprep.subr.mxu0 0.0
    %1896 = vmatpush1.xpose.msra.mxu0 0.0
    %1897 = vmatprep.subr.mxu0 0.0
    %1898 = vmatpush1.xpose.msra.mxu0 0.0
    %1899 = vmatprep.subr.mxu0 0.0
    %1900 = vmatpush1.xpose.msra.mxu0 0.0
    %1901 = vmatprep.subr.mxu0 0.0
    %1902 = vmatpush1.xpose.msra.mxu0 0.0
    %1903 = vmatprep.subr.mxu0 0.0
    %1904 = vmatpush1.xpose.msra.mxu0 0.0
    %1905 = vmatprep.subr.mxu0 0.0
    %1906 = vmatpush1.xpose.msra.mxu0 0.0
    %1907 = vmatprep.subr.mxu0 0.0
    %1908 = vmatpush1.xpose.msra.mxu0 0.0
    %1909 = vmatprep.subr.mxu0 0.0
    %1910 = vmatpush1.xpose.msra.mxu0 0.0
    %1911 = vmatprep.subr.mxu0 0.0
    %1912 = vmatpush1.xpose.msra.mxu0 0.0
    %1913 = vmatprep.subr.mxu0 0.0
    %1914 = vmatpush1.xpose.msra.mxu0 0.0
    %1915 = vmatprep.subr.mxu0 0.0
    %1916 = vmatpush1.xpose.msra.mxu0 0.0
    %1917 = vmatprep.subr.mxu0 0.0
    %1918 = vmatpush1.xpose.msra.mxu0 0.0
    %1919 = vmatprep.subr.mxu0 0.0
    %1920 = vmatpush1.xpose.msra.mxu0 0.0
    %1921 = vmatprep.subr.mxu0 0.0
    %1922 = vmatpush1.xpose.msra.mxu0 0.0
    %1923 = vmatprep.mubr.f32.mxu0 0.0
    %1924 = vmatmul.mubr.f32.gmra.mrb[0].mxu0 %v1854
    %v1925 = vpop.f32.mrb[0].mxu0
    %v1926 = vadd.f32 %v54, %v1925
    %v1927 = vpop.f32.mrb[0].mxu0
    %1928 = vdwg.mxu0
    %v1930 = vsel %vm177, %v1765, 0
    %v1933 = vsel %vm177, %v1850, 0
    %1935 = vmatprep.subr.mxu0 0.0
    %1936 = vmatpush1.xpose.msra.mxu0 %v1933
    %1937 = vmatprep.subr.mxu0 0.0
    %1938 = vmatpush1.xpose.msra.mxu0 0.0
    %1939 = vmatprep.subr.mxu0 0.0
    %1940 = vmatpush1.xpose.msra.mxu0 0.0
    %1941 = vmatprep.subr.mxu0 0.0
    %1942 = vmatpush1.xpose.msra.mxu0 0.0
    %1943 = vmatprep.subr.mxu0 0.0
    %1944 = vmatpush1.xpose.msra.mxu0 0.0
    %1945 = vmatprep.subr.mxu0 0.0
    %1946 = vmatpush1.xpose.msra.mxu0 0.0
    %1947 = vmatprep.subr.mxu0 0.0
    %1948 = vmatpush1.xpose.msra.mxu0 0.0
    %1949 = vmatprep.subr.mxu0 0.0
    %1950 = vmatpush1.xpose.msra.mxu0 0.0
    %1951 = vmatprep.subr.mxu0 0.0
    %1952 = vmatpush1.xpose.msra.mxu0 0.0
    %1953 = vmatprep.subr.mxu0 0.0
    %1954 = vmatpush1.xpose.msra.mxu0 0.0
    %1955 = vmatprep.subr.mxu0 0.0
    %1956 = vmatpush1.xpose.msra.mxu0 0.0
    %1957 = vmatprep.subr.mxu0 0.0
    %1958 = vmatpush1.xpose.msra.mxu0 0.0
    %1959 = vmatprep.subr.mxu0 0.0
    %1960 = vmatpush1.xpose.msra.mxu0 0.0
    %1961 = vmatprep.subr.mxu0 0.0
    %1962 = vmatpush1.xpose.msra.mxu0 0.0
    %1963 = vmatprep.subr.mxu0 0.0
    %1964 = vmatpush1.xpose.msra.mxu0 0.0
    %1965 = vmatprep.subr.mxu0 0.0
    %1966 = vmatpush1.xpose.msra.mxu0 0.0
    %1967 = vmatprep.subr.mxu0 0.0
    %1968 = vmatpush1.xpose.msra.mxu0 0.0
    %1969 = vmatprep.subr.mxu0 0.0
    %1970 = vmatpush1.xpose.msra.mxu0 0.0
    %1971 = vmatprep.subr.mxu0 0.0
    %1972 = vmatpush1.xpose.msra.mxu0 0.0
    %1973 = vmatprep.subr.mxu0 0.0
    %1974 = vmatpush1.xpose.msra.mxu0 0.0
    %1975 = vmatprep.subr.mxu0 0.0
    %1976 = vmatpush1.xpose.msra.mxu0 0.0
    %1977 = vmatprep.subr.mxu0 0.0
    %1978 = vmatpush1.xpose.msra.mxu0 0.0
    %1979 = vmatprep.subr.mxu0 0.0
    %1980 = vmatpush1.xpose.msra.mxu0 0.0
    %1981 = vmatprep.subr.mxu0 0.0
    %1982 = vmatpush1.xpose.msra.mxu0 0.0
    %1983 = vmatprep.subr.mxu0 0.0
    %1984 = vmatpush1.xpose.msra.mxu0 0.0
    %1985 = vmatprep.subr.mxu0 0.0
    %1986 = vmatpush1.xpose.msra.mxu0 0.0
    %1987 = vmatprep.subr.mxu0 0.0
    %1988 = vmatpush1.xpose.msra.mxu0 0.0
    %1989 = vmatprep.subr.mxu0 0.0
    %1990 = vmatpush1.xpose.msra.mxu0 0.0
    %1991 = vmatprep.subr.mxu0 0.0
    %1992 = vmatpush1.xpose.msra.mxu0 0.0
    %1993 = vmatprep.subr.mxu0 0.0
    %1994 = vmatpush1.xpose.msra.mxu0 0.0
    %1995 = vmatprep.subr.mxu0 0.0
    %1996 = vmatpush1.xpose.msra.mxu0 0.0
    %1997 = vmatprep.subr.mxu0 0.0
    %1998 = vmatpush1.xpose.msra.mxu0 0.0
    %1999 = vmatprep.mubr.f32.mxu0 0.0
    %2000 = vmatmul.mubr.f32.gmra.mrb[0].mxu0 %v1930
    %v2001 = vpop.f32.mrb[0].mxu0
    %v2002 = vadd.f32 %v54, %v2001
    %v2003 = vpop.f32.mrb[0].mxu0
    %2004 = vdwg.mxu0
    %v2005 = vsel %vm177, %v1926, -inf
    %2006 = vmax.xlane.f32.xlu0 %v2005
    %v2007 = vpop.xlane.xlu0 %2006
    %v2008 = vsel %vm177, %v2002, -inf
    %2009 = vmax.xlane.f32.xlu0 %v2008
    %v2010 = vpop.xlane.xlu0 %2009
    %v2011 = vsub.f32 %v1926, %v2007
    %v2012 = vsub.f32 %v2002, %v2010
    %v2013 = vmul.f32 %v2011, 1.442695
    %v2014 = vpow.pop %v2013
    %v2015 = vmul.f32 %v2012, 1.442695
    %v2016 = vpow.pop %v2015
    %v2017 = vsel %vm177, %v2014, 0.0
    %2018 = vadd.xlane.f32.xlu0 %v2017
    %v2019 = vpop.xlane.xlu0 %2018
    %v2020 = vsel %vm177, %v2016, 0.0
    %2021 = vadd.xlane.f32.xlu0 %v2020
    %v2022 = vpop.xlane.xlu0 %2021
    %v2023 = vrcp.pop %v2019
    %v2024 = vrcp.pop %v2022
    %v2025 = vmul.f32 %v2014, %v2023
    %v2026 = vmul.f32 %v2016, %v2024
    %2027 = vrot.lane.b32.xlu0 %v1845, 96
    %v2028 = vpop.permute.xlu0 %2027
    %v2031 = vsel %vm177, %v2025, 0
    %2033 = vmatprep.subr.mxu0 0.0
    %2034 = vmatpush1.msra.mxu0 %v2028
    %2035 = vmatprep.subr.mxu0 0.0
    %2036 = vmatpush1.msra.mxu0 0.0
    %2037 = vmatprep.subr.mxu0 0.0
    %2038 = vmatpush1.msra.mxu0 0.0
    %2039 = vmatprep.subr.mxu0 0.0
    %2040 = vmatpush1.msra.mxu0 0.0
    %2041 = vmatprep.subr.mxu0 0.0
    %2042 = vmatpush1.msra.mxu0 0.0
    %2043 = vmatprep.subr.mxu0 0.0
    %2044 = vmatpush1.msra.mxu0 0.0
    %2045 = vmatprep.subr.mxu0 0.0
    %2046 = vmatpush1.msra.mxu0 0.0
    %2047 = vmatprep.subr.mxu0 0.0
    %2048 = vmatpush1.msra.mxu0 0.0
    %2049 = vmatprep.subr.mxu0 0.0
    %2050 = vmatpush1.msra.mxu0 0.0
    %2051 = vmatprep.subr.mxu0 0.0
    %2052 = vmatpush1.msra.mxu0 0.0
    %2053 = vmatprep.subr.mxu0 0.0
    %2054 = vmatpush1.msra.mxu0 0.0
    %2055 = vmatprep.subr.mxu0 0.0
    %2056 = vmatpush1.msra.mxu0 0.0
    %2057 = vmatprep.subr.mxu0 0.0
    %2058 = vmatpush1.msra.mxu0 0.0
    %2059 = vmatprep.subr.mxu0 0.0
    %2060 = vmatpush1.msra.mxu0 0.0
    %2061 = vmatprep.subr.mxu0 0.0
    %2062 = vmatpush1.msra.mxu0 0.0
    %2063 = vmatprep.subr.mxu0 0.0
    %2064 = vmatpush1.msra.mxu0 0.0
    %2065 = vmatprep.subr.mxu0 0.0
    %2066 = vmatpush1.msra.mxu0 0.0
    %2067 = vmatprep.subr.mxu0 0.0
    %2068 = vmatpush1.msra.mxu0 0.0
    %2069 = vmatprep.subr.mxu0 0.0
    %2070 = vmatpush1.msra.mxu0 0.0
    %2071 = vmatprep.subr.mxu0 0.0
    %2072 = vmatpush1.msra.mxu0 0.0
    %2073 = vmatprep.subr.mxu0 0.0
    %2074 = vmatpush1.msra.mxu0 0.0
    %2075 = vmatprep.subr.mxu0 0.0
    %2076 = vmatpush1.msra.mxu0 0.0
    %2077 = vmatprep.subr.mxu0 0.0
    %2078 = vmatpush1.msra.mxu0 0.0
    %2079 = vmatprep.subr.mxu0 0.0
    %2080 = vmatpush1.msra.mxu0 0.0
    %2081 = vmatprep.subr.mxu0 0.0
    %2082 = vmatpush1.msra.mxu0 0.0
    %2083 = vmatprep.subr.mxu0 0.0
    %2084 = vmatpush1.msra.mxu0 0.0
    %2085 = vmatprep.subr.mxu0 0.0
    %2086 = vmatpush1.msra.mxu0 0.0
    %2087 = vmatprep.subr.mxu0 0.0
    %2088 = vmatpush1.msra.mxu0 0.0
    %2089 = vmatprep.subr.mxu0 0.0
    %2090 = vmatpush1.msra.mxu0 0.0
    %2091 = vmatprep.subr.mxu0 0.0
    %2092 = vmatpush1.msra.mxu0 0.0
    %2093 = vmatprep.subr.mxu0 0.0
    %2094 = vmatpush1.msra.mxu0 0.0
    %2095 = vmatprep.subr.mxu0 0.0
    %2096 = vmatpush1.msra.mxu0 0.0
    %2097 = vmatprep.mubr.f32.mxu0 0.0
    %2098 = vmatmul.mubr.f32.gmra.mrb[0].mxu0 %v2031
    %v2099 = vpop.f32.mrb[0].mxu0
    %v2100 = vadd.f32 0.0, %v2099
    %v2101 = vpop.f32.mrb[0].mxu0
    %2102 = vdwg.mxu0
    %2103 = vrot.lane.b32.xlu0 %v1850, 96
    %v2104 = vpop.permute.xlu0 %2103
    %v2107 = vsel %vm177, %v2026, 0
    %2109 = vmatprep.subr.mxu0 0.0
    %2110 = vmatpush1.msra.mxu0 %v2104
    %2111 = vmatprep.subr.mxu0 0.0
    %2112 = vmatpush1.msra.mxu0 0.0
    %2113 = vmatprep.subr.mxu0 0.0
    %2114 = vmatpush1.msra.mxu0 0.0
    %2115 = vmatprep.subr.mxu0 0.0
    %2116 = vmatpush1.msra.mxu0 0.0
    %2117 = vmatprep.subr.mxu0 0.0
    %2118 = vmatpush1.msra.mxu0 0.0
    %2119 = vmatprep.subr.mxu0 0.0
    %2120 = vmatpush1.msra.mxu0 0.0
    %2121 = vmatprep.subr.mxu0 0.0
    %2122 = vmatpush1.msra.mxu0 0.0
    %2123 = vmatprep.subr.mxu0 0.0
    %2124 = vmatpush1.msra.mxu0 0.0
    %2125 = vmatprep.subr.mxu0 0.0
    %2126 = vmatpush1.msra.mxu0 0.0
    %2127 = vmatprep.subr.mxu0 0.0
    %2128 = vmatpush1.msra.mxu0 0.0
    %2129 = vmatprep.subr.mxu0 0.0
    %2130 = vmatpush1.msra.mxu0 0.0
    %2131 = vmatprep.subr.mxu0 0.0
    %2132 = vmatpush1.msra.mxu0 0.0
    %2133 = vmatprep.subr.mxu0 0.0
    %2134 = vmatpush1.msra.mxu0 0.0
    %2135 = vmatprep.subr.mxu0 0.0
    %2136 = vmatpush1.msra.mxu0 0.0
    %2137 = vmatprep.subr.mxu0 0.0
    %2138 = vmatpush1.msra.mxu0 0.0
    %2139 = vmatprep.subr.mxu0 0.0
    %2140 = vmatpush1.msra.mxu0 0.0
    %2141 = vmatprep.subr.mxu0 0.0
    %2142 = vmatpush1.msra.mxu0 0.0
    %2143 = vmatprep.subr.mxu0 0.0
    %2144 = vmatpush1.msra.mxu0 0.0
    %2145 = vmatprep.subr.mxu0 0.0
    %2146 = vmatpush1.msra.mxu0 0.0
    %2147 = vmatprep.subr.mxu0 0.0
    %2148 = vmatpush1.msra.mxu0 0.0
    %2149 = vmatprep.subr.mxu0 0.0
    %2150 = vmatpush1.msra.mxu0 0.0
    %2151 = vmatprep.subr.mxu0 0.0
    %2152 = vmatpush1.msra.mxu0 0.0
    %2153 = vmatprep.subr.mxu0 0.0
    %2154 = vmatpush1.msra.mxu0 0.0
    %2155 = vmatprep.subr.mxu0 0.0
    %2156 = vmatpush1.msra.mxu0 0.0
    %2157 = vmatprep.subr.mxu0 0.0
    %2158 = vmatpush1.msra.mxu0 0.0
    %2159 = vmatprep.subr.mxu0 0.0
    %2160 = vmatpush1.msra.mxu0 0.0
    %2161 = vmatprep.subr.mxu0 0.0
    %2162 = vmatpush1.msra.mxu0 0.0
    %2163 = vmatprep.subr.mxu0 0.0
    %2164 = vmatpush1.msra.mxu0 0.0
    %2165 = vmatprep.subr.mxu0 0.0
    %2166 = vmatpush1.msra.mxu0 0.0
    %2167 = vmatprep.subr.mxu0 0.0
    %2168 = vmatpush1.msra.mxu0 0.0
    %2169 = vmatprep.subr.mxu0 0.0
    %2170 = vmatpush1.msra.mxu0 0.0
    %2171 = vmatprep.subr.mxu0 0.0
    %2172 = vmatpush1.msra.mxu0 0.0
    %2173 = vmatprep.mubr.f32.mxu0 0.0
    %2174 = vmatmul.mubr.f32.gmra.mrb[0].mxu0 %v2107
    %v2175 = vpop.f32.mrb[0].mxu0
    %v2176 = vadd.f32 0.0, %v2175
    %v2177 = vpop.f32.mrb[0].mxu0
    %2178 = vdwg.mxu0
    %2179 = vrot.lane.b32.xlu0 %v1760, 120
    %v2180 = vpop.permute.xlu0 %2179
    %2181 = vrot.lane.b32.xlu0 %v1845, 120
    %v2182 = vpop.permute.xlu0 %2181
    %v2183 = vsel %vm177, %v2180, 0
    %v2185 = vsel %vm177, %v2182, 0
    %2187 = vmatprep.subr.mxu0 0.0
    %2188 = vmatpush1.xpose.msra.mxu0 %v2185
    %2189 = vmatprep.subr.mxu0 0.0
    %2190 = vmatpush1.xpose.msra.mxu0 0.0
    %2191 = vmatprep.subr.mxu0 0.0
    %2192 = vmatpush1.xpose.msra.mxu0 0.0
    %2193 = vmatprep.subr.mxu0 0.0
    %2194 = vmatpush1.xpose.msra.mxu0 0.0
    %2195 = vmatprep.subr.mxu0 0.0
    %2196 = vmatpush1.xpose.msra.mxu0 0.0
    %2197 = vmatprep.subr.mxu0 0.0
    %2198 = vmatpush1.xpose.msra.mxu0 0.0
    %2199 = vmatprep.subr.mxu0 0.0
    %2200 = vmatpush1.xpose.msra.mxu0 0.0
    %2201 = vmatprep.subr.mxu0 0.0
    %2202 = vmatpush1.xpose.msra.mxu0 0.0
    %2203 = vmatprep.subr.mxu0 0.0
    %2204 = vmatpush1.xpose.msra.mxu0 0.0
    %2205 = vmatprep.subr.mxu0 0.0
    %2206 = vmatpush1.xpose.msra.mxu0 0.0
    %2207 = vmatprep.subr.mxu0 0.0
    %2208 = vmatpush1.xpose.msra.mxu0 0.0
    %2209 = vmatprep.subr.mxu0 0.0
    %2210 = vmatpush1.xpose.msra.mxu0 0.0
    %2211 = vmatprep.subr.mxu0 0.0
    %2212 = vmatpush1.xpose.msra.mxu0 0.0
    %2213 = vmatprep.subr.mxu0 0.0
    %2214 = vmatpush1.xpose.msra.mxu0 0.0
    %2215 = vmatprep.subr.mxu0 0.0
    %2216 = vmatpush1.xpose.msra.mxu0 0.0
    %2217 = vmatprep.subr.mxu0 0.0
    %2218 = vmatpush1.xpose.msra.mxu0 0.0
    %2219 = vmatprep.subr.mxu0 0.0
    %2220 = vmatpush1.xpose.msra.mxu0 0.0
    %2221 = vmatprep.subr.mxu0 0.0
    %2222 = vmatpush1.xpose.msra.mxu0 0.0
    %2223 = vmatprep.subr.mxu0 0.0
    %2224 = vmatpush1.xpose.msra.mxu0 0.0
    %2225 = vmatprep.subr.mxu0 0.0
    %2226 = vmatpush1.xpose.msra.mxu0 0.0
    %2227 = vmatprep.subr.mxu0 0.0
    %2228 = vmatpush1.xpose.msra.mxu0 0.0
    %2229 = vmatprep.subr.mxu0 0.0
    %2230 = vmatpush1.xpose.msra.mxu0 0.0
    %2231 = vmatprep.subr.mxu0 0.0
    %2232 = vmatpush1.xpose.msra.mxu0 0.0
    %2233 = vmatprep.subr.mxu0 0.0
    %2234 = vmatpush1.xpose.msra.mxu0 0.0
    %2235 = vmatprep.subr.mxu0 0.0
    %2236 = vmatpush1.xpose.msra.mxu0 0.0
    %2237 = vmatprep.subr.mxu0 0.0
    %2238 = vmatpush1.xpose.msra.mxu0 0.0
    %2239 = vmatprep.subr.mxu0 0.0
    %2240 = vmatpush1.xpose.msra.mxu0 0.0
    %2241 = vmatprep.subr.mxu0 0.0
    %2242 = vmatpush1.xpose.msra.mxu0 0.0
    %2243 = vmatprep.subr.mxu0 0.0
    %2244 = vmatpush1.xpose.msra.mxu0 0.0
    %2245 = vmatprep.subr.mxu0 0.0
    %2246 = vmatpush1.xpose.msra.mxu0 0.0
    %2247 = vmatprep.subr.mxu0 0.0
    %2248 = vmatpush1.xpose.msra.mxu0 0.0
    %2249 = vmatprep.subr.mxu0 0.0
    %2250 = vmatpush1.xpose.msra.mxu0 0.0
    %2251 = vmatprep.mubr.f32.mxu0 0.0
    %2252 = vmatmul.mubr.f32.gmra.mrb[0].mxu0 %v2183
    %v2253 = vpop.f32.mrb[0].mxu0
    %v2254 = vadd.f32 %v54, %v2253
    %v2255 = vpop.f32.mrb[0].mxu0
    %2256 = vdwg.mxu0
    %2257 = vrot.lane.b32.xlu0 %v1765, 120
    %v2258 = vpop.permute.xlu0 %2257
    %2259 = vrot.lane.b32.xlu0 %v1850, 120
    %v2260 = vpop.permute.xlu0 %2259
    %v2261 = vsel %vm177, %v2258, 0
    %v2263 = vsel %vm177, %v2260, 0
    %2265 = vmatprep.subr.mxu0 0.0
    %2266 = vmatpush1.xpose.msra.mxu0 %v2263
    %2267 = vmatprep.subr.mxu0 0.0
    %2268 = vmatpush1.xpose.msra.mxu0 0.0
    %2269 = vmatprep.subr.mxu0 0.0
    %2270 = vmatpush1.xpose.msra.mxu0 0.0
    %2271 = vmatprep.subr.mxu0 0.0
    %2272 = vmatpush1.xpose.msra.mxu0 0.0
    %2273 = vmatprep.subr.mxu0 0.0
    %2274 = vmatpush1.xpose.msra.mxu0 0.0
    %2275 = vmatprep.subr.mxu0 0.0
    %2276 = vmatpush1.xpose.msra.mxu0 0.0
    %2277 = vmatprep.subr.mxu0 0.0
    %2278 = vmatpush1.xpose.msra.mxu0 0.0
    %2279 = vmatprep.subr.mxu0 0.0
    %2280 = vmatpush1.xpose.msra.mxu0 0.0
    %2281 = vmatprep.subr.mxu0 0.0
    %2282 = vmatpush1.xpose.msra.mxu0 0.0
    %2283 = vmatprep.subr.mxu0 0.0
    %2284 = vmatpush1.xpose.msra.mxu0 0.0
    %2285 = vmatprep.subr.mxu0 0.0
    %2286 = vmatpush1.xpose.msra.mxu0 0.0
    %2287 = vmatprep.subr.mxu0 0.0
    %2288 = vmatpush1.xpose.msra.mxu0 0.0
    %2289 = vmatprep.subr.mxu0 0.0
    %2290 = vmatpush1.xpose.msra.mxu0 0.0
    %2291 = vmatprep.subr.mxu0 0.0
    %2292 = vmatpush1.xpose.msra.mxu0 0.0
    %2293 = vmatprep.subr.mxu0 0.0
    %2294 = vmatpush1.xpose.msra.mxu0 0.0
    %2295 = vmatprep.subr.mxu0 0.0
    %2296 = vmatpush1.xpose.msra.mxu0 0.0
    %2297 = vmatprep.subr.mxu0 0.0
    %2298 = vmatpush1.xpose.msra.mxu0 0.0
    %2299 = vmatprep.subr.mxu0 0.0
    %2300 = vmatpush1.xpose.msra.mxu0 0.0
    %2301 = vmatprep.subr.mxu0 0.0
    %2302 = vmatpush1.xpose.msra.mxu0 0.0
    %2303 = vmatprep.subr.mxu0 0.0
    %2304 = vmatpush1.xpose.msra.mxu0 0.0
    %2305 = vmatprep.subr.mxu0 0.0
    %2306 = vmatpush1.xpose.msra.mxu0 0.0
    %2307 = vmatprep.subr.mxu0 0.0
    %2308 = vmatpush1.xpose.msra.mxu0 0.0
    %2309 = vmatprep.subr.mxu0 0.0
    %2310 = vmatpush1.xpose.msra.mxu0 0.0
    %2311 = vmatprep.subr.mxu0 0.0
    %2312 = vmatpush1.xpose.msra.mxu0 0.0
    %2313 = vmatprep.subr.mxu0 0.0
    %2314 = vmatpush1.xpose.msra.mxu0 0.0
    %2315 = vmatprep.subr.mxu0 0.0
    %2316 = vmatpush1.xpose.msra.mxu0 0.0
    %2317 = vmatprep.subr.mxu0 0.0
    %2318 = vmatpush1.xpose.msra.mxu0 0.0
    %2319 = vmatprep.subr.mxu0 0.0
    %2320 = vmatpush1.xpose.msra.mxu0 0.0
    %2321 = vmatprep.subr.mxu0 0.0
    %2322 = vmatpush1.xpose.msra.mxu0 0.0
    %2323 = vmatprep.subr.mxu0 0.0
    %2324 = vmatpush1.xpose.msra.mxu0 0.0
    %2325 = vmatprep.subr.mxu0 0.0
    %2326 = vmatpush1.xpose.msra.mxu0 0.0
    %2327 = vmatprep.subr.mxu0 0.0
    %2328 = vmatpush1.xpose.msra.mxu0 0.0
    %2329 = vmatprep.mubr.f32.mxu0 0.0
    %2330 = vmatmul.mubr.f32.gmra.mrb[0].mxu0 %v2261
    %v2331 = vpop.f32.mrb[0].mxu0
    %v2332 = vadd.f32 %v54, %v2331
    %v2333 = vpop.f32.mrb[0].mxu0
    %2334 = vdwg.mxu0
    %v2335 = vsel %vm177, %v2254, -inf
    %2336 = vmax.xlane.f32.xlu0 %v2335
    %v2337 = vpop.xlane.xlu0 %2336
    %v2338 = vsel %vm177, %v2332, -inf
    %2339 = vmax.xlane.f32.xlu0 %v2338
    %v2340 = vpop.xlane.xlu0 %2339
    %v2341 = vsub.f32 %v2254, %v2337
    %v2342 = vsub.f32 %v2332, %v2340
    %v2343 = vmul.f32 %v2341, 1.442695
    %v2344 = vpow.pop %v2343
    %v2345 = vmul.f32 %v2342, 1.442695
    %v2346 = vpow.pop %v2345
    %v2347 = vsel %vm177, %v2344, 0.0
    %2348 = vadd.xlane.f32.xlu0 %v2347
    %v2349 = vpop.xlane.xlu0 %2348
    %v2350 = vsel %vm177, %v2346, 0.0
    %2351 = vadd.xlane.f32.xlu0 %v2350
    %v2352 = vpop.xlane.xlu0 %2351
    %v2353 = vrcp.pop %v2349
    %v2354 = vrcp.pop %v2352
    %v2355 = vmul.f32 %v2344, %v2353
    %v2356 = vmul.f32 %v2346, %v2354
    %2357 = vrot.lane.b32.xlu0 %v1845, 88
    %v2358 = vpop.permute.xlu0 %2357
    %v2361 = vsel %vm177, %v2355, 0
    %2363 = vmatprep.subr.mxu0 0.0
    %2364 = vmatpush1.msra.mxu0 %v2358
    %2365 = vmatprep.subr.mxu0 0.0
    %2366 = vmatpush1.msra.mxu0 0.0
    %2367 = vmatprep.subr.mxu0 0.0
    %2368 = vmatpush1.msra.mxu0 0.0
    %2369 = vmatprep.subr.mxu0 0.0
    %2370 = vmatpush1.msra.mxu0 0.0
    %2371 = vmatprep.subr.mxu0 0.0
    %2372 = vmatpush1.msra.mxu0 0.0
    %2373 = vmatprep.subr.mxu0 0.0
    %2374 = vmatpush1.msra.mxu0 0.0
    %2375 = vmatprep.subr.mxu0 0.0
    %2376 = vmatpush1.msra.mxu0 0.0
    %2377 = vmatprep.subr.mxu0 0.0
    %2378 = vmatpush1.msra.mxu0 0.0
    %2379 = vmatprep.subr.mxu0 0.0
    %2380 = vmatpush1.msra.mxu0 0.0
    %2381 = vmatprep.subr.mxu0 0.0
    %2382 = vmatpush1.msra.mxu0 0.0
    %2383 = vmatprep.subr.mxu0 0.0
    %2384 = vmatpush1.msra.mxu0 0.0
    %2385 = vmatprep.subr.mxu0 0.0
    %2386 = vmatpush1.msra.mxu0 0.0
    %2387 = vmatprep.subr.mxu0 0.0
    %2388 = vmatpush1.msra.mxu0 0.0
    %2389 = vmatprep.subr.mxu0 0.0
    %2390 = vmatpush1.msra.mxu0 0.0
    %2391 = vmatprep.subr.mxu0 0.0
    %2392 = vmatpush1.msra.mxu0 0.0
    %2393 = vmatprep.subr.mxu0 0.0
    %2394 = vmatpush1.msra.mxu0 0.0
    %2395 = vmatprep.subr.mxu0 0.0
    %2396 = vmatpush1.msra.mxu0 0.0
    %2397 = vmatprep.subr.mxu0 0.0
    %2398 = vmatpush1.msra.mxu0 0.0
    %2399 = vmatprep.subr.mxu0 0.0
    %2400 = vmatpush1.msra.mxu0 0.0
    %2401 = vmatprep.subr.mxu0 0.0
    %2402 = vmatpush1.msra.mxu0 0.0
    %2403 = vmatprep.subr.mxu0 0.0
    %2404 = vmatpush1.msra.mxu0 0.0
    %2405 = vmatprep.subr.mxu0 0.0
    %2406 = vmatpush1.msra.mxu0 0.0
    %2407 = vmatprep.subr.mxu0 0.0
    %2408 = vmatpush1.msra.mxu0 0.0
    %2409 = vmatprep.subr.mxu0 0.0
    %2410 = vmatpush1.msra.mxu0 0.0
    %2411 = vmatprep.subr.mxu0 0.0
    %2412 = vmatpush1.msra.mxu0 0.0
    %2413 = vmatprep.subr.mxu0 0.0
    %2414 = vmatpush1.msra.mxu0 0.0
    %2415 = vmatprep.subr.mxu0 0.0
    %2416 = vmatpush1.msra.mxu0 0.0
    %2417 = vmatprep.subr.mxu0 0.0
    %2418 = vmatpush1.msra.mxu0 0.0
    %2419 = vmatprep.subr.mxu0 0.0
    %2420 = vmatpush1.msra.mxu0 0.0
    %2421 = vmatprep.subr.mxu0 0.0
    %2422 = vmatpush1.msra.mxu0 0.0
    %2423 = vmatprep.subr.mxu0 0.0
    %2424 = vmatpush1.msra.mxu0 0.0
    %2425 = vmatprep.subr.mxu0 0.0
    %2426 = vmatpush1.msra.mxu0 0.0
    %2427 = vmatprep.mubr.f32.mxu0 0.0
    %2428 = vmatmul.mubr.f32.gmra.mrb[0].mxu0 %v2361
    %v2429 = vpop.f32.mrb[0].mxu0
    %v2430 = vadd.f32 0.0, %v2429
    %v2431 = vpop.f32.mrb[0].mxu0
    %2432 = vdwg.mxu0
    %2433 = vrot.lane.b32.xlu0 %v1850, 88
    %v2434 = vpop.permute.xlu0 %2433
    %v2437 = vsel %vm177, %v2356, 0
    %2439 = vmatprep.subr.mxu0 0.0
    %2440 = vmatpush1.msra.mxu0 %v2434
    %2441 = vmatprep.subr.mxu0 0.0
    %2442 = vmatpush1.msra.mxu0 0.0
    %2443 = vmatprep.subr.mxu0 0.0
    %2444 = vmatpush1.msra.mxu0 0.0
    %2445 = vmatprep.subr.mxu0 0.0
    %2446 = vmatpush1.msra.mxu0 0.0
    %2447 = vmatprep.subr.mxu0 0.0
    %2448 = vmatpush1.msra.mxu0 0.0
    %2449 = vmatprep.subr.mxu0 0.0
    %2450 = vmatpush1.msra.mxu0 0.0
    %2451 = vmatprep.subr.mxu0 0.0
    %2452 = vmatpush1.msra.mxu0 0.0
    %2453 = vmatprep.subr.mxu0 0.0
    %2454 = vmatpush1.msra.mxu0 0.0
    %2455 = vmatprep.subr.mxu0 0.0
    %2456 = vmatpush1.msra.mxu0 0.0
    %2457 = vmatprep.subr.mxu0 0.0
    %2458 = vmatpush1.msra.mxu0 0.0
    %2459 = vmatprep.subr.mxu0 0.0
    %2460 = vmatpush1.msra.mxu0 0.0
    %2461 = vmatprep.subr.mxu0 0.0
    %2462 = vmatpush1.msra.mxu0 0.0
    %2463 = vmatprep.subr.mxu0 0.0
    %2464 = vmatpush1.msra.mxu0 0.0
    %2465 = vmatprep.subr.mxu0 0.0
    %2466 = vmatpush1.msra.mxu0 0.0
    %2467 = vmatprep.subr.mxu0 0.0
    %2468 = vmatpush1.msra.mxu0 0.0
    %2469 = vmatprep.subr.mxu0 0.0
    %2470 = vmatpush1.msra.mxu0 0.0
    %2471 = vmatprep.subr.mxu0 0.0
    %2472 = vmatpush1.msra.mxu0 0.0
    %2473 = vmatprep.subr.mxu0 0.0
    %2474 = vmatpush1.msra.mxu0 0.0
    %2475 = vmatprep.subr.mxu0 0.0
    %2476 = vmatpush1.msra.mxu0 0.0
    %2477 = vmatprep.subr.mxu0 0.0
    %2478 = vmatpush1.msra.mxu0 0.0
    %2479 = vmatprep.subr.mxu0 0.0
    %2480 = vmatpush1.msra.mxu0 0.0
    %2481 = vmatprep.subr.mxu0 0.0
    %2482 = vmatpush1.msra.mxu0 0.0
    %2483 = vmatprep.subr.mxu0 0.0
    %2484 = vmatpush1.msra.mxu0 0.0
    %2485 = vmatprep.subr.mxu0 0.0
    %2486 = vmatpush1.msra.mxu0 0.0
    %2487 = vmatprep.subr.mxu0 0.0
    %2488 = vmatpush1.msra.mxu0 0.0
    %2489 = vmatprep.subr.mxu0 0.0
    %2490 = vmatpush1.msra.mxu0 0.0
    %2491 = vmatprep.subr.mxu0 0.0
    %2492 = vmatpush1.msra.mxu0 0.0
    %2493 = vmatprep.subr.mxu0 0.0
    %2494 = vmatpush1.msra.mxu0 0.0
    %2495 = vmatprep.subr.mxu0 0.0
    %2496 = vmatpush1.msra.mxu0 0.0
    %2497 = vmatprep.subr.mxu0 0.0
    %2498 = vmatpush1.msra.mxu0 0.0
    %2499 = vmatprep.subr.mxu0 0.0
    %2500 = vmatpush1.msra.mxu0 0.0
    %2501 = vmatprep.subr.mxu0 0.0
    %2502 = vmatpush1.msra.mxu0 0.0
    %2503 = vmatprep.mubr.f32.mxu0 0.0
    %2504 = vmatmul.mubr.f32.gmra.mrb[0].mxu0 %v2437
    %v2505 = vpop.f32.mrb[0].mxu0
    %v2506 = vadd.f32 0.0, %v2505
    %v2507 = vpop.f32.mrb[0].mxu0
    %2508 = vdwg.mxu0
    %2509 = vrot.lane.b32.xlu0 %v1760, 112
    %v2510 = vpop.permute.xlu0 %2509
    %2511 = vrot.lane.b32.xlu0 %v1845, 112
    %v2512 = vpop.permute.xlu0 %2511
    %v2513 = vsel %vm177, %v2510, 0
    %v2515 = vsel %vm177, %v2512, 0
    %2517 = vmatprep.subr.mxu0 0.0
    %2518 = vmatpush1.xpose.msra.mxu0 %v2515
    %2519 = vmatprep.subr.mxu0 0.0
    %2520 = vmatpush1.xpose.msra.mxu0 0.0
    %2521 = vmatprep.subr.mxu0 0.0
    %2522 = vmatpush1.xpose.msra.mxu0 0.0
    %2523 = vmatprep.subr.mxu0 0.0
    %2524 = vmatpush1.xpose.msra.mxu0 0.0
    %2525 = vmatprep.subr.mxu0 0.0
    %2526 = vmatpush1.xpose.msra.mxu0 0.0
    %2527 = vmatprep.subr.mxu0 0.0
    %2528 = vmatpush1.xpose.msra.mxu0 0.0
    %2529 = vmatprep.subr.mxu0 0.0
    %2530 = vmatpush1.xpose.msra.mxu0 0.0
    %2531 = vmatprep.subr.mxu0 0.0
    %2532 = vmatpush1.xpose.msra.mxu0 0.0
    %2533 = vmatprep.subr.mxu0 0.0
    %2534 = vmatpush1.xpose.msra.mxu0 0.0
    %2535 = vmatprep.subr.mxu0 0.0
    %2536 = vmatpush1.xpose.msra.mxu0 0.0
    %2537 = vmatprep.subr.mxu0 0.0
    %2538 = vmatpush1.xpose.msra.mxu0 0.0
    %2539 = vmatprep.subr.mxu0 0.0
    %2540 = vmatpush1.xpose.msra.mxu0 0.0
    %2541 = vmatprep.subr.mxu0 0.0
    %2542 = vmatpush1.xpose.msra.mxu0 0.0
    %2543 = vmatprep.subr.mxu0 0.0
    %2544 = vmatpush1.xpose.msra.mxu0 0.0
    %2545 = vmatprep.subr.mxu0 0.0
    %2546 = vmatpush1.xpose.msra.mxu0 0.0
    %2547 = vmatprep.subr.mxu0 0.0
    %2548 = vmatpush1.xpose.msra.mxu0 0.0
    %2549 = vmatprep.subr.mxu0 0.0
    %2550 = vmatpush1.xpose.msra.mxu0 0.0
    %2551 = vmatprep.subr.mxu0 0.0
    %2552 = vmatpush1.xpose.msra.mxu0 0.0
    %2553 = vmatprep.subr.mxu0 0.0
    %2554 = vmatpush1.xpose.msra.mxu0 0.0
    %2555 = vmatprep.subr.mxu0 0.0
    %2556 = vmatpush1.xpose.msra.mxu0 0.0
    %2557 = vmatprep.subr.mxu0 0.0
    %2558 = vmatpush1.xpose.msra.mxu0 0.0
    %2559 = vmatprep.subr.mxu0 0.0
    %2560 = vmatpush1.xpose.msra.mxu0 0.0
    %2561 = vmatprep.subr.mxu0 0.0
    %2562 = vmatpush1.xpose.msra.mxu0 0.0
    %2563 = vmatprep.subr.mxu0 0.0
    %2564 = vmatpush1.xpose.msra.mxu0 0.0
    %2565 = vmatprep.subr.mxu0 0.0
    %2566 = vmatpush1.xpose.msra.mxu0 0.0
    %2567 = vmatprep.subr.mxu0 0.0
    %2568 = vmatpush1.xpose.msra.mxu0 0.0
    %2569 = vmatprep.subr.mxu0 0.0
    %2570 = vmatpush1.xpose.msra.mxu0 0.0
    %2571 = vmatprep.subr.mxu0 0.0
    %2572 = vmatpush1.xpose.msra.mxu0 0.0
    %2573 = vmatprep.subr.mxu0 0.0
    %2574 = vmatpush1.xpose.msra.mxu0 0.0
    %2575 = vmatprep.subr.mxu0 0.0
    %2576 = vmatpush1.xpose.msra.mxu0 0.0
    %2577 = vmatprep.subr.mxu0 0.0
    %2578 = vmatpush1.xpose.msra.mxu0 0.0
    %2579 = vmatprep.subr.mxu0 0.0
    %2580 = vmatpush1.xpose.msra.mxu0 0.0
    %2581 = vmatprep.mubr.f32.mxu0 0.0
    %2582 = vmatmul.mubr.f32.gmra.mrb[0].mxu0 %v2513
    %v2583 = vpop.f32.mrb[0].mxu0
    %v2584 = vadd.f32 %v54, %v2583
    %v2585 = vpop.f32.mrb[0].mxu0
    %2586 = vdwg.mxu0
    %2587 = vrot.lane.b32.xlu0 %v1765, 112
    %v2588 = vpop.permute.xlu0 %2587
    %2589 = vrot.lane.b32.xlu0 %v1850, 112
    %v2590 = vpop.permute.xlu0 %2589
    %v2591 = vsel %vm177, %v2588, 0
    %v2593 = vsel %vm177, %v2590, 0
    %2595 = vmatprep.subr.mxu0 0.0
    %2596 = vmatpush1.xpose.msra.mxu0 %v2593
    %2597 = vmatprep.subr.mxu0 0.0
    %2598 = vmatpush1.xpose.msra.mxu0 0.0
    %2599 = vmatprep.subr.mxu0 0.0
    %2600 = vmatpush1.xpose.msra.mxu0 0.0
    %2601 = vmatprep.subr.mxu0 0.0
    %2602 = vmatpush1.xpose.msra.mxu0 0.0
    %2603 = vmatprep.subr.mxu0 0.0
    %2604 = vmatpush1.xpose.msra.mxu0 0.0
    %2605 = vmatprep.subr.mxu0 0.0
    %2606 = vmatpush1.xpose.msra.mxu0 0.0
    %2607 = vmatprep.subr.mxu0 0.0
    %2608 = vmatpush1.xpose.msra.mxu0 0.0
    %2609 = vmatprep.subr.mxu0 0.0
    %2610 = vmatpush1.xpose.msra.mxu0 0.0
    %2611 = vmatprep.subr.mxu0 0.0
    %2612 = vmatpush1.xpose.msra.mxu0 0.0
    %2613 = vmatprep.subr.mxu0 0.0
    %2614 = vmatpush1.xpose.msra.mxu0 0.0
    %2615 = vmatprep.subr.mxu0 0.0
    %2616 = vmatpush1.xpose.msra.mxu0 0.0
    %2617 = vmatprep.subr.mxu0 0.0
    %2618 = vmatpush1.xpose.msra.mxu0 0.0
    %2619 = vmatprep.subr.mxu0 0.0
    %2620 = vmatpush1.xpose.msra.mxu0 0.0
    %2621 = vmatprep.subr.mxu0 0.0
    %2622 = vmatpush1.xpose.msra.mxu0 0.0
    %2623 = vmatprep.subr.mxu0 0.0
    %2624 = vmatpush1.xpose.msra.mxu0 0.0
    %2625 = vmatprep.subr.mxu0 0.0
    %2626 = vmatpush1.xpose.msra.mxu0 0.0
    %2627 = vmatprep.subr.mxu0 0.0
    %2628 = vmatpush1.xpose.msra.mxu0 0.0
    %2629 = vmatprep.subr.mxu0 0.0
    %2630 = vmatpush1.xpose.msra.mxu0 0.0
    %2631 = vmatprep.subr.mxu0 0.0
    %2632 = vmatpush1.xpose.msra.mxu0 0.0
    %2633 = vmatprep.subr.mxu0 0.0
    %2634 = vmatpush1.xpose.msra.mxu0 0.0
    %2635 = vmatprep.subr.mxu0 0.0
    %2636 = vmatpush1.xpose.msra.mxu0 0.0
    %2637 = vmatprep.subr.mxu0 0.0
    %2638 = vmatpush1.xpose.msra.mxu0 0.0
    %2639 = vmatprep.subr.mxu0 0.0
    %2640 = vmatpush1.xpose.msra.mxu0 0.0
    %2641 = vmatprep.subr.mxu0 0.0
    %2642 = vmatpush1.xpose.msra.mxu0 0.0
    %2643 = vmatprep.subr.mxu0 0.0
    %2644 = vmatpush1.xpose.msra.mxu0 0.0
    %2645 = vmatprep.subr.mxu0 0.0
    %2646 = vmatpush1.xpose.msra.mxu0 0.0
    %2647 = vmatprep.subr.mxu0 0.0
    %2648 = vmatpush1.xpose.msra.mxu0 0.0
    %2649 = vmatprep.subr.mxu0 0.0
    %2650 = vmatpush1.xpose.msra.mxu0 0.0
    %2651 = vmatprep.subr.mxu0 0.0
    %2652 = vmatpush1.xpose.msra.mxu0 0.0
    %2653 = vmatprep.subr.mxu0 0.0
    %2654 = vmatpush1.xpose.msra.mxu0 0.0
    %2655 = vmatprep.subr.mxu0 0.0
    %2656 = vmatpush1.xpose.msra.mxu0 0.0
    %2657 = vmatprep.subr.mxu0 0.0
    %2658 = vmatpush1.xpose.msra.mxu0 0.0
    %2659 = vmatprep.mubr.f32.mxu0 0.0
    %2660 = vmatmul.mubr.f32.gmra.mrb[0].mxu0 %v2591
    %v2661 = vpop.f32.mrb[0].mxu0
    %v2662 = vadd.f32 %v54, %v2661
    %v2663 = vpop.f32.mrb[0].mxu0
    %2664 = vdwg.mxu0
    %v2665 = vsel %vm177, %v2584, -inf
    %2666 = vmax.xlane.f32.xlu0 %v2665
    %v2667 = vpop.xlane.xlu0 %2666
    %v2668 = vsel %vm177, %v2662, -inf
    %2669 = vmax.xlane.f32.xlu0 %v2668
    %v2670 = vpop.xlane.xlu0 %2669
    %v2671 = vsub.f32 %v2584, %v2667
    %v2672 = vsub.f32 %v2662, %v2670
    %v2673 = vmul.f32 %v2671, 1.442695
    %v2674 = vpow.pop %v2673
    %v2675 = vmul.f32 %v2672, 1.442695
    %v2676 = vpow.pop %v2675
    %v2677 = vsel %vm177, %v2674, 0.0
    %2678 = vadd.xlane.f32.xlu0 %v2677
    %v2679 = vpop.xlane.xlu0 %2678
    %v2680 = vsel %vm177, %v2676, 0.0
    %2681 = vadd.xlane.f32.xlu0 %v2680
    %v2682 = vpop.xlane.xlu0 %2681
    %v2683 = vrcp.pop %v2679
    %v2684 = vrcp.pop %v2682
    %v2685 = vmul.f32 %v2674, %v2683
    %v2686 = vmul.f32 %v2676, %v2684
    %2687 = vrot.lane.b32.xlu0 %v1845, 80
    %v2688 = vpop.permute.xlu0 %2687
    %v2691 = vsel %vm177, %v2685, 0
    %2693 = vmatprep.subr.mxu0 0.0
    %2694 = vmatpush1.msra.mxu0 %v2688
    %2695 = vmatprep.subr.mxu0 0.0
    %2696 = vmatpush1.msra.mxu0 0.0
    %2697 = vmatprep.subr.mxu0 0.0
    %2698 = vmatpush1.msra.mxu0 0.0
    %2699 = vmatprep.subr.mxu0 0.0
    %2700 = vmatpush1.msra.mxu0 0.0
    %2701 = vmatprep.subr.mxu0 0.0
    %2702 = vmatpush1.msra.mxu0 0.0
    %2703 = vmatprep.subr.mxu0 0.0
    %2704 = vmatpush1.msra.mxu0 0.0
    %2705 = vmatprep.subr.mxu0 0.0
    %2706 = vmatpush1.msra.mxu0 0.0
    %2707 = vmatprep.subr.mxu0 0.0
    %2708 = vmatpush1.msra.mxu0 0.0
    %2709 = vmatprep.subr.mxu0 0.0
    %2710 = vmatpush1.msra.mxu0 0.0
    %2711 = vmatprep.subr.mxu0 0.0
    %2712 = vmatpush1.msra.mxu0 0.0
    %2713 = vmatprep.subr.mxu0 0.0
    %2714 = vmatpush1.msra.mxu0 0.0
    %2715 = vmatprep.subr.mxu0 0.0
    %2716 = vmatpush1.msra.mxu0 0.0
    %2717 = vmatprep.subr.mxu0 0.0
    %2718 = vmatpush1.msra.mxu0 0.0
    %2719 = vmatprep.subr.mxu0 0.0
    %2720 = vmatpush1.msra.mxu0 0.0
    %2721 = vmatprep.subr.mxu0 0.0
    %2722 = vmatpush1.msra.mxu0 0.0
    %2723 = vmatprep.subr.mxu0 0.0
    %2724 = vmatpush1.msra.mxu0 0.0
    %2725 = vmatprep.subr.mxu0 0.0
    %2726 = vmatpush1.msra.mxu0 0.0
    %2727 = vmatprep.subr.mxu0 0.0
    %2728 = vmatpush1.msra.mxu0 0.0
    %2729 = vmatprep.subr.mxu0 0.0
    %2730 = vmatpush1.msra.mxu0 0.0
    %2731 = vmatprep.subr.mxu0 0.0
    %2732 = vmatpush1.msra.mxu0 0.0
    %2733 = vmatprep.subr.mxu0 0.0
    %2734 = vmatpush1.msra.mxu0 0.0
    %2735 = vmatprep.subr.mxu0 0.0
    %2736 = vmatpush1.msra.mxu0 0.0
    %2737 = vmatprep.subr.mxu0 0.0
    %2738 = vmatpush1.msra.mxu0 0.0
    %2739 = vmatprep.subr.mxu0 0.0
    %2740 = vmatpush1.msra.mxu0 0.0
    %2741 = vmatprep.subr.mxu0 0.0
    %2742 = vmatpush1.msra.mxu0 0.0
    %2743 = vmatprep.subr.mxu0 0.0
    %2744 = vmatpush1.msra.mxu0 0.0
    %2745 = vmatprep.subr.mxu0 0.0
    %2746 = vmatpush1.msra.mxu0 0.0
    %2747 = vmatprep.subr.mxu0 0.0
    %2748 = vmatpush1.msra.mxu0 0.0
    %2749 = vmatprep.subr.mxu0 0.0
    %2750 = vmatpush1.msra.mxu0 0.0
    %2751 = vmatprep.subr.mxu0 0.0
    %2752 = vmatpush1.msra.mxu0 0.0
    %2753 = vmatprep.subr.mxu0 0.0
    %2754 = vmatpush1.msra.mxu0 0.0
    %2755 = vmatprep.subr.mxu0 0.0
    %2756 = vmatpush1.msra.mxu0 0.0
    %2757 = vmatprep.mubr.f32.mxu0 0.0
    %2758 = vmatmul.mubr.f32.gmra.mrb[0].mxu0 %v2691
    %v2759 = vpop.f32.mrb[0].mxu0
    %v2760 = vadd.f32 0.0, %v2759
    %v2761 = vpop.f32.mrb[0].mxu0
    %2762 = vdwg.mxu0
    %2763 = vrot.lane.b32.xlu0 %v1850, 80
    %v2764 = vpop.permute.xlu0 %2763
    %v2767 = vsel %vm177, %v2686, 0
    %2769 = vmatprep.subr.mxu0 0.0
    %2770 = vmatpush1.msra.mxu0 %v2764
    %2771 = vmatprep.subr.mxu0 0.0
    %2772 = vmatpush1.msra.mxu0 0.0
    %2773 = vmatprep.subr.mxu0 0.0
    %2774 = vmatpush1.msra.mxu0 0.0
    %2775 = vmatprep.subr.mxu0 0.0
    %2776 = vmatpush1.msra.mxu0 0.0
    %2777 = vmatprep.subr.mxu0 0.0
    %2778 = vmatpush1.msra.mxu0 0.0
    %2779 = vmatprep.subr.mxu0 0.0
    %2780 = vmatpush1.msra.mxu0 0.0
    %2781 = vmatprep.subr.mxu0 0.0
    %2782 = vmatpush1.msra.mxu0 0.0
    %2783 = vmatprep.subr.mxu0 0.0
    %2784 = vmatpush1.msra.mxu0 0.0
    %2785 = vmatprep.subr.mxu0 0.0
    %2786 = vmatpush1.msra.mxu0 0.0
    %2787 = vmatprep.subr.mxu0 0.0
    %2788 = vmatpush1.msra.mxu0 0.0
    %2789 = vmatprep.subr.mxu0 0.0
    %2790 = vmatpush1.msra.mxu0 0.0
    %2791 = vmatprep.subr.mxu0 0.0
    %2792 = vmatpush1.msra.mxu0 0.0
    %2793 = vmatprep.subr.mxu0 0.0
    %2794 = vmatpush1.msra.mxu0 0.0
    %2795 = vmatprep.subr.mxu0 0.0
    %2796 = vmatpush1.msra.mxu0 0.0
    %2797 = vmatprep.subr.mxu0 0.0
    %2798 = vmatpush1.msra.mxu0 0.0
    %2799 = vmatprep.subr.mxu0 0.0
    %2800 = vmatpush1.msra.mxu0 0.0
    %2801 = vmatprep.subr.mxu0 0.0
    %2802 = vmatpush1.msra.mxu0 0.0
    %2803 = vmatprep.subr.mxu0 0.0
    %2804 = vmatpush1.msra.mxu0 0.0
    %2805 = vmatprep.subr.mxu0 0.0
    %2806 = vmatpush1.msra.mxu0 0.0
    %2807 = vmatprep.subr.mxu0 0.0
    %2808 = vmatpush1.msra.mxu0 0.0
    %2809 = vmatprep.subr.mxu0 0.0
    %2810 = vmatpush1.msra.mxu0 0.0
    %2811 = vmatprep.subr.mxu0 0.0
    %2812 = vmatpush1.msra.mxu0 0.0
    %2813 = vmatprep.subr.mxu0 0.0
    %2814 = vmatpush1.msra.mxu0 0.0
    %2815 = vmatprep.subr.mxu0 0.0
    %2816 = vmatpush1.msra.mxu0 0.0
    %2817 = vmatprep.subr.mxu0 0.0
    %2818 = vmatpush1.msra.mxu0 0.0
    %2819 = vmatprep.subr.mxu0 0.0
    %2820 = vmatpush1.msra.mxu0 0.0
    %2821 = vmatprep.subr.mxu0 0.0
    %2822 = vmatpush1.msra.mxu0 0.0
    %2823 = vmatprep.subr.mxu0 0.0
    %2824 = vmatpush1.msra.mxu0 0.0
    %2825 = vmatprep.subr.mxu0 0.0
    %2826 = vmatpush1.msra.mxu0 0.0
    %2827 = vmatprep.subr.mxu0 0.0
    %2828 = vmatpush1.msra.mxu0 0.0
    %2829 = vmatprep.subr.mxu0 0.0
    %2830 = vmatpush1.msra.mxu0 0.0
    %2831 = vmatprep.subr.mxu0 0.0
    %2832 = vmatpush1.msra.mxu0 0.0
    %2833 = vmatprep.mubr.f32.mxu0 0.0
    %2834 = vmatmul.mubr.f32.gmra.mrb[0].mxu0 %v2767
    %v2835 = vpop.f32.mrb[0].mxu0
    %v2836 = vadd.f32 0.0, %v2835
    %v2837 = vpop.f32.mrb[0].mxu0
    %2838 = vdwg.mxu0
    %2839 = vrot.lane.b32.xlu0 %v1760, 104
    %v2840 = vpop.permute.xlu0 %2839
    %2841 = vrot.lane.b32.xlu0 %v1845, 104
    %v2842 = vpop.permute.xlu0 %2841
    %v2843 = vsel %vm177, %v2840, 0
    %v2845 = vsel %vm177, %v2842, 0
    %2847 = vmatprep.subr.mxu0 0.0
    %2848 = vmatpush1.xpose.msra.mxu0 %v2845
    %2849 = vmatprep.subr.mxu0 0.0
    %2850 = vmatpush1.xpose.msra.mxu0 0.0
    %2851 = vmatprep.subr.mxu0 0.0
    %2852 = vmatpush1.xpose.msra.mxu0 0.0
    %2853 = vmatprep.subr.mxu0 0.0
    %2854 = vmatpush1.xpose.msra.mxu0 0.0
    %2855 = vmatprep.subr.mxu0 0.0
    %2856 = vmatpush1.xpose.msra.mxu0 0.0
    %2857 = vmatprep.subr.mxu0 0.0
    %2858 = vmatpush1.xpose.msra.mxu0 0.0
    %2859 = vmatprep.subr.mxu0 0.0
    %2860 = vmatpush1.xpose.msra.mxu0 0.0
    %2861 = vmatprep.subr.mxu0 0.0
    %2862 = vmatpush1.xpose.msra.mxu0 0.0
    %2863 = vmatprep.subr.mxu0 0.0
    %2864 = vmatpush1.xpose.msra.mxu0 0.0
    %2865 = vmatprep.subr.mxu0 0.0
    %2866 = vmatpush1.xpose.msra.mxu0 0.0
    %2867 = vmatprep.subr.mxu0 0.0
    %2868 = vmatpush1.xpose.msra.mxu0 0.0
    %2869 = vmatprep.subr.mxu0 0.0
    %2870 = vmatpush1.xpose.msra.mxu0 0.0
    %2871 = vmatprep.subr.mxu0 0.0
    %2872 = vmatpush1.xpose.msra.mxu0 0.0
    %2873 = vmatprep.subr.mxu0 0.0
    %2874 = vmatpush1.xpose.msra.mxu0 0.0
    %2875 = vmatprep.subr.mxu0 0.0
    %2876 = vmatpush1.xpose.msra.mxu0 0.0
    %2877 = vmatprep.subr.mxu0 0.0
    %2878 = vmatpush1.xpose.msra.mxu0 0.0
    %2879 = vmatprep.subr.mxu0 0.0
    %2880 = vmatpush1.xpose.msra.mxu0 0.0
    %2881 = vmatprep.subr.mxu0 0.0
    %2882 = vmatpush1.xpose.msra.mxu0 0.0
    %2883 = vmatprep.subr.mxu0 0.0
    %2884 = vmatpush1.xpose.msra.mxu0 0.0
    %2885 = vmatprep.subr.mxu0 0.0
    %2886 = vmatpush1.xpose.msra.mxu0 0.0
    %2887 = vmatprep.subr.mxu0 0.0
    %2888 = vmatpush1.xpose.msra.mxu0 0.0
    %2889 = vmatprep.subr.mxu0 0.0
    %2890 = vmatpush1.xpose.msra.mxu0 0.0
    %2891 = vmatprep.subr.mxu0 0.0
    %2892 = vmatpush1.xpose.msra.mxu0 0.0
    %2893 = vmatprep.subr.mxu0 0.0
    %2894 = vmatpush1.xpose.msra.mxu0 0.0
    %2895 = vmatprep.subr.mxu0 0.0
    %2896 = vmatpush1.xpose.msra.mxu0 0.0
    %2897 = vmatprep.subr.mxu0 0.0
    %2898 = vmatpush1.xpose.msra.mxu0 0.0
    %2899 = vmatprep.subr.mxu0 0.0
    %2900 = vmatpush1.xpose.msra.mxu0 0.0
    %2901 = vmatprep.subr.mxu0 0.0
    %2902 = vmatpush1.xpose.msra.mxu0 0.0
    %2903 = vmatprep.subr.mxu0 0.0
    %2904 = vmatpush1.xpose.msra.mxu0 0.0
    %2905 = vmatprep.subr.mxu0 0.0
    %2906 = vmatpush1.xpose.msra.mxu0 0.0
    %2907 = vmatprep.subr.mxu0 0.0
    %2908 = vmatpush1.xpose.msra.mxu0 0.0
    %2909 = vmatprep.subr.mxu0 0.0
    %2910 = vmatpush1.xpose.msra.mxu0 0.0
    %2911 = vmatprep.mubr.f32.mxu0 0.0
    %2912 = vmatmul.mubr.f32.gmra.mrb[0].mxu0 %v2843
    %v2913 = vpop.f32.mrb[0].mxu0
    %v2914 = vadd.f32 %v54, %v2913
    %v2915 = vpop.f32.mrb[0].mxu0
    %2916 = vdwg.mxu0
    %2917 = vrot.lane.b32.xlu0 %v1765, 104
    %v2918 = vpop.permute.xlu0 %2917
    %2919 = vrot.lane.b32.xlu0 %v1850, 104
    %v2920 = vpop.permute.xlu0 %2919
    %v2921 = vsel %vm177, %v2918, 0
    %v2923 = vsel %vm177, %v2920, 0
    %2925 = vmatprep.subr.mxu0 0.0
    %2926 = vmatpush1.xpose.msra.mxu0 %v2923
    %2927 = vmatprep.subr.mxu0 0.0
    %2928 = vmatpush1.xpose.msra.mxu0 0.0
    %2929 = vmatprep.subr.mxu0 0.0
    %2930 = vmatpush1.xpose.msra.mxu0 0.0
    %2931 = vmatprep.subr.mxu0 0.0
    %2932 = vmatpush1.xpose.msra.mxu0 0.0
    %2933 = vmatprep.subr.mxu0 0.0
    %2934 = vmatpush1.xpose.msra.mxu0 0.0
    %2935 = vmatprep.subr.mxu0 0.0
    %2936 = vmatpush1.xpose.msra.mxu0 0.0
    %2937 = vmatprep.subr.mxu0 0.0
    %2938 = vmatpush1.xpose.msra.mxu0 0.0
    %2939 = vmatprep.subr.mxu0 0.0
    %2940 = vmatpush1.xpose.msra.mxu0 0.0
    %2941 = vmatprep.subr.mxu0 0.0
    %2942 = vmatpush1.xpose.msra.mxu0 0.0
    %2943 = vmatprep.subr.mxu0 0.0
    %2944 = vmatpush1.xpose.msra.mxu0 0.0
    %2945 = vmatprep.subr.mxu0 0.0
    %2946 = vmatpush1.xpose.msra.mxu0 0.0
    %2947 = vmatprep.subr.mxu0 0.0
    %2948 = vmatpush1.xpose.msra.mxu0 0.0
    %2949 = vmatprep.subr.mxu0 0.0
    %2950 = vmatpush1.xpose.msra.mxu0 0.0
    %2951 = vmatprep.subr.mxu0 0.0
    %2952 = vmatpush1.xpose.msra.mxu0 0.0
    %2953 = vmatprep.subr.mxu0 0.0
    %2954 = vmatpush1.xpose.msra.mxu0 0.0
    %2955 = vmatprep.subr.mxu0 0.0
    %2956 = vmatpush1.xpose.msra.mxu0 0.0
    %2957 = vmatprep.subr.mxu0 0.0
    %2958 = vmatpush1.xpose.msra.mxu0 0.0
    %2959 = vmatprep.subr.mxu0 0.0
    %2960 = vmatpush1.xpose.msra.mxu0 0.0
    %2961 = vmatprep.subr.mxu0 0.0
    %2962 = vmatpush1.xpose.msra.mxu0 0.0
    %2963 = vmatprep.subr.mxu0 0.0
    %2964 = vmatpush1.xpose.msra.mxu0 0.0
    %2965 = vmatprep.subr.mxu0 0.0
    %2966 = vmatpush1.xpose.msra.mxu0 0.0
    %2967 = vmatprep.subr.mxu0 0.0
    %2968 = vmatpush1.xpose.msra.mxu0 0.0
    %2969 = vmatprep.subr.mxu0 0.0
    %2970 = vmatpush1.xpose.msra.mxu0 0.0
    %2971 = vmatprep.subr.mxu0 0.0
    %2972 = vmatpush1.xpose.msra.mxu0 0.0
    %2973 = vmatprep.subr.mxu0 0.0
    %2974 = vmatpush1.xpose.msra.mxu0 0.0
    %2975 = vmatprep.subr.mxu0 0.0
    %2976 = vmatpush1.xpose.msra.mxu0 0.0
    %2977 = vmatprep.subr.mxu0 0.0
    %2978 = vmatpush1.xpose.msra.mxu0 0.0
    %2979 = vmatprep.subr.mxu0 0.0
    %2980 = vmatpush1.xpose.msra.mxu0 0.0
    %2981 = vmatprep.subr.mxu0 0.0
    %2982 = vmatpush1.xpose.msra.mxu0 0.0
    %2983 = vmatprep.subr.mxu0 0.0
    %2984 = vmatpush1.xpose.msra.mxu0 0.0
    %2985 = vmatprep.subr.mxu0 0.0
    %2986 = vmatpush1.xpose.msra.mxu0 0.0
    %2987 = vmatprep.subr.mxu0 0.0
    %2988 = vmatpush1.xpose.msra.mxu0 0.0
    %2989 = vmatprep.mubr.f32.mxu0 0.0
    %2990 = vmatmul.mubr.f32.gmra.mrb[0].mxu0 %v2921
    %v2991 = vpop.f32.mrb[0].mxu0
    %v2992 = vadd.f32 %v54, %v2991
    %v2993 = vpop.f32.mrb[0].mxu0
    %2994 = vdwg.mxu0
    %v2995 = vsel %vm177, %v2914, -inf
    %2996 = vmax.xlane.f32.xlu0 %v2995
    %v2997 = vpop.xlane.xlu0 %2996
    %v2998 = vsel %vm177, %v2992, -inf
    %2999 = vmax.xlane.f32.xlu0 %v2998
    %v3000 = vpop.xlane.xlu0 %2999
    %v3001 = vsub.f32 %v2914, %v2997
    %v3002 = vsub.f32 %v2992, %v3000
    %v3003 = vmul.f32 %v3001, 1.442695
    %v3004 = vpow.pop %v3003
    %v3005 = vmul.f32 %v3002, 1.442695
    %v3006 = vpow.pop %v3005
    %v3007 = vsel %vm177, %v3004, 0.0
    %3008 = vadd.xlane.f32.xlu0 %v3007
    %v3009 = vpop.xlane.xlu0 %3008
    %v3010 = vsel %vm177, %v3006, 0.0
    %3011 = vadd.xlane.f32.xlu0 %v3010
    %v3012 = vpop.xlane.xlu0 %3011
    %v3013 = vrcp.pop %v3009
    %v3014 = vrcp.pop %v3012
    %v3015 = vmul.f32 %v3004, %v3013
    %v3016 = vmul.f32 %v3006, %v3014
    %3017 = vrot.lane.b32.xlu0 %v1845, 72
    %v3018 = vpop.permute.xlu0 %3017
    %v3021 = vsel %vm177, %v3015, 0
    %3023 = vmatprep.subr.mxu0 0.0
    %3024 = vmatpush1.msra.mxu0 %v3018
    %3025 = vmatprep.subr.mxu0 0.0
    %3026 = vmatpush1.msra.mxu0 0.0
    %3027 = vmatprep.subr.mxu0 0.0
    %3028 = vmatpush1.msra.mxu0 0.0
    %3029 = vmatprep.subr.mxu0 0.0
    %3030 = vmatpush1.msra.mxu0 0.0
    %3031 = vmatprep.subr.mxu0 0.0
    %3032 = vmatpush1.msra.mxu0 0.0
    %3033 = vmatprep.subr.mxu0 0.0
    %3034 = vmatpush1.msra.mxu0 0.0
    %3035 = vmatprep.subr.mxu0 0.0
    %3036 = vmatpush1.msra.mxu0 0.0
    %3037 = vmatprep.subr.mxu0 0.0
    %3038 = vmatpush1.msra.mxu0 0.0
    %3039 = vmatprep.subr.mxu0 0.0
    %3040 = vmatpush1.msra.mxu0 0.0
    %3041 = vmatprep.subr.mxu0 0.0
    %3042 = vmatpush1.msra.mxu0 0.0
    %3043 = vmatprep.subr.mxu0 0.0
    %3044 = vmatpush1.msra.mxu0 0.0
    %3045 = vmatprep.subr.mxu0 0.0
    %3046 = vmatpush1.msra.mxu0 0.0
    %3047 = vmatprep.subr.mxu0 0.0
    %3048 = vmatpush1.msra.mxu0 0.0
    %3049 = vmatprep.subr.mxu0 0.0
    %3050 = vmatpush1.msra.mxu0 0.0
    %3051 = vmatprep.subr.mxu0 0.0
    %3052 = vmatpush1.msra.mxu0 0.0
    %3053 = vmatprep.subr.mxu0 0.0
    %3054 = vmatpush1.msra.mxu0 0.0
    %3055 = vmatprep.subr.mxu0 0.0
    %3056 = vmatpush1.msra.mxu0 0.0
    %3057 = vmatprep.subr.mxu0 0.0
    %3058 = vmatpush1.msra.mxu0 0.0
    %3059 = vmatprep.subr.mxu0 0.0
    %3060 = vmatpush1.msra.mxu0 0.0
    %3061 = vmatprep.subr.mxu0 0.0
    %3062 = vmatpush1.msra.mxu0 0.0
    %3063 = vmatprep.subr.mxu0 0.0
    %3064 = vmatpush1.msra.mxu0 0.0
    %3065 = vmatprep.subr.mxu0 0.0
    %3066 = vmatpush1.msra.mxu0 0.0
    %3067 = vmatprep.subr.mxu0 0.0
    %3068 = vmatpush1.msra.mxu0 0.0
    %3069 = vmatprep.subr.mxu0 0.0
    %3070 = vmatpush1.msra.mxu0 0.0
    %3071 = vmatprep.subr.mxu0 0.0
    %3072 = vmatpush1.msra.mxu0 0.0
    %3073 = vmatprep.subr.mxu0 0.0
    %3074 = vmatpush1.msra.mxu0 0.0
    %3075 = vmatprep.subr.mxu0 0.0
    %3076 = vmatpush1.msra.mxu0 0.0
    %3077 = vmatprep.subr.mxu0 0.0
    %3078 = vmatpush1.msra.mxu0 0.0
    %3079 = vmatprep.subr.mxu0 0.0
    %3080 = vmatpush1.msra.mxu0 0.0
    %3081 = vmatprep.subr.mxu0 0.0
    %3082 = vmatpush1.msra.mxu0 0.0
    %3083 = vmatprep.subr.mxu0 0.0
    %3084 = vmatpush1.msra.mxu0 0.0
    %3085 = vmatprep.subr.mxu0 0.0
    %3086 = vmatpush1.msra.mxu0 0.0
    %3087 = vmatprep.mubr.f32.mxu0 0.0
    %3088 = vmatmul.mubr.f32.gmra.mrb[0].mxu0 %v3021
    %v3089 = vpop.f32.mrb[0].mxu0
    %v3090 = vadd.f32 0.0, %v3089
    %v3091 = vpop.f32.mrb[0].mxu0
    %3092 = vdwg.mxu0
    %3093 = vrot.lane.b32.xlu0 %v1850, 72
    %v3094 = vpop.permute.xlu0 %3093
    %v3097 = vsel %vm177, %v3016, 0
    %3099 = vmatprep.subr.mxu0 0.0
    %3100 = vmatpush1.msra.mxu0 %v3094
    %3101 = vmatprep.subr.mxu0 0.0
    %3102 = vmatpush1.msra.mxu0 0.0
    %3103 = vmatprep.subr.mxu0 0.0
    %3104 = vmatpush1.msra.mxu0 0.0
    %3105 = vmatprep.subr.mxu0 0.0
    %3106 = vmatpush1.msra.mxu0 0.0
    %3107 = vmatprep.subr.mxu0 0.0
    %3108 = vmatpush1.msra.mxu0 0.0
    %3109 = vmatprep.subr.mxu0 0.0
    %3110 = vmatpush1.msra.mxu0 0.0
    %3111 = vmatprep.subr.mxu0 0.0
    %3112 = vmatpush1.msra.mxu0 0.0
    %3113 = vmatprep.subr.mxu0 0.0
    %3114 = vmatpush1.msra.mxu0 0.0
    %3115 = vmatprep.subr.mxu0 0.0
    %3116 = vmatpush1.msra.mxu0 0.0
    %3117 = vmatprep.subr.mxu0 0.0
    %3118 = vmatpush1.msra.mxu0 0.0
    %3119 = vmatprep.subr.mxu0 0.0
    %3120 = vmatpush1.msra.mxu0 0.0
    %3121 = vmatprep.subr.mxu0 0.0
    %3122 = vmatpush1.msra.mxu0 0.0
    %3123 = vmatprep.subr.mxu0 0.0
    %3124 = vmatpush1.msra.mxu0 0.0
    %3125 = vmatprep.subr.mxu0 0.0
    %3126 = vmatpush1.msra.mxu0 0.0
    %3127 = vmatprep.subr.mxu0 0.0
    %3128 = vmatpush1.msra.mxu0 0.0
    %3129 = vmatprep.subr.mxu0 0.0
    %3130 = vmatpush1.msra.mxu0 0.0
    %3131 = vmatprep.subr.mxu0 0.0
    %3132 = vmatpush1.msra.mxu0 0.0
    %3133 = vmatprep.subr.mxu0 0.0
    %3134 = vmatpush1.msra.mxu0 0.0
    %3135 = vmatprep.subr.mxu0 0.0
    %3136 = vmatpush1.msra.mxu0 0.0
    %3137 = vmatprep.subr.mxu0 0.0
    %3138 = vmatpush1.msra.mxu0 0.0
    %3139 = vmatprep.subr.mxu0 0.0
    %3140 = vmatpush1.msra.mxu0 0.0
    %3141 = vmatprep.subr.mxu0 0.0
    %3142 = vmatpush1.msra.mxu0 0.0
    %3143 = vmatprep.subr.mxu0 0.0
    %3144 = vmatpush1.msra.mxu0 0.0
    %3145 = vmatprep.subr.mxu0 0.0
    %3146 = vmatpush1.msra.mxu0 0.0
    %3147 = vmatprep.subr.mxu0 0.0
    %3148 = vmatpush1.msra.mxu0 0.0
    %3149 = vmatprep.subr.mxu0 0.0
    %3150 = vmatpush1.msra.mxu0 0.0
    %3151 = vmatprep.subr.mxu0 0.0
    %3152 = vmatpush1.msra.mxu0 0.0
    %3153 = vmatprep.subr.mxu0 0.0
    %3154 = vmatpush1.msra.mxu0 0.0
    %3155 = vmatprep.subr.mxu0 0.0
    %3156 = vmatpush1.msra.mxu0 0.0
    %3157 = vmatprep.subr.mxu0 0.0
    %3158 = vmatpush1.msra.mxu0 0.0
    %3159 = vmatprep.subr.mxu0 0.0
    %3160 = vmatpush1.msra.mxu0 0.0
    %3161 = vmatprep.subr.mxu0 0.0
    %3162 = vmatpush1.msra.mxu0 0.0
    %3163 = vmatprep.mubr.f32.mxu0 0.0
    %3164 = vmatmul.mubr.f32.gmra.mrb[0].mxu0 %v3097
    %v3165 = vpop.f32.mrb[0].mxu0
    %v3166 = vadd.f32 0.0, %v3165
    %v3167 = vpop.f32.mrb[0].mxu0
    %3168 = vdwg.mxu0
    %3171 = vrot.lane.b32.xlu0 %v2430, 8
    %v3172 = vpop.permute.xlu0 %3171
    %3173 = vrot.lane.b32.xlu0 %v2506, 8
    %v3174 = vpop.permute.xlu0 %3173
    %3179 = vrot.lane.b32.xlu0 %v2760, 16
    %v3180 = vpop.permute.xlu0 %3179
    %3181 = vrot.lane.b32.xlu0 %v2836, 16
    %v3182 = vpop.permute.xlu0 %3181
    %3187 = vrot.lane.b32.xlu0 %v3090, 24
    %v3188 = vpop.permute.xlu0 %3187
    %3189 = vrot.lane.b32.xlu0 %v3166, 24
    %v3190 = vpop.permute.xlu0 %3189
    %v3193 = vsel %vm177, %v2100, %v3172
    %v3194 = vsel %vm177, %v2176, %v3174
    %v3195 = vsel %vm1519, %v3193, %v3180
    %v3196 = vsel %vm1519, %v3194, %v3182
    %v3197 = vsel %vm1522, %v3195, %v3188
    %v3198 = vsel %vm1522, %v3196, %v3190
    %v3199 = vlaneseq
    %v3200 = vshrl.u32 %v3199, 7
    %v3201 = vsub.s32 0, %v3200
    %v3202 = vrot.slane %v80, %v3201
    %3203 = vrot.lane.b32.xlu0 %v59, 32
    %v3204 = vpop.permute.xlu0 %3203
    %3205 = vrot.lane.b32.xlu0 %v60, 32
    %v3206 = vpop.permute.xlu0 %3205
    %3207 = vrot.lane.b32.xlu0 %v61, 32
    %v3208 = vpop.permute.xlu0 %3207
    %3209 = vrot.lane.b32.xlu0 %v62, 32
    %v3210 = vpop.permute.xlu0 %3209
    %v3216 = vsel %vm92, %v3197, 0
    %v3219 = vsel %vm92, %v3198, 0
    %3221 = vmatprep.subr.mxu0 0.0
    %3222 = vmatpush1.msra.mxu0 %v3204
    %3223 = vmatprep.subr.mxu0 0.0
    %3224 = vmatpush1.msra.mxu0 %v3206
    %3225 = vmatprep.subr.mxu0 0.0
    %3226 = vmatpush1.msra.mxu0 %v3208
    %3227 = vmatprep.subr.mxu0 0.0
    %3228 = vmatpush1.msra.mxu0 %v3210
    %3229 = vmatprep.subr.mxu0 0.0
    %3230 = vmatpush1.msra.mxu0 0.0
    %3231 = vmatprep.subr.mxu0 0.0
    %3232 = vmatpush1.msra.mxu0 0.0
    %3233 = vmatprep.subr.mxu0 0.0
    %3234 = vmatpush1.msra.mxu0 0.0
    %3235 = vmatprep.subr.mxu0 0.0
    %3236 = vmatpush1.msra.mxu0 0.0
    %3237 = vmatprep.subr.mxu0 0.0
    %3238 = vmatpush1.msra.mxu0 0.0
    %3239 = vmatprep.subr.mxu0 0.0
    %3240 = vmatpush1.msra.mxu0 0.0
    %3241 = vmatprep.subr.mxu0 0.0
    %3242 = vmatpush1.msra.mxu0 0.0
    %3243 = vmatprep.subr.mxu0 0.0
    %3244 = vmatpush1.msra.mxu0 0.0
    %3245 = vmatprep.subr.mxu0 0.0
    %3246 = vmatpush1.msra.mxu0 0.0
    %3247 = vmatprep.subr.mxu0 0.0
    %3248 = vmatpush1.msra.mxu0 0.0
    %3249 = vmatprep.subr.mxu0 0.0
    %3250 = vmatpush1.msra.mxu0 0.0
    %3251 = vmatprep.subr.mxu0 0.0
    %3252 = vmatpush1.msra.mxu0 0.0
    %3253 = vmatprep.subr.mxu0 0.0
    %3254 = vmatpush1.msra.mxu0 0.0
    %3255 = vmatprep.subr.mxu0 0.0
    %3256 = vmatpush1.msra.mxu0 0.0
    %3257 = vmatprep.subr.mxu0 0.0
    %3258 = vmatpush1.msra.mxu0 0.0
    %3259 = vmatprep.subr.mxu0 0.0
    %3260 = vmatpush1.msra.mxu0 0.0
    %3261 = vmatprep.subr.mxu0 0.0
    %3262 = vmatpush1.msra.mxu0 0.0
    %3263 = vmatprep.subr.mxu0 0.0
    %3264 = vmatpush1.msra.mxu0 0.0
    %3265 = vmatprep.subr.mxu0 0.0
    %3266 = vmatpush1.msra.mxu0 0.0
    %3267 = vmatprep.subr.mxu0 0.0
    %3268 = vmatpush1.msra.mxu0 0.0
    %3269 = vmatprep.subr.mxu0 0.0
    %3270 = vmatpush1.msra.mxu0 0.0
    %3271 = vmatprep.subr.mxu0 0.0
    %3272 = vmatpush1.msra.mxu0 0.0
    %3273 = vmatprep.subr.mxu0 0.0
    %3274 = vmatpush1.msra.mxu0 0.0
    %3275 = vmatprep.subr.mxu0 0.0
    %3276 = vmatpush1.msra.mxu0 0.0
    %3277 = vmatprep.subr.mxu0 0.0
    %3278 = vmatpush1.msra.mxu0 0.0
    %3279 = vmatprep.subr.mxu0 0.0
    %3280 = vmatpush1.msra.mxu0 0.0
    %3281 = vmatprep.subr.mxu0 0.0
    %3282 = vmatpush1.msra.mxu0 0.0
    %3283 = vmatprep.subr.mxu0 0.0
    %3284 = vmatpush1.msra.mxu0 0.0
    %3285 = vmatprep.mubr.f32.mxu0 0.0
    %3286 = vmatmul.mubr.f32.gmra.mrb[0].mxu0 %v3216
    %v3287 = vpop.f32.mrb[0].mxu0
    %v3288 = vadd.f32 %v3202, %v3287
    %v3289 = vpop.f32.mrb[0].mxu0
    %3290 = vmatprep.mubr.f32.mxu0 0.0
    %3291 = vmatmul.mubr.f32.gmra.mrb[0].mxu0 %v3219
    %v3292 = vpop.f32.mrb[0].mxu0
    %v3293 = vadd.f32 %v3202, %v3292
    %v3294 = vpop.f32.mrb[0].mxu0
    %3295 = vdwg.mxu0
    %v3296 = vadd.f32 %v1665, %v3288
    %v3297 = vadd.f32 %v1666, %v3293
    %v3298 = vsel %vm92, %v3296, 0.0
    %3299 = vadd.xlane.f32.xlu0 %v3298
    %v3300 = vpop.xlane.xlu0 %3299
    %v3301 = vsel %vm92, %v3297, 0.0
    %3302 = vadd.xlane.f32.xlu0 %v3301
    %v3303 = vpop.xlane.xlu0 %3302
    %v3304 = vmul.f32 %v3300, %v1634
    %v3305 = vmul.f32 %v3303, %v1634
    %v3306 = vsub.f32 %v3296, %v3304
    %v3307 = vsub.f32 %v3297, %v3305
    %v3308 = vmul.f32 %v3306, %v3306
    %v3309 = vmul.f32 %v3307, %v3307
    %v3310 = vsel %vm92, %v3308, 0.0
    %3311 = vadd.xlane.f32.xlu0 %v3310
    %v3312 = vpop.xlane.xlu0 %3311
    %v3313 = vsel %vm92, %v3309, 0.0
    %3314 = vadd.xlane.f32.xlu0 %v3313
    %v3315 = vpop.xlane.xlu0 %3314
    %v3316 = vmul.f32 %v3312, %v1634
    %v3317 = vmul.f32 %v3315, %v1634
    %v3318 = vadd.f32 %v3316, 1e-05
    %v3319 = vadd.f32 %v3317, 1e-05
    %v3320 = vrsqrt.pop %v3318
    %v3321 = vrsqrt.pop %v3319
    %v3322 = vmul.f32 %v3306, %v3320
    %v3323 = vmul.f32 %v3307, %v3321
    %v3324 = vlaneseq
    %v3325 = vshrl.u32 %v3324, 7
    %v3326 = vsub.s32 0, %v3325
    %v3327 = vrot.slane %v84, %v3326
    %v3328 = vmul.f32 %v3322, %v3327
    %v3329 = vmul.f32 %v3323, %v3327
    %v3330 = vlaneseq
    %v3331 = vshrl.u32 %v3330, 7
    %v3332 = vsub.s32 0, %v3331
    %v3333 = vrot.slane %v85, %v3332
    %v3334 = vadd.f32 %v3328, %v3333
    %v3335 = vadd.f32 %v3329, %v3333
    %v3336 = vlaneseq
    %v3337 = vshrl.u32 %v3336, 7
    %v3338 = vsub.s32 0, %v3337
    %v3339 = vrot.slane %v77, %v3338
    %v3341 = vsel %vm92, %v3334, 0
    %v3344 = vsel %vm92, %v3335, 0
    %3346 = vmatprep.subr.mxu0 0.0
    %3347 = vmatpush1.msra.mxu0 %v63
    %3348 = vmatprep.subr.mxu0 0.0
    %3349 = vmatpush1.msra.mxu0 %v64
    %3350 = vmatprep.subr.mxu0 0.0
    %3351 = vmatpush1.msra.mxu0 %v65
    %3352 = vmatprep.subr.mxu0 0.0
    %3353 = vmatpush1.msra.mxu0 %v66
    %3354 = vmatprep.subr.mxu0 0.0
    %3355 = vmatpush1.msra.mxu0 0.0
    %3356 = vmatprep.subr.mxu0 0.0
    %3357 = vmatpush1.msra.mxu0 0.0
    %3358 = vmatprep.subr.mxu0 0.0
    %3359 = vmatpush1.msra.mxu0 0.0
    %3360 = vmatprep.subr.mxu0 0.0
    %3361 = vmatpush1.msra.mxu0 0.0
    %3362 = vmatprep.subr.mxu0 0.0
    %3363 = vmatpush1.msra.mxu0 0.0
    %3364 = vmatprep.subr.mxu0 0.0
    %3365 = vmatpush1.msra.mxu0 0.0
    %3366 = vmatprep.subr.mxu0 0.0
    %3367 = vmatpush1.msra.mxu0 0.0
    %3368 = vmatprep.subr.mxu0 0.0
    %3369 = vmatpush1.msra.mxu0 0.0
    %3370 = vmatprep.subr.mxu0 0.0
    %3371 = vmatpush1.msra.mxu0 0.0
    %3372 = vmatprep.subr.mxu0 0.0
    %3373 = vmatpush1.msra.mxu0 0.0
    %3374 = vmatprep.subr.mxu0 0.0
    %3375 = vmatpush1.msra.mxu0 0.0
    %3376 = vmatprep.subr.mxu0 0.0
    %3377 = vmatpush1.msra.mxu0 0.0
    %3378 = vmatprep.subr.mxu0 0.0
    %3379 = vmatpush1.msra.mxu0 0.0
    %3380 = vmatprep.subr.mxu0 0.0
    %3381 = vmatpush1.msra.mxu0 0.0
    %3382 = vmatprep.subr.mxu0 0.0
    %3383 = vmatpush1.msra.mxu0 0.0
    %3384 = vmatprep.subr.mxu0 0.0
    %3385 = vmatpush1.msra.mxu0 0.0
    %3386 = vmatprep.subr.mxu0 0.0
    %3387 = vmatpush1.msra.mxu0 0.0
    %3388 = vmatprep.subr.mxu0 0.0
    %3389 = vmatpush1.msra.mxu0 0.0
    %3390 = vmatprep.subr.mxu0 0.0
    %3391 = vmatpush1.msra.mxu0 0.0
    %3392 = vmatprep.subr.mxu0 0.0
    %3393 = vmatpush1.msra.mxu0 0.0
    %3394 = vmatprep.subr.mxu0 0.0
    %3395 = vmatpush1.msra.mxu0 0.0
    %3396 = vmatprep.subr.mxu0 0.0
    %3397 = vmatpush1.msra.mxu0 0.0
    %3398 = vmatprep.subr.mxu0 0.0
    %3399 = vmatpush1.msra.mxu0 0.0
    %3400 = vmatprep.subr.mxu0 0.0
    %3401 = vmatpush1.msra.mxu0 0.0
    %3402 = vmatprep.subr.mxu0 0.0
    %3403 = vmatpush1.msra.mxu0 0.0
    %3404 = vmatprep.subr.mxu0 0.0
    %3405 = vmatpush1.msra.mxu0 0.0
    %3406 = vmatprep.subr.mxu0 0.0
    %3407 = vmatpush1.msra.mxu0 0.0
    %3408 = vmatprep.subr.mxu0 0.0
    %3409 = vmatpush1.msra.mxu0 0.0
    %3410 = vmatprep.mubr.f32.mxu0 0.0
    %3411 = vmatmul.mubr.f32.gmra.mrb[0].mxu0 %v3341
    %v3412 = vpop.f32.mrb[0].mxu0
    %v3413 = vadd.f32 %v3339, %v3412
    %v3414 = vpop.f32.mrb[0].mxu0
    %3415 = vmatprep.mubr.f32.mxu0 0.0
    %3416 = vmatmul.mubr.f32.gmra.mrb[0].mxu0 %v3344
    %v3417 = vpop.f32.mrb[0].mxu0
    %v3418 = vadd.f32 %v3339, %v3417
    %v3419 = vpop.f32.mrb[0].mxu0
    %3420 = vdwg.mxu0
    %v3421 = vmax.f32 %v3413, 0.0
    %v3422 = vmax.f32 %v3418, 0.0
    %v3423 = vlaneseq
    %v3424 = vshrl.u32 %v3423, 7
    %v3425 = vsub.s32 0, %v3424
    %v3426 = vrot.slane %v81, %v3425
    %3435 = vrot.lane.b32.xlu0 %v67, 64
    %v3436 = vpop.permute.xlu0 %3435
    %3437 = vrot.lane.b32.xlu0 %v68, 64
    %v3438 = vpop.permute.xlu0 %3437
    %3439 = vrot.lane.b32.xlu0 %v69, 64
    %v3440 = vpop.permute.xlu0 %3439
    %3441 = vrot.lane.b32.xlu0 %v70, 64
    %v3442 = vpop.permute.xlu0 %3441
    %3443 = vrot.lane.b32.xlu0 %v71, 64
    %v3444 = vpop.permute.xlu0 %3443
    %3445 = vrot.lane.b32.xlu0 %v72, 64
    %v3446 = vpop.permute.xlu0 %3445
    %3447 = vrot.lane.b32.xlu0 %v73, 64
    %v3448 = vpop.permute.xlu0 %3447
    %3449 = vrot.lane.b32.xlu0 %v74, 64
    %v3450 = vpop.permute.xlu0 %3449
    %vm3459 = vcmask 523264
    %v3461 = vsel %vm3459, %v3421, 0
    %v3464 = vsel %vm3459, %v3422, 0
    %3466 = vmatprep.subr.mxu0 0.0
    %3467 = vmatpush1.msra.mxu0 %v3436
    %3468 = vmatprep.subr.mxu0 0.0
    %3469 = vmatpush1.msra.mxu0 %v3438
    %3470 = vmatprep.subr.mxu0 0.0
    %3471 = vmatpush1.msra.mxu0 %v3440
    %3472 = vmatprep.subr.mxu0 0.0
    %3473 = vmatpush1.msra.mxu0 %v3442
    %3474 = vmatprep.subr.mxu0 0.0
    %3475 = vmatpush1.msra.mxu0 %v3444
    %3476 = vmatprep.subr.mxu0 0.0
    %3477 = vmatpush1.msra.mxu0 %v3446
    %3478 = vmatprep.subr.mxu0 0.0
    %3479 = vmatpush1.msra.mxu0 %v3448
    %3480 = vmatprep.subr.mxu0 0.0
    %3481 = vmatpush1.msra.mxu0 %v3450
    %3482 = vmatprep.subr.mxu0 0.0
    %3483 = vmatpush1.msra.mxu0 0.0
    %3484 = vmatprep.subr.mxu0 0.0
    %3485 = vmatpush1.msra.mxu0 0.0
    %3486 = vmatprep.subr.mxu0 0.0
    %3487 = vmatpush1.msra.mxu0 0.0
    %3488 = vmatprep.subr.mxu0 0.0
    %3489 = vmatpush1.msra.mxu0 0.0
    %3490 = vmatprep.subr.mxu0 0.0
    %3491 = vmatpush1.msra.mxu0 0.0
    %3492 = vmatprep.subr.mxu0 0.0
    %3493 = vmatpush1.msra.mxu0 0.0
    %3494 = vmatprep.subr.mxu0 0.0
    %3495 = vmatpush1.msra.mxu0 0.0
    %3496 = vmatprep.subr.mxu0 0.0
    %3497 = vmatpush1.msra.mxu0 0.0
    %3498 = vmatprep.subr.mxu0 0.0
    %3499 = vmatpush1.msra.mxu0 0.0
    %3500 = vmatprep.subr.mxu0 0.0
    %3501 = vmatpush1.msra.mxu0 0.0
    %3502 = vmatprep.subr.mxu0 0.0
    %3503 = vmatpush1.msra.mxu0 0.0
    %3504 = vmatprep.subr.mxu0 0.0
    %3505 = vmatpush1.msra.mxu0 0.0
    %3506 = vmatprep.subr.mxu0 0.0
    %3507 = vmatpush1.msra.mxu0 0.0
    %3508 = vmatprep.subr.mxu0 0.0
    %3509 = vmatpush1.msra.mxu0 0.0
    %3510 = vmatprep.subr.mxu0 0.0
    %3511 = vmatpush1.msra.mxu0 0.0
    %3512 = vmatprep.subr.mxu0 0.0
    %3513 = vmatpush1.msra.mxu0 0.0
    %3514 = vmatprep.subr.mxu0 0.0
    %3515 = vmatpush1.msra.mxu0 0.0
    %3516 = vmatprep.subr.mxu0 0.0
    %3517 = vmatpush1.msra.mxu0 0.0
    %3518 = vmatprep.subr.mxu0 0.0
    %3519 = vmatpush1.msra.mxu0 0.0
    %3520 = vmatprep.subr.mxu0 0.0
    %3521 = vmatpush1.msra.mxu0 0.0
    %3522 = vmatprep.subr.mxu0 0.0
    %3523 = vmatpush1.msra.mxu0 0.0
    %3524 = vmatprep.subr.mxu0 0.0
    %3525 = vmatpush1.msra.mxu0 0.0
    %3526 = vmatprep.subr.mxu0 0.0
    %3527 = vmatpush1.msra.mxu0 0.0
    %3528 = vmatprep.subr.mxu0 0.0
    %3529 = vmatpush1.msra.mxu0 0.0
    %3530 = vmatprep.mubr.f32.mxu0 0.0
    %3531 = vmatmul.mubr.f32.gmra.mrb[0].mxu0 %v3461
    %v3532 = vpop.f32.mrb[0].mxu0
    %v3533 = vadd.f32 %v3426, %v3532
    %v3534 = vpop.f32.mrb[0].mxu0
    %3535 = vmatprep.mubr.f32.mxu0 0.0
    %3536 = vmatmul.mubr.f32.gmra.mrb[0].mxu0 %v3464
    %v3537 = vpop.f32.mrb[0].mxu0
    %v3538 = vadd.f32 %v3426, %v3537
    %v3539 = vpop.f32.mrb[0].mxu0
    %3540 = vdwg.mxu0
    %v3541 = vadd.f32 %v3334, %v3533
    %v3542 = vadd.f32 %v3335, %v3538
    %v3543 = vsel %vm92, %v3541, 0.0
    %3544 = vadd.xlane.f32.xlu0 %v3543
    %v3545 = vpop.xlane.xlu0 %3544
    %v3546 = vsel %vm92, %v3542, 0.0
    %3547 = vadd.xlane.f32.xlu0 %v3546
    %v3548 = vpop.xlane.xlu0 %3547
    %v3549 = vmul.f32 %v3545, %v1634
    %v3550 = vmul.f32 %v3548, %v1634
    %v3551 = vsub.f32 %v3541, %v3549
    %v3552 = vsub.f32 %v3542, %v3550
    %v3553 = vmul.f32 %v3551, %v3551
    %v3554 = vmul.f32 %v3552, %v3552
    %v3555 = vsel %vm92, %v3553, 0.0
    %3556 = vadd.xlane.f32.xlu0 %v3555
    %v3557 = vpop.xlane.xlu0 %3556
    %v3558 = vsel %vm92, %v3554, 0.0
    %3559 = vadd.xlane.f32.xlu0 %v3558
    %v3560 = vpop.xlane.xlu0 %3559
    %v3561 = vmul.f32 %v3557, %v1634
    %v3562 = vmul.f32 %v3560, %v1634
    %v3563 = vadd.f32 %v3561, 1e-05
    %v3564 = vadd.f32 %v3562, 1e-05
    %v3565 = vrsqrt.pop %v3563
    %v3566 = vrsqrt.pop %v3564
    %v3567 = vmul.f32 %v3551, %v3565
    %v3568 = vmul.f32 %v3552, %v3566
    %v3569 = vlaneseq
    %v3570 = vshrl.u32 %v3569, 7
    %v3571 = vsub.s32 0, %v3570
    %v3572 = vrot.slane %v86, %v3571
    %v3573 = vmul.f32 %v3567, %v3572
    %v3574 = vmul.f32 %v3568, %v3572
    %v3575 = vlaneseq
    %v3576 = vshrl.u32 %v3575, 7
    %v3577 = vsub.s32 0, %v3576
    %v3578 = vrot.slane %v87, %v3577
    %v3579 = vadd.f32 %v3573, %v3578
    %v3580 = vadd.f32 %v3574, %v3578
    %3581 = vst.msk [vmem:[#allocation7] sm:$0xff] %vm92, %v3579
    %3582 = vst.msk [vmem:[#allocation7 + $0x8] sm:$0xff] %vm92, %v3580
    // Predicated region
    $region30: #{tpu_custom_call.1} parent=1 // pred_check
      _
    $region31: #{tpu_custom_call.1} parent=1 // pred_check_branch
      %3584 = sbr.rel (0) target = $region33
    $region32: #{tpu_custom_call.1} parent=1 // pred_region
      %s3586 = ssub.s32 256, 256
      %3587 = vsyncadd [#allocation4], %s3586
      %s3588 = sshll.u32 [#allocation7], 4
      %s3589 = int_to_ptr.vmem [resolvable:$true] %s3588
      %3594 = dma.vmem_to_hbm [thread:$0]  %s3589, 256, %s5, [#allocation4], 128, 128, 8
    $region33: #{tpu_custom_call.1} parent=1 // pred_fallthru
      _
    // Predicated region
    $region34: #{tpu_custom_call.1} parent=1 // pred_check
      _
    $region35: #{tpu_custom_call.1} parent=1 // pred_check_branch
      %3596 = sbr.rel (0) target = $region37
    $region36: #{tpu_custom_call.1} parent=1 // pred_region
      %3597 = dma.done [#allocation4], 256
    $region37: #{tpu_custom_call.1} parent=1 // pred_fallthru
      _
    %3598 = vsyncpa [#allocation3], 1
    %3599 = vsyncpa [#allocation6], 1
    %3600 = vsyncpa [#allocation4], 1

</llo_original>
